<compile_context>
chip_gen: v7x
topology: tpu7x:2x2x1
jax: 0.10.0
libtpu: 0.0.40
codegen_flags: <defaults>
</compile_context>

<pallas_src>
import math
import numpy as np

import jax
import jax.numpy as jnp
from jax.experimental import pallas as pl
from jax.experimental.pallas import tpu as pltpu


# ---------------------------------------------------------------------------
# Fused kernel: pool -> L attention blocks -> ff_post -> broadcast residual add
# ---------------------------------------------------------------------------
def make_fused_kernel(n_heads, dqk, dv, scaler, eps=1e-5):
    def layernorm(x, gamma, beta):
        mu = jnp.mean(x, axis=-1, keepdims=True)
        var = jnp.mean((x - mu) ** 2, axis=-1, keepdims=True)
        return (x - mu) * jax.lax.rsqrt(var + eps) * gamma + beta

    def mm(a, b):          # a @ b with f32 accumulation on the MXU
        return jax.lax.dot_general(a, b, (((1,), (0,)), ((), ())),
                                   preferred_element_type=jnp.float32)

    def mm_t(a, b):        # a @ b.T without materializing the transpose
        return jax.lax.dot_general(a, b, (((1,), (1,)), ((), ())),
                                   preferred_element_type=jnp.float32)

    def kernel(feat_ref, pool_ref, bcast_ref, b0_ref, maskb_ref,
               wq_ref, bq_ref, wk_ref, bk_ref, wv_ref, bv_ref, wf_ref, bf_ref,
               f1_ref, fb1_ref, f2_ref, fb2_ref, g1_ref, b1n_ref, g2_ref, b2n_ref,
               p1_ref, pb1_ref, p2_ref, pb2_ref, out_ref):
        feat = feat_ref[...]                       # (N, C*HW)  resident
        b0 = b0_ref[...]                           # (M, KV)    packed memory_long
        maskb = maskb_ref[...]                     # (N, M)     additive group mask

        # avg_pool2d(kernel_size=7).squeeze(): one matmul against a constant
        # per-channel averaging matrix -> (N, C) directly, no relayout/reshape.
        z = mm(feat, pool_ref[...])                # (N, C)

        n_blocks = wq_ref.shape[0]
        for i in range(n_blocks):                  # static unroll, static ref views
            # flat projections (single MXU pushes; no per-head broadcasts)
            q = (mm(z, wq_ref[i]) + bq_ref[i]) * scaler     # (N, QK), scale folded in
            k = mm(b0, wk_ref[i]) + bk_ref[i]               # (M, QK)
            v = mm(b0, wv_ref[i]) + bv_ref[i]               # (M, VO)

            # per-head view only for the tiny score / P@V matmuls (2-D lane slices)
            o_heads = []
            for h in range(n_heads):
                qh = q[:, h * dqk:(h + 1) * dqk]
                kh = k[:, h * dqk:(h + 1) * dqk]
                vh = v[:, h * dv:(h + 1) * dv]
                s = mm_t(qh, kh) + maskb                    # (N, M), masked scores
                s = s - jnp.max(s, axis=-1, keepdims=True)
                e = jnp.exp(s)                              # masked entries -> 0
                denom = jnp.sum(e, axis=-1, keepdims=True)
                r = pl.reciprocal(denom, approx=True)       # EUP slot
                r = r * (2.0 - denom * r)                   # one Newton step
                o_heads.append(mm(e * r, vh))               # (N, dv)
            o = jnp.concatenate(o_heads, axis=-1)           # (N, VO) head-major
            attn = mm(o, wf_ref[i]) + bf_ref[i]             # (N, C)

            z = layernorm(z + attn, g1_ref[i], b1n_ref[i])
            h1 = jnp.maximum(mm(z, f1_ref[i]) + fb1_ref[i], 0.0)
            z = layernorm(z + mm(h1, f2_ref[i]) + fb2_ref[i],
                          g2_ref[i], b2n_ref[i])

        # ff_post, then broadcast over HW + residual add (again one matmul)
        hp = jnp.maximum(mm(z, p1_ref[...]) + pb1_ref[...], 0.0)
        zf = mm(hp, p2_ref[...]) + pb2_ref[...]             # (N, C)
        out_ref[...] = feat + mm(zf, bcast_ref[...])        # (N, C*HW), lane-dense

    return kernel


# ---------------------------------------------------------------------------
# Wrapper
# ---------------------------------------------------------------------------
def context_blender_forward(features, memory_long, n_boxes_per_images, params,
                            n_heads, temperature):
    N, C, H, W = features.shape
    assert H == 7 and W == 7, \
        "avg_pool2d(kernel_size=7).squeeze() semantics require H == W == 7"
    HW = H * W
    assert sum(n_boxes_per_images) == N

    b_lens = [int(m.shape[0]) for m in memory_long]
    assert len(b_lens) == len(n_boxes_per_images)
    for nb, bl in zip(n_boxes_per_images, b_lens):
        assert nb == 0 or bl > 0, \
            "image with boxes but empty long-term memory -> softmax undefined"

    # packed memory + additive block-diagonal mask bias (hoisted out of the kernel).
    # -1e30 underflows to exactly 0 after exp(x - max); use finfo(f32).min/2 if raw
    # scores could ever approach that magnitude.
    b0 = jnp.concatenate(memory_long, axis=0)
    box_groups = np.repeat(np.arange(len(n_boxes_per_images)), n_boxes_per_images)
    mem_groups = np.repeat(np.arange(len(b_lens)), b_lens)
    maskb = jnp.asarray(
        np.where(box_groups[:, None] == mem_groups[None, :], 0.0, -1e30)
        .astype(np.float32))

    L, _, QK = params["wqT"].shape
    VO = params["wvT"].shape[2]
    assert QK % n_heads == 0 and VO % n_heads == 0
    dqk, dv = QK // n_heads, VO // n_heads
    scaler = 1.0 / (temperature * math.sqrt(dqk))

    # free (contiguous) 2-D view of features; no jnp.pad / relayout copies anywhere
    feat2d = features.reshape(N, C * HW)

    # constant matrices implementing the pool / broadcast as lane-dense matmuls
    eye_c = np.eye(C, dtype=np.float32)
    pool_mat = jnp.asarray(np.kron(eye_c, np.full((HW, 1), 1.0 / HW, np.float32)))
    bcast_mat = jnp.asarray(np.kron(eye_c, np.ones((1, HW), np.float32)))

    inputs = [feat2d, pool_mat, bcast_mat, b0, maskb,
              params["wqT"], params["bq"], params["wkT"], params["bk"],
              params["wvT"], params["bv"], params["wfT"], params["bf"],
              params["f1T"], params["fb1"], params["f2T"], params["fb2"],
              params["g1"], params["b1n"], params["g2"], params["b2n"],
              params["p1T"], params["pb1"], params["p2T"], params["pb2"]]

    # everything is VMEM-resident for this single-invocation kernel
    total_bytes = sum(int(np.prod(a.shape)) * 4 for a in inputs) + N * C * HW * 4
    assert total_bytes < 40 * 2 ** 20, \
        "inputs too large for a fully-resident fused kernel; tile the pool/add stages"

    try:
        phys_vmem = pltpu.get_tpu_info().vmem_capacity_bytes
    except Exception:
        phys_vmem = 64 * 2 ** 20            # v7x floor; v5e/v6e have 128 MiB
    vmem_limit = int(min(0.55 * phys_vmem, max(16 * 2 ** 20, 4 * total_bytes)))

    out2d = pl.pallas_call(
        make_fused_kernel(n_heads, dqk, dv, scaler),
        out_shape=jax.ShapeDtypeStruct((N, C * HW), jnp.float32),
        compiler_params=pltpu.CompilerParams(vmem_limit_bytes=vmem_limit),
    )(*inputs)
    return out2d.reshape(N, C, H, W)


# ---------------------------------------------------------------------------
# Deterministic parameter init (synthetic, not a checkpoint load)
# ---------------------------------------------------------------------------
def init_params(key, n_blocks, c, qk_out, v_out, ff_hidden, spatiotemporal=9):
    kv = c + spatiotemporal
    keys = jax.random.split(key, 16)

    def u(k, shape, fan_in):
        a = 1.0 / math.sqrt(fan_in)
        return jax.random.uniform(k, shape, jnp.float32, -a, a)

    L = n_blocks
    return dict(
        wqT=u(keys[0], (L, c, qk_out), c),      bq=u(keys[1], (L, 1, qk_out), c),
        wkT=u(keys[2], (L, kv, qk_out), kv),    bk=u(keys[3], (L, 1, qk_out), kv),
        wvT=u(keys[4], (L, kv, v_out), kv),     bv=u(keys[5], (L, 1, v_out), kv),
        wfT=u(keys[6], (L, v_out, c), v_out),   bf=u(keys[7], (L, 1, c), v_out),
        f1T=u(keys[8], (L, c, ff_hidden), c),   fb1=u(keys[9], (L, 1, ff_hidden), c),
        f2T=u(keys[10], (L, ff_hidden, c), ff_hidden),
        fb2=u(keys[11], (L, 1, c), ff_hidden),
        g1=jnp.ones((L, 1, c), jnp.float32),    b1n=jnp.zeros((L, 1, c), jnp.float32),
        g2=jnp.ones((L, 1, c), jnp.float32),    b2n=jnp.zeros((L, 1, c), jnp.float32),
        p1T=u(keys[12], (c, ff_hidden), c),     pb1=u(keys[13], (1, ff_hidden), c),
        p2T=u(keys[14], (ff_hidden, c), ff_hidden),
        pb2=u(keys[15], (1, c), ff_hidden),
    )


# ---------------------------------------------------------------------------
# NumPy float64 reference: mirrors the PyTorch forward (true per-group splits)
# ---------------------------------------------------------------------------
def reference_forward(features, memory_long, n_boxes_per_images, params,
                      n_heads, temperature):
    f64 = lambda x: np.asarray(x, dtype=np.float64)
    feat = f64(features)
    Nb, C = feat.shape[:2]
    z = feat.reshape(Nb, C, -1).mean(-1)              # avg_pool2d(k=7) + squeeze
    B0 = np.concatenate([f64(m) for m in memory_long], axis=0)
    A_lens = list(n_boxes_per_images)
    B_lens = [m.shape[0] for m in memory_long]
    A_off = np.cumsum([0] + A_lens)
    B_off = np.cumsum([0] + B_lens)

    P = {k: f64(v) for k, v in params.items()}
    L = P["wqT"].shape[0]
    dqk = P["wqT"].shape[-1] // n_heads
    dv = P["wvT"].shape[-1] // n_heads
    scaler = 1.0 / (temperature * math.sqrt(dqk))
    eps = 1e-5

    def ln(x, g, b):
        mu = x.mean(-1, keepdims=True)
        var = ((x - mu) ** 2).mean(-1, keepdims=True)
        return (x - mu) / np.sqrt(var + eps) * g + b

    for i in range(L):
        q = z @ P["wqT"][i] + P["bq"][i]
        k = B0 @ P["wkT"][i] + P["bk"][i]
        v = B0 @ P["wvT"][i] + P["bv"][i]
        q3 = q.reshape(-1, n_heads, dqk)
        k3 = k.reshape(-1, n_heads, dqk)
        v3 = v.reshape(-1, n_heads, dv)
        wv_rows = []
        for g in range(len(A_lens)):
            qg = q3[A_off[g]:A_off[g + 1]]
            kg = k3[B_off[g]:B_off[g + 1]]
            vg = v3[B_off[g]:B_off[g + 1]]
            qk = np.einsum('ihj,khj->ihk', qg, kg) * scaler
            qk = qk - qk.max(-1, keepdims=True)
            w = np.exp(qk)
            w = w / w.sum(-1, keepdims=True)
            wv = np.einsum('ihk,khj->ihj', w, vg)
            wv_rows.append(wv.reshape(wv.shape[0], -1))
        f = np.concatenate(wv_rows, 0) @ P["wfT"][i] + P["bf"][i]
        z = ln(z + f, P["g1"][i], P["b1n"][i])
        ff = np.maximum(z @ P["f1T"][i] + P["fb1"][i], 0.0) @ P["f2T"][i] + P["fb2"][i]
        z = ln(z + ff, P["g2"][i], P["b2n"][i])
    z = np.maximum(z @ P["p1T"] + P["pb1"], 0.0) @ P["p2T"] + P["pb2"]
    return feat + z[:, :, None, None]


# ---------------------------------------------------------------------------
if __name__ == "__main__":
    n_attention_blocks = 2
    n_attention_heads = 4
    q_in_dim = 32            # channel dim C
    qk_out_dim = 32
    v_out_dim = 32
    ff_n_hidden = 64
    temperature = 1.0
    spatiotemporal = 9       # default spatiotemporal_size -> kv_in = 41

    n_boxes_per_images = [3, 5]      # 2 images, 8 boxes total
    memory_lens = [4, 6]             # per-image long-term memory sizes
    N = sum(n_boxes_per_images)
    H = W = 7                        # avg_pool2d(kernel_size=7) covers all

    key = jax.random.PRNGKey(0)
    k_feat, k_m0, k_m1, k_params = jax.random.split(key, 4)

    features = jax.random.normal(k_feat, (N, q_in_dim, H, W), jnp.float32)
    memory_long = [
        jax.random.normal(k_m0, (memory_lens[0], q_in_dim + spatiotemporal), jnp.float32),
        jax.random.normal(k_m1, (memory_lens[1], q_in_dim + spatiotemporal), jnp.float32),
    ]
    params = init_params(k_params, n_attention_blocks, q_in_dim,
                         qk_out_dim, v_out_dim, ff_n_hidden, spatiotemporal)

    out = context_blender_forward(features, memory_long, n_boxes_per_images,
                                  params, n_attention_heads, temperature)
    out = jax.block_until_ready(out)

    ref = reference_forward(features, memory_long, n_boxes_per_images,
                            params, n_attention_heads, temperature)
    np.testing.assert_allclose(np.asarray(out), ref, rtol=5e-3, atol=5e-3)
    assert out.shape == features.shape and out.dtype == jnp.float32

    print("KERNEL_OK")
</pallas_src>

<mosaic_0001>
module attributes {stable_mosaic.version = 11 : i64} {
  func.func @kernel(%arg0: memref<8x1568xf32, #tpu.memory_space<vmem>>, %arg1: memref<1568x32xf32, #tpu.memory_space<vmem>>, %arg2: memref<32x1568xf32, #tpu.memory_space<vmem>>, %arg3: memref<10x41xf32, #tpu.memory_space<vmem>>, %arg4: memref<8x10xf32, #tpu.memory_space<vmem>>, %arg5: memref<2x32x32xf32, #tpu.memory_space<vmem>>, %arg6: memref<2x1x32xf32, #tpu.memory_space<vmem>>, %arg7: memref<2x41x32xf32, #tpu.memory_space<vmem>>, %arg8: memref<2x1x32xf32, #tpu.memory_space<vmem>>, %arg9: memref<2x41x32xf32, #tpu.memory_space<vmem>>, %arg10: memref<2x1x32xf32, #tpu.memory_space<vmem>>, %arg11: memref<2x32x32xf32, #tpu.memory_space<vmem>>, %arg12: memref<2x1x32xf32, #tpu.memory_space<vmem>>, %arg13: memref<2x32x64xf32, #tpu.memory_space<vmem>>, %arg14: memref<2x1x64xf32, #tpu.memory_space<vmem>>, %arg15: memref<2x64x32xf32, #tpu.memory_space<vmem>>, %arg16: memref<2x1x32xf32, #tpu.memory_space<vmem>>, %arg17: memref<2x1x32xf32, #tpu.memory_space<vmem>>, %arg18: memref<2x1x32xf32, #tpu.memory_space<vmem>>, %arg19: memref<2x1x32xf32, #tpu.memory_space<vmem>>, %arg20: memref<2x1x32xf32, #tpu.memory_space<vmem>>, %arg21: memref<32x64xf32, #tpu.memory_space<vmem>>, %arg22: memref<1x64xf32, #tpu.memory_space<vmem>>, %arg23: memref<64x32xf32, #tpu.memory_space<vmem>>, %arg24: memref<1x32xf32, #tpu.memory_space<vmem>>, %arg25: memref<8x1568xf32, #tpu.memory_space<vmem>>) attributes {dimension_semantics = [], scalar_prefetch = 0 : i64, scratch_operands = 0 : i64, tpu.core_type = #tpu.core_type<tc>} {
    %c0 = arith.constant 0 : index
    %c0_0 = arith.constant 0 : index
    %0 = vector.load %arg0[%c0, %c0_0] : memref<8x1568xf32, #tpu.memory_space<vmem>>, vector<8x1568xf32>
    %c0_1 = arith.constant 0 : index
    %c0_2 = arith.constant 0 : index
    %1 = vector.load %arg3[%c0_1, %c0_2] : memref<10x41xf32, #tpu.memory_space<vmem>>, vector<10x41xf32>
    %c0_3 = arith.constant 0 : index
    %c0_4 = arith.constant 0 : index
    %2 = vector.load %arg4[%c0_3, %c0_4] : memref<8x10xf32, #tpu.memory_space<vmem>>, vector<8x10xf32>
    %c0_5 = arith.constant 0 : index
    %c0_6 = arith.constant 0 : index
    %3 = vector.load %arg1[%c0_5, %c0_6] : memref<1568x32xf32, #tpu.memory_space<vmem>>, vector<1568x32xf32>
    %cst = arith.constant dense<0.000000e+00> : vector<8x32xf32>
    %4 = tpu.matmul %0, %3, %cst {dimension_numbers = #tpu.dot_dimension_numbers<[1], [0], [0], [1], [0, 0, 1, 1], [], []>} : vector<8x1568xf32>, vector<1568x32xf32>, vector<8x32xf32> -> vector<8x32xf32>
    %c0_7 = arith.constant 0 : index
    %c0_8 = arith.constant 0 : index
    %c0_9 = arith.constant 0 : index
    %5 = vector.load %arg5[%c0_7, %c0_8, %c0_9] : memref<2x32x32xf32, #tpu.memory_space<vmem>>, vector<1x32x32xf32>
    %6 = vector.shape_cast %5 : vector<1x32x32xf32> to vector<32x32xf32>
    %cst_10 = arith.constant dense<0.000000e+00> : vector<8x32xf32>
    %7 = tpu.matmul %4, %6, %cst_10 {dimension_numbers = #tpu.dot_dimension_numbers<[1], [0], [0], [1], [0, 0, 1, 1], [], []>} : vector<8x32xf32>, vector<32x32xf32>, vector<8x32xf32> -> vector<8x32xf32>
    %c0_11 = arith.constant 0 : index
    %c0_12 = arith.constant 0 : index
    %c0_13 = arith.constant 0 : index
    %8 = vector.load %arg6[%c0_11, %c0_12, %c0_13] : memref<2x1x32xf32, #tpu.memory_space<vmem>>, vector<1x1x32xf32>
    %9 = vector.shape_cast %8 : vector<1x1x32xf32> to vector<1x32xf32>
    %10 = vector.broadcast %9 : vector<1x32xf32> to vector<8x32xf32>
    %11 = arith.addf %7, %10 : vector<8x32xf32>
    %cst_14 = arith.constant 0.353553385 : f32
    %12 = vector.broadcast %cst_14 : f32 to vector<8x32xf32>
    %13 = arith.mulf %11, %12 : vector<8x32xf32>
    %c0_15 = arith.constant 0 : index
    %c0_16 = arith.constant 0 : index
    %c0_17 = arith.constant 0 : index
    %14 = vector.load %arg7[%c0_15, %c0_16, %c0_17] : memref<2x41x32xf32, #tpu.memory_space<vmem>>, vector<1x41x32xf32>
    %15 = vector.shape_cast %14 : vector<1x41x32xf32> to vector<41x32xf32>
    %cst_18 = arith.constant dense<0.000000e+00> : vector<10x32xf32>
    %16 = tpu.matmul %1, %15, %cst_18 {dimension_numbers = #tpu.dot_dimension_numbers<[1], [0], [0], [1], [0, 0, 1, 1], [], []>} : vector<10x41xf32>, vector<41x32xf32>, vector<10x32xf32> -> vector<10x32xf32>
    %c0_19 = arith.constant 0 : index
    %c0_20 = arith.constant 0 : index
    %c0_21 = arith.constant 0 : index
    %17 = vector.load %arg8[%c0_19, %c0_20, %c0_21] : memref<2x1x32xf32, #tpu.memory_space<vmem>>, vector<1x1x32xf32>
    %18 = vector.shape_cast %17 : vector<1x1x32xf32> to vector<1x32xf32>
    %19 = vector.broadcast %18 : vector<1x32xf32> to vector<10x32xf32>
    %20 = arith.addf %16, %19 : vector<10x32xf32>
    %c0_22 = arith.constant 0 : index
    %c0_23 = arith.constant 0 : index
    %c0_24 = arith.constant 0 : index
    %21 = vector.load %arg9[%c0_22, %c0_23, %c0_24] : memref<2x41x32xf32, #tpu.memory_space<vmem>>, vector<1x41x32xf32>
    %22 = vector.shape_cast %21 : vector<1x41x32xf32> to vector<41x32xf32>
    %cst_25 = arith.constant dense<0.000000e+00> : vector<10x32xf32>
    %23 = tpu.matmul %1, %22, %cst_25 {dimension_numbers = #tpu.dot_dimension_numbers<[1], [0], [0], [1], [0, 0, 1, 1], [], []>} : vector<10x41xf32>, vector<41x32xf32>, vector<10x32xf32> -> vector<10x32xf32>
    %c0_26 = arith.constant 0 : index
    %c0_27 = arith.constant 0 : index
    %c0_28 = arith.constant 0 : index
    %24 = vector.load %arg10[%c0_26, %c0_27, %c0_28] : memref<2x1x32xf32, #tpu.memory_space<vmem>>, vector<1x1x32xf32>
    %25 = vector.shape_cast %24 : vector<1x1x32xf32> to vector<1x32xf32>
    %26 = vector.broadcast %25 : vector<1x32xf32> to vector<10x32xf32>
    %27 = arith.addf %23, %26 : vector<10x32xf32>
    %28 = vector.extract_strided_slice %13 {offsets = [0, 0], sizes = [8, 8], strides = [1, 1]} : vector<8x32xf32> to vector<8x8xf32>
    %29 = vector.extract_strided_slice %20 {offsets = [0, 0], sizes = [10, 8], strides = [1, 1]} : vector<10x32xf32> to vector<10x8xf32>
    %30 = vector.extract_strided_slice %27 {offsets = [0, 0], sizes = [10, 8], strides = [1, 1]} : vector<10x32xf32> to vector<10x8xf32>
    %cst_29 = arith.constant dense<0.000000e+00> : vector<8x10xf32>
    %31 = tpu.matmul %28, %29, %cst_29 {dimension_numbers = #tpu.dot_dimension_numbers<[1], [1], [0], [0], [0, 0, 1, 0], [], []>} : vector<8x8xf32>, vector<10x8xf32>, vector<8x10xf32> -> vector<8x10xf32>
    %32 = arith.addf %31, %2 : vector<8x10xf32>
    %cst_30 = arith.constant dense<0xFF800000> : vector<8xf32>
    %33 = vector.multi_reduction <maximumf>, %32, %cst_30 [1] : vector<8x10xf32> to vector<8xf32>
    %34 = vector.shape_cast %33 : vector<8xf32> to vector<8x1xf32>
    %35 = vector.broadcast %34 : vector<8x1xf32> to vector<8x10xf32>
    %36 = arith.subf %32, %35 : vector<8x10xf32>
    %37 = math.exp %36 : vector<8x10xf32>
    %cst_31 = arith.constant dense<0.000000e+00> : vector<8xf32>
    %38 = vector.multi_reduction <add>, %37, %cst_31 [1] : vector<8x10xf32> to vector<8xf32>
    %39 = vector.shape_cast %38 : vector<8xf32> to vector<8x1xf32>
    %40 = tpu.reciprocal %39 {approx = true} : vector<8x1xf32> -> vector<8x1xf32>
    %41 = arith.mulf %39, %40 : vector<8x1xf32>
    %cst_32 = arith.constant 2.000000e+00 : f32
    %42 = vector.broadcast %cst_32 : f32 to vector<8x1xf32>
    %43 = arith.subf %42, %41 : vector<8x1xf32>
    %44 = arith.mulf %40, %43 : vector<8x1xf32>
    %45 = vector.broadcast %44 : vector<8x1xf32> to vector<8x10xf32>
    %46 = arith.mulf %37, %45 : vector<8x10xf32>
    %cst_33 = arith.constant dense<0.000000e+00> : vector<8x8xf32>
    %47 = tpu.matmul %46, %30, %cst_33 {dimension_numbers = #tpu.dot_dimension_numbers<[1], [0], [0], [1], [0, 0, 1, 1], [], []>} : vector<8x10xf32>, vector<10x8xf32>, vector<8x8xf32> -> vector<8x8xf32>
    %48 = vector.extract_strided_slice %13 {offsets = [0, 8], sizes = [8, 8], strides = [1, 1]} : vector<8x32xf32> to vector<8x8xf32>
    %49 = vector.extract_strided_slice %20 {offsets = [0, 8], sizes = [10, 8], strides = [1, 1]} : vector<10x32xf32> to vector<10x8xf32>
    %50 = vector.extract_strided_slice %27 {offsets = [0, 8], sizes = [10, 8], strides = [1, 1]} : vector<10x32xf32> to vector<10x8xf32>
    %cst_34 = arith.constant dense<0.000000e+00> : vector<8x10xf32>
    %51 = tpu.matmul %48, %49, %cst_34 {dimension_numbers = #tpu.dot_dimension_numbers<[1], [1], [0], [0], [0, 0, 1, 0], [], []>} : vector<8x8xf32>, vector<10x8xf32>, vector<8x10xf32> -> vector<8x10xf32>
    %52 = arith.addf %51, %2 : vector<8x10xf32>
    %cst_35 = arith.constant dense<0xFF800000> : vector<8xf32>
    %53 = vector.multi_reduction <maximumf>, %52, %cst_35 [1] : vector<8x10xf32> to vector<8xf32>
    %54 = vector.shape_cast %53 : vector<8xf32> to vector<8x1xf32>
    %55 = vector.broadcast %54 : vector<8x1xf32> to vector<8x10xf32>
    %56 = arith.subf %52, %55 : vector<8x10xf32>
    %57 = math.exp %56 : vector<8x10xf32>
    %cst_36 = arith.constant dense<0.000000e+00> : vector<8xf32>
    %58 = vector.multi_reduction <add>, %57, %cst_36 [1] : vector<8x10xf32> to vector<8xf32>
    %59 = vector.shape_cast %58 : vector<8xf32> to vector<8x1xf32>
    %60 = tpu.reciprocal %59 {approx = true} : vector<8x1xf32> -> vector<8x1xf32>
    %61 = arith.mulf %59, %60 : vector<8x1xf32>
    %cst_37 = arith.constant 2.000000e+00 : f32
    %62 = vector.broadcast %cst_37 : f32 to vector<8x1xf32>
    %63 = arith.subf %62, %61 : vector<8x1xf32>
    %64 = arith.mulf %60, %63 : vector<8x1xf32>
    %65 = vector.broadcast %64 : vector<8x1xf32> to vector<8x10xf32>
    %66 = arith.mulf %57, %65 : vector<8x10xf32>
    %cst_38 = arith.constant dense<0.000000e+00> : vector<8x8xf32>
    %67 = tpu.matmul %66, %50, %cst_38 {dimension_numbers = #tpu.dot_dimension_numbers<[1], [0], [0], [1], [0, 0, 1, 1], [], []>} : vector<8x10xf32>, vector<10x8xf32>, vector<8x8xf32> -> vector<8x8xf32>
    %68 = vector.extract_strided_slice %13 {offsets = [0, 16], sizes = [8, 8], strides = [1, 1]} : vector<8x32xf32> to vector<8x8xf32>
    %69 = vector.extract_strided_slice %20 {offsets = [0, 16], sizes = [10, 8], strides = [1, 1]} : vector<10x32xf32> to vector<10x8xf32>
    %70 = vector.extract_strided_slice %27 {offsets = [0, 16], sizes = [10, 8], strides = [1, 1]} : vector<10x32xf32> to vector<10x8xf32>
    %cst_39 = arith.constant dense<0.000000e+00> : vector<8x10xf32>
    %71 = tpu.matmul %68, %69, %cst_39 {dimension_numbers = #tpu.dot_dimension_numbers<[1], [1], [0], [0], [0, 0, 1, 0], [], []>} : vector<8x8xf32>, vector<10x8xf32>, vector<8x10xf32> -> vector<8x10xf32>
    %72 = arith.addf %71, %2 : vector<8x10xf32>
    %cst_40 = arith.constant dense<0xFF800000> : vector<8xf32>
    %73 = vector.multi_reduction <maximumf>, %72, %cst_40 [1] : vector<8x10xf32> to vector<8xf32>
    %74 = vector.shape_cast %73 : vector<8xf32> to vector<8x1xf32>
    %75 = vector.broadcast %74 : vector<8x1xf32> to vector<8x10xf32>
    %76 = arith.subf %72, %75 : vector<8x10xf32>
    %77 = math.exp %76 : vector<8x10xf32>
    %cst_41 = arith.constant dense<0.000000e+00> : vector<8xf32>
    %78 = vector.multi_reduction <add>, %77, %cst_41 [1] : vector<8x10xf32> to vector<8xf32>
    %79 = vector.shape_cast %78 : vector<8xf32> to vector<8x1xf32>
    %80 = tpu.reciprocal %79 {approx = true} : vector<8x1xf32> -> vector<8x1xf32>
    %81 = arith.mulf %79, %80 : vector<8x1xf32>
    %cst_42 = arith.constant 2.000000e+00 : f32
    %82 = vector.broadcast %cst_42 : f32 to vector<8x1xf32>
    %83 = arith.subf %82, %81 : vector<8x1xf32>
    %84 = arith.mulf %80, %83 : vector<8x1xf32>
    %85 = vector.broadcast %84 : vector<8x1xf32> to vector<8x10xf32>
    %86 = arith.mulf %77, %85 : vector<8x10xf32>
    %cst_43 = arith.constant dense<0.000000e+00> : vector<8x8xf32>
    %87 = tpu.matmul %86, %70, %cst_43 {dimension_numbers = #tpu.dot_dimension_numbers<[1], [0], [0], [1], [0, 0, 1, 1], [], []>} : vector<8x10xf32>, vector<10x8xf32>, vector<8x8xf32> -> vector<8x8xf32>
    %88 = vector.extract_strided_slice %13 {offsets = [0, 24], sizes = [8, 8], strides = [1, 1]} : vector<8x32xf32> to vector<8x8xf32>
    %89 = vector.extract_strided_slice %20 {offsets = [0, 24], sizes = [10, 8], strides = [1, 1]} : vector<10x32xf32> to vector<10x8xf32>
    %90 = vector.extract_strided_slice %27 {offsets = [0, 24], sizes = [10, 8], strides = [1, 1]} : vector<10x32xf32> to vector<10x8xf32>
    %cst_44 = arith.constant dense<0.000000e+00> : vector<8x10xf32>
    %91 = tpu.matmul %88, %89, %cst_44 {dimension_numbers = #tpu.dot_dimension_numbers<[1], [1], [0], [0], [0, 0, 1, 0], [], []>} : vector<8x8xf32>, vector<10x8xf32>, vector<8x10xf32> -> vector<8x10xf32>
    %92 = arith.addf %91, %2 : vector<8x10xf32>
    %cst_45 = arith.constant dense<0xFF800000> : vector<8xf32>
    %93 = vector.multi_reduction <maximumf>, %92, %cst_45 [1] : vector<8x10xf32> to vector<8xf32>
    %94 = vector.shape_cast %93 : vector<8xf32> to vector<8x1xf32>
    %95 = vector.broadcast %94 : vector<8x1xf32> to vector<8x10xf32>
    %96 = arith.subf %92, %95 : vector<8x10xf32>
    %97 = math.exp %96 : vector<8x10xf32>
    %cst_46 = arith.constant dense<0.000000e+00> : vector<8xf32>
    %98 = vector.multi_reduction <add>, %97, %cst_46 [1] : vector<8x10xf32> to vector<8xf32>
    %99 = vector.shape_cast %98 : vector<8xf32> to vector<8x1xf32>
    %100 = tpu.reciprocal %99 {approx = true} : vector<8x1xf32> -> vector<8x1xf32>
    %101 = arith.mulf %99, %100 : vector<8x1xf32>
    %cst_47 = arith.constant 2.000000e+00 : f32
    %102 = vector.broadcast %cst_47 : f32 to vector<8x1xf32>
    %103 = arith.subf %102, %101 : vector<8x1xf32>
    %104 = arith.mulf %100, %103 : vector<8x1xf32>
    %105 = vector.broadcast %104 : vector<8x1xf32> to vector<8x10xf32>
    %106 = arith.mulf %97, %105 : vector<8x10xf32>
    %cst_48 = arith.constant dense<0.000000e+00> : vector<8x8xf32>
    %107 = tpu.matmul %106, %90, %cst_48 {dimension_numbers = #tpu.dot_dimension_numbers<[1], [0], [0], [1], [0, 0, 1, 1], [], []>} : vector<8x10xf32>, vector<10x8xf32>, vector<8x8xf32> -> vector<8x8xf32>
    %108 = tpu.concatenate %47, %67, %87, %107 in 1 : vector<8x8xf32>, vector<8x8xf32>, vector<8x8xf32>, vector<8x8xf32> -> vector<8x32xf32>
    %c0_49 = arith.constant 0 : index
    %c0_50 = arith.constant 0 : index
    %c0_51 = arith.constant 0 : index
    %109 = vector.load %arg11[%c0_49, %c0_50, %c0_51] : memref<2x32x32xf32, #tpu.memory_space<vmem>>, vector<1x32x32xf32>
    %110 = vector.shape_cast %109 : vector<1x32x32xf32> to vector<32x32xf32>
    %cst_52 = arith.constant dense<0.000000e+00> : vector<8x32xf32>
    %111 = tpu.matmul %108, %110, %cst_52 {dimension_numbers = #tpu.dot_dimension_numbers<[1], [0], [0], [1], [0, 0, 1, 1], [], []>} : vector<8x32xf32>, vector<32x32xf32>, vector<8x32xf32> -> vector<8x32xf32>
    %c0_53 = arith.constant 0 : index
    %c0_54 = arith.constant 0 : index
    %c0_55 = arith.constant 0 : index
    %112 = vector.load %arg12[%c0_53, %c0_54, %c0_55] : memref<2x1x32xf32, #tpu.memory_space<vmem>>, vector<1x1x32xf32>
    %113 = vector.shape_cast %112 : vector<1x1x32xf32> to vector<1x32xf32>
    %114 = vector.broadcast %113 : vector<1x32xf32> to vector<8x32xf32>
    %115 = arith.addf %111, %114 : vector<8x32xf32>
    %116 = arith.addf %4, %115 : vector<8x32xf32>
    %c0_56 = arith.constant 0 : index
    %c0_57 = arith.constant 0 : index
    %c0_58 = arith.constant 0 : index
    %117 = vector.load %arg17[%c0_56, %c0_57, %c0_58] : memref<2x1x32xf32, #tpu.memory_space<vmem>>, vector<1x1x32xf32>
    %118 = vector.shape_cast %117 : vector<1x1x32xf32> to vector<1x32xf32>
    %c0_59 = arith.constant 0 : index
    %c0_60 = arith.constant 0 : index
    %c0_61 = arith.constant 0 : index
    %119 = vector.load %arg18[%c0_59, %c0_60, %c0_61] : memref<2x1x32xf32, #tpu.memory_space<vmem>>, vector<1x1x32xf32>
    %120 = vector.shape_cast %119 : vector<1x1x32xf32> to vector<1x32xf32>
    %cst_62 = arith.constant dense<0.000000e+00> : vector<8xf32>
    %121 = vector.multi_reduction <add>, %116, %cst_62 [1] : vector<8x32xf32> to vector<8xf32>
    %122 = vector.shape_cast %121 : vector<8xf32> to vector<8x1xf32>
    %cst_63 = arith.constant 3.200000e+01 : f32
    %123 = vector.broadcast %cst_63 : f32 to vector<8x1xf32>
    %124 = arith.divf %122, %123 : vector<8x1xf32>
    %125 = vector.broadcast %124 : vector<8x1xf32> to vector<8x32xf32>
    %126 = arith.subf %116, %125 : vector<8x32xf32>
    %127 = arith.mulf %126, %126 : vector<8x32xf32>
    %cst_64 = arith.constant dense<0.000000e+00> : vector<8xf32>
    %128 = vector.multi_reduction <add>, %127, %cst_64 [1] : vector<8x32xf32> to vector<8xf32>
    %129 = vector.shape_cast %128 : vector<8xf32> to vector<8x1xf32>
    %cst_65 = arith.constant 3.200000e+01 : f32
    %130 = vector.broadcast %cst_65 : f32 to vector<8x1xf32>
    %131 = arith.divf %129, %130 : vector<8x1xf32>
    %132 = vector.broadcast %124 : vector<8x1xf32> to vector<8x32xf32>
    %133 = arith.subf %116, %132 : vector<8x32xf32>
    %cst_66 = arith.constant 9.99999974E-6 : f32
    %134 = vector.broadcast %cst_66 : f32 to vector<8x1xf32>
    %135 = arith.addf %131, %134 : vector<8x1xf32>
    %136 = math.rsqrt %135 : vector<8x1xf32>
    %137 = vector.broadcast %136 : vector<8x1xf32> to vector<8x32xf32>
    %138 = arith.mulf %133, %137 : vector<8x32xf32>
    %139 = vector.broadcast %118 : vector<1x32xf32> to vector<8x32xf32>
    %140 = arith.mulf %138, %139 : vector<8x32xf32>
    %141 = vector.broadcast %120 : vector<1x32xf32> to vector<8x32xf32>
    %142 = arith.addf %140, %141 : vector<8x32xf32>
    %c0_67 = arith.constant 0 : index
    %c0_68 = arith.constant 0 : index
    %c0_69 = arith.constant 0 : index
    %143 = vector.load %arg13[%c0_67, %c0_68, %c0_69] : memref<2x32x64xf32, #tpu.memory_space<vmem>>, vector<1x32x64xf32>
    %144 = vector.shape_cast %143 : vector<1x32x64xf32> to vector<32x64xf32>
    %cst_70 = arith.constant dense<0.000000e+00> : vector<8x64xf32>
    %145 = tpu.matmul %142, %144, %cst_70 {dimension_numbers = #tpu.dot_dimension_numbers<[1], [0], [0], [1], [0, 0, 1, 1], [], []>} : vector<8x32xf32>, vector<32x64xf32>, vector<8x64xf32> -> vector<8x64xf32>
    %c0_71 = arith.constant 0 : index
    %c0_72 = arith.constant 0 : index
    %c0_73 = arith.constant 0 : index
    %146 = vector.load %arg14[%c0_71, %c0_72, %c0_73] : memref<2x1x64xf32, #tpu.memory_space<vmem>>, vector<1x1x64xf32>
    %147 = vector.shape_cast %146 : vector<1x1x64xf32> to vector<1x64xf32>
    %148 = vector.broadcast %147 : vector<1x64xf32> to vector<8x64xf32>
    %149 = arith.addf %145, %148 : vector<8x64xf32>
    %cst_74 = arith.constant 0.000000e+00 : f32
    %150 = vector.broadcast %cst_74 : f32 to vector<8x64xf32>
    %151 = arith.maximumf %149, %150 : vector<8x64xf32>
    %c0_75 = arith.constant 0 : index
    %c0_76 = arith.constant 0 : index
    %c0_77 = arith.constant 0 : index
    %152 = vector.load %arg15[%c0_75, %c0_76, %c0_77] : memref<2x64x32xf32, #tpu.memory_space<vmem>>, vector<1x64x32xf32>
    %153 = vector.shape_cast %152 : vector<1x64x32xf32> to vector<64x32xf32>
    %cst_78 = arith.constant dense<0.000000e+00> : vector<8x32xf32>
    %154 = tpu.matmul %151, %153, %cst_78 {dimension_numbers = #tpu.dot_dimension_numbers<[1], [0], [0], [1], [0, 0, 1, 1], [], []>} : vector<8x64xf32>, vector<64x32xf32>, vector<8x32xf32> -> vector<8x32xf32>
    %155 = arith.addf %142, %154 : vector<8x32xf32>
    %c0_79 = arith.constant 0 : index
    %c0_80 = arith.constant 0 : index
    %c0_81 = arith.constant 0 : index
    %156 = vector.load %arg16[%c0_79, %c0_80, %c0_81] : memref<2x1x32xf32, #tpu.memory_space<vmem>>, vector<1x1x32xf32>
    %157 = vector.shape_cast %156 : vector<1x1x32xf32> to vector<1x32xf32>
    %158 = vector.broadcast %157 : vector<1x32xf32> to vector<8x32xf32>
    %159 = arith.addf %155, %158 : vector<8x32xf32>
    %c0_82 = arith.constant 0 : index
    %c0_83 = arith.constant 0 : index
    %c0_84 = arith.constant 0 : index
    %160 = vector.load %arg19[%c0_82, %c0_83, %c0_84] : memref<2x1x32xf32, #tpu.memory_space<vmem>>, vector<1x1x32xf32>
    %161 = vector.shape_cast %160 : vector<1x1x32xf32> to vector<1x32xf32>
    %c0_85 = arith.constant 0 : index
    %c0_86 = arith.constant 0 : index
    %c0_87 = arith.constant 0 : index
    %162 = vector.load %arg20[%c0_85, %c0_86, %c0_87] : memref<2x1x32xf32, #tpu.memory_space<vmem>>, vector<1x1x32xf32>
    %163 = vector.shape_cast %162 : vector<1x1x32xf32> to vector<1x32xf32>
    %cst_88 = arith.constant dense<0.000000e+00> : vector<8xf32>
    %164 = vector.multi_reduction <add>, %159, %cst_88 [1] : vector<8x32xf32> to vector<8xf32>
    %165 = vector.shape_cast %164 : vector<8xf32> to vector<8x1xf32>
    %cst_89 = arith.constant 3.200000e+01 : f32
    %166 = vector.broadcast %cst_89 : f32 to vector<8x1xf32>
    %167 = arith.divf %165, %166 : vector<8x1xf32>
    %168 = vector.broadcast %167 : vector<8x1xf32> to vector<8x32xf32>
    %169 = arith.subf %159, %168 : vector<8x32xf32>
    %170 = arith.mulf %169, %169 : vector<8x32xf32>
    %cst_90 = arith.constant dense<0.000000e+00> : vector<8xf32>
    %171 = vector.multi_reduction <add>, %170, %cst_90 [1] : vector<8x32xf32> to vector<8xf32>
    %172 = vector.shape_cast %171 : vector<8xf32> to vector<8x1xf32>
    %cst_91 = arith.constant 3.200000e+01 : f32
    %173 = vector.broadcast %cst_91 : f32 to vector<8x1xf32>
    %174 = arith.divf %172, %173 : vector<8x1xf32>
    %175 = vector.broadcast %167 : vector<8x1xf32> to vector<8x32xf32>
    %176 = arith.subf %159, %175 : vector<8x32xf32>
    %cst_92 = arith.constant 9.99999974E-6 : f32
    %177 = vector.broadcast %cst_92 : f32 to vector<8x1xf32>
    %178 = arith.addf %174, %177 : vector<8x1xf32>
    %179 = math.rsqrt %178 : vector<8x1xf32>
    %180 = vector.broadcast %179 : vector<8x1xf32> to vector<8x32xf32>
    %181 = arith.mulf %176, %180 : vector<8x32xf32>
    %182 = vector.broadcast %161 : vector<1x32xf32> to vector<8x32xf32>
    %183 = arith.mulf %181, %182 : vector<8x32xf32>
    %184 = vector.broadcast %163 : vector<1x32xf32> to vector<8x32xf32>
    %185 = arith.addf %183, %184 : vector<8x32xf32>
    %c1 = arith.constant 1 : index
    %c0_93 = arith.constant 0 : index
    %c0_94 = arith.constant 0 : index
    %186 = vector.load %arg5[%c1, %c0_93, %c0_94] : memref<2x32x32xf32, #tpu.memory_space<vmem>>, vector<1x32x32xf32>
    %187 = vector.shape_cast %186 : vector<1x32x32xf32> to vector<32x32xf32>
    %cst_95 = arith.constant dense<0.000000e+00> : vector<8x32xf32>
    %188 = tpu.matmul %185, %187, %cst_95 {dimension_numbers = #tpu.dot_dimension_numbers<[1], [0], [0], [1], [0, 0, 1, 1], [], []>} : vector<8x32xf32>, vector<32x32xf32>, vector<8x32xf32> -> vector<8x32xf32>
    %c1_96 = arith.constant 1 : index
    %c0_97 = arith.constant 0 : index
    %c0_98 = arith.constant 0 : index
    %189 = vector.load %arg6[%c1_96, %c0_97, %c0_98] : memref<2x1x32xf32, #tpu.memory_space<vmem>>, vector<1x1x32xf32>
    %190 = vector.shape_cast %189 : vector<1x1x32xf32> to vector<1x32xf32>
    %191 = vector.broadcast %190 : vector<1x32xf32> to vector<8x32xf32>
    %192 = arith.addf %188, %191 : vector<8x32xf32>
    %cst_99 = arith.constant 0.353553385 : f32
    %193 = vector.broadcast %cst_99 : f32 to vector<8x32xf32>
    %194 = arith.mulf %192, %193 : vector<8x32xf32>
    %c1_100 = arith.constant 1 : index
    %c0_101 = arith.constant 0 : index
    %c0_102 = arith.constant 0 : index
    %195 = vector.load %arg7[%c1_100, %c0_101, %c0_102] : memref<2x41x32xf32, #tpu.memory_space<vmem>>, vector<1x41x32xf32>
    %196 = vector.shape_cast %195 : vector<1x41x32xf32> to vector<41x32xf32>
    %cst_103 = arith.constant dense<0.000000e+00> : vector<10x32xf32>
    %197 = tpu.matmul %1, %196, %cst_103 {dimension_numbers = #tpu.dot_dimension_numbers<[1], [0], [0], [1], [0, 0, 1, 1], [], []>} : vector<10x41xf32>, vector<41x32xf32>, vector<10x32xf32> -> vector<10x32xf32>
    %c1_104 = arith.constant 1 : index
    %c0_105 = arith.constant 0 : index
    %c0_106 = arith.constant 0 : index
    %198 = vector.load %arg8[%c1_104, %c0_105, %c0_106] : memref<2x1x32xf32, #tpu.memory_space<vmem>>, vector<1x1x32xf32>
    %199 = vector.shape_cast %198 : vector<1x1x32xf32> to vector<1x32xf32>
    %200 = vector.broadcast %199 : vector<1x32xf32> to vector<10x32xf32>
    %201 = arith.addf %197, %200 : vector<10x32xf32>
    %c1_107 = arith.constant 1 : index
    %c0_108 = arith.constant 0 : index
    %c0_109 = arith.constant 0 : index
    %202 = vector.load %arg9[%c1_107, %c0_108, %c0_109] : memref<2x41x32xf32, #tpu.memory_space<vmem>>, vector<1x41x32xf32>
    %203 = vector.shape_cast %202 : vector<1x41x32xf32> to vector<41x32xf32>
    %cst_110 = arith.constant dense<0.000000e+00> : vector<10x32xf32>
    %204 = tpu.matmul %1, %203, %cst_110 {dimension_numbers = #tpu.dot_dimension_numbers<[1], [0], [0], [1], [0, 0, 1, 1], [], []>} : vector<10x41xf32>, vector<41x32xf32>, vector<10x32xf32> -> vector<10x32xf32>
    %c1_111 = arith.constant 1 : index
    %c0_112 = arith.constant 0 : index
    %c0_113 = arith.constant 0 : index
    %205 = vector.load %arg10[%c1_111, %c0_112, %c0_113] : memref<2x1x32xf32, #tpu.memory_space<vmem>>, vector<1x1x32xf32>
    %206 = vector.shape_cast %205 : vector<1x1x32xf32> to vector<1x32xf32>
    %207 = vector.broadcast %206 : vector<1x32xf32> to vector<10x32xf32>
    %208 = arith.addf %204, %207 : vector<10x32xf32>
    %209 = vector.extract_strided_slice %194 {offsets = [0, 0], sizes = [8, 8], strides = [1, 1]} : vector<8x32xf32> to vector<8x8xf32>
    %210 = vector.extract_strided_slice %201 {offsets = [0, 0], sizes = [10, 8], strides = [1, 1]} : vector<10x32xf32> to vector<10x8xf32>
    %211 = vector.extract_strided_slice %208 {offsets = [0, 0], sizes = [10, 8], strides = [1, 1]} : vector<10x32xf32> to vector<10x8xf32>
    %cst_114 = arith.constant dense<0.000000e+00> : vector<8x10xf32>
    %212 = tpu.matmul %209, %210, %cst_114 {dimension_numbers = #tpu.dot_dimension_numbers<[1], [1], [0], [0], [0, 0, 1, 0], [], []>} : vector<8x8xf32>, vector<10x8xf32>, vector<8x10xf32> -> vector<8x10xf32>
    %213 = arith.addf %212, %2 : vector<8x10xf32>
    %cst_115 = arith.constant dense<0xFF800000> : vector<8xf32>
    %214 = vector.multi_reduction <maximumf>, %213, %cst_115 [1] : vector<8x10xf32> to vector<8xf32>
    %215 = vector.shape_cast %214 : vector<8xf32> to vector<8x1xf32>
    %216 = vector.broadcast %215 : vector<8x1xf32> to vector<8x10xf32>
    %217 = arith.subf %213, %216 : vector<8x10xf32>
    %218 = math.exp %217 : vector<8x10xf32>
    %cst_116 = arith.constant dense<0.000000e+00> : vector<8xf32>
    %219 = vector.multi_reduction <add>, %218, %cst_116 [1] : vector<8x10xf32> to vector<8xf32>
    %220 = vector.shape_cast %219 : vector<8xf32> to vector<8x1xf32>
    %221 = tpu.reciprocal %220 {approx = true} : vector<8x1xf32> -> vector<8x1xf32>
    %222 = arith.mulf %220, %221 : vector<8x1xf32>
    %cst_117 = arith.constant 2.000000e+00 : f32
    %223 = vector.broadcast %cst_117 : f32 to vector<8x1xf32>
    %224 = arith.subf %223, %222 : vector<8x1xf32>
    %225 = arith.mulf %221, %224 : vector<8x1xf32>
    %226 = vector.broadcast %225 : vector<8x1xf32> to vector<8x10xf32>
    %227 = arith.mulf %218, %226 : vector<8x10xf32>
    %cst_118 = arith.constant dense<0.000000e+00> : vector<8x8xf32>
    %228 = tpu.matmul %227, %211, %cst_118 {dimension_numbers = #tpu.dot_dimension_numbers<[1], [0], [0], [1], [0, 0, 1, 1], [], []>} : vector<8x10xf32>, vector<10x8xf32>, vector<8x8xf32> -> vector<8x8xf32>
    %229 = vector.extract_strided_slice %194 {offsets = [0, 8], sizes = [8, 8], strides = [1, 1]} : vector<8x32xf32> to vector<8x8xf32>
    %230 = vector.extract_strided_slice %201 {offsets = [0, 8], sizes = [10, 8], strides = [1, 1]} : vector<10x32xf32> to vector<10x8xf32>
    %231 = vector.extract_strided_slice %208 {offsets = [0, 8], sizes = [10, 8], strides = [1, 1]} : vector<10x32xf32> to vector<10x8xf32>
    %cst_119 = arith.constant dense<0.000000e+00> : vector<8x10xf32>
    %232 = tpu.matmul %229, %230, %cst_119 {dimension_numbers = #tpu.dot_dimension_numbers<[1], [1], [0], [0], [0, 0, 1, 0], [], []>} : vector<8x8xf32>, vector<10x8xf32>, vector<8x10xf32> -> vector<8x10xf32>
    %233 = arith.addf %232, %2 : vector<8x10xf32>
    %cst_120 = arith.constant dense<0xFF800000> : vector<8xf32>
    %234 = vector.multi_reduction <maximumf>, %233, %cst_120 [1] : vector<8x10xf32> to vector<8xf32>
    %235 = vector.shape_cast %234 : vector<8xf32> to vector<8x1xf32>
    %236 = vector.broadcast %235 : vector<8x1xf32> to vector<8x10xf32>
    %237 = arith.subf %233, %236 : vector<8x10xf32>
    %238 = math.exp %237 : vector<8x10xf32>
    %cst_121 = arith.constant dense<0.000000e+00> : vector<8xf32>
    %239 = vector.multi_reduction <add>, %238, %cst_121 [1] : vector<8x10xf32> to vector<8xf32>
    %240 = vector.shape_cast %239 : vector<8xf32> to vector<8x1xf32>
    %241 = tpu.reciprocal %240 {approx = true} : vector<8x1xf32> -> vector<8x1xf32>
    %242 = arith.mulf %240, %241 : vector<8x1xf32>
    %cst_122 = arith.constant 2.000000e+00 : f32
    %243 = vector.broadcast %cst_122 : f32 to vector<8x1xf32>
    %244 = arith.subf %243, %242 : vector<8x1xf32>
    %245 = arith.mulf %241, %244 : vector<8x1xf32>
    %246 = vector.broadcast %245 : vector<8x1xf32> to vector<8x10xf32>
    %247 = arith.mulf %238, %246 : vector<8x10xf32>
    %cst_123 = arith.constant dense<0.000000e+00> : vector<8x8xf32>
    %248 = tpu.matmul %247, %231, %cst_123 {dimension_numbers = #tpu.dot_dimension_numbers<[1], [0], [0], [1], [0, 0, 1, 1], [], []>} : vector<8x10xf32>, vector<10x8xf32>, vector<8x8xf32> -> vector<8x8xf32>
    %249 = vector.extract_strided_slice %194 {offsets = [0, 16], sizes = [8, 8], strides = [1, 1]} : vector<8x32xf32> to vector<8x8xf32>
    %250 = vector.extract_strided_slice %201 {offsets = [0, 16], sizes = [10, 8], strides = [1, 1]} : vector<10x32xf32> to vector<10x8xf32>
    %251 = vector.extract_strided_slice %208 {offsets = [0, 16], sizes = [10, 8], strides = [1, 1]} : vector<10x32xf32> to vector<10x8xf32>
    %cst_124 = arith.constant dense<0.000000e+00> : vector<8x10xf32>
    %252 = tpu.matmul %249, %250, %cst_124 {dimension_numbers = #tpu.dot_dimension_numbers<[1], [1], [0], [0], [0, 0, 1, 0], [], []>} : vector<8x8xf32>, vector<10x8xf32>, vector<8x10xf32> -> vector<8x10xf32>
    %253 = arith.addf %252, %2 : vector<8x10xf32>
    %cst_125 = arith.constant dense<0xFF800000> : vector<8xf32>
    %254 = vector.multi_reduction <maximumf>, %253, %cst_125 [1] : vector<8x10xf32> to vector<8xf32>
    %255 = vector.shape_cast %254 : vector<8xf32> to vector<8x1xf32>
    %256 = vector.broadcast %255 : vector<8x1xf32> to vector<8x10xf32>
    %257 = arith.subf %253, %256 : vector<8x10xf32>
    %258 = math.exp %257 : vector<8x10xf32>
    %cst_126 = arith.constant dense<0.000000e+00> : vector<8xf32>
    %259 = vector.multi_reduction <add>, %258, %cst_126 [1] : vector<8x10xf32> to vector<8xf32>
    %260 = vector.shape_cast %259 : vector<8xf32> to vector<8x1xf32>
    %261 = tpu.reciprocal %260 {approx = true} : vector<8x1xf32> -> vector<8x1xf32>
    %262 = arith.mulf %260, %261 : vector<8x1xf32>
    %cst_127 = arith.constant 2.000000e+00 : f32
    %263 = vector.broadcast %cst_127 : f32 to vector<8x1xf32>
    %264 = arith.subf %263, %262 : vector<8x1xf32>
    %265 = arith.mulf %261, %264 : vector<8x1xf32>
    %266 = vector.broadcast %265 : vector<8x1xf32> to vector<8x10xf32>
    %267 = arith.mulf %258, %266 : vector<8x10xf32>
    %cst_128 = arith.constant dense<0.000000e+00> : vector<8x8xf32>
    %268 = tpu.matmul %267, %251, %cst_128 {dimension_numbers = #tpu.dot_dimension_numbers<[1], [0], [0], [1], [0, 0, 1, 1], [], []>} : vector<8x10xf32>, vector<10x8xf32>, vector<8x8xf32> -> vector<8x8xf32>
    %269 = vector.extract_strided_slice %194 {offsets = [0, 24], sizes = [8, 8], strides = [1, 1]} : vector<8x32xf32> to vector<8x8xf32>
    %270 = vector.extract_strided_slice %201 {offsets = [0, 24], sizes = [10, 8], strides = [1, 1]} : vector<10x32xf32> to vector<10x8xf32>
    %271 = vector.extract_strided_slice %208 {offsets = [0, 24], sizes = [10, 8], strides = [1, 1]} : vector<10x32xf32> to vector<10x8xf32>
    %cst_129 = arith.constant dense<0.000000e+00> : vector<8x10xf32>
    %272 = tpu.matmul %269, %270, %cst_129 {dimension_numbers = #tpu.dot_dimension_numbers<[1], [1], [0], [0], [0, 0, 1, 0], [], []>} : vector<8x8xf32>, vector<10x8xf32>, vector<8x10xf32> -> vector<8x10xf32>
    %273 = arith.addf %272, %2 : vector<8x10xf32>
    %cst_130 = arith.constant dense<0xFF800000> : vector<8xf32>
    %274 = vector.multi_reduction <maximumf>, %273, %cst_130 [1] : vector<8x10xf32> to vector<8xf32>
    %275 = vector.shape_cast %274 : vector<8xf32> to vector<8x1xf32>
    %276 = vector.broadcast %275 : vector<8x1xf32> to vector<8x10xf32>
    %277 = arith.subf %273, %276 : vector<8x10xf32>
    %278 = math.exp %277 : vector<8x10xf32>
    %cst_131 = arith.constant dense<0.000000e+00> : vector<8xf32>
    %279 = vector.multi_reduction <add>, %278, %cst_131 [1] : vector<8x10xf32> to vector<8xf32>
    %280 = vector.shape_cast %279 : vector<8xf32> to vector<8x1xf32>
    %281 = tpu.reciprocal %280 {approx = true} : vector<8x1xf32> -> vector<8x1xf32>
    %282 = arith.mulf %280, %281 : vector<8x1xf32>
    %cst_132 = arith.constant 2.000000e+00 : f32
    %283 = vector.broadcast %cst_132 : f32 to vector<8x1xf32>
    %284 = arith.subf %283, %282 : vector<8x1xf32>
    %285 = arith.mulf %281, %284 : vector<8x1xf32>
    %286 = vector.broadcast %285 : vector<8x1xf32> to vector<8x10xf32>
    %287 = arith.mulf %278, %286 : vector<8x10xf32>
    %cst_133 = arith.constant dense<0.000000e+00> : vector<8x8xf32>
    %288 = tpu.matmul %287, %271, %cst_133 {dimension_numbers = #tpu.dot_dimension_numbers<[1], [0], [0], [1], [0, 0, 1, 1], [], []>} : vector<8x10xf32>, vector<10x8xf32>, vector<8x8xf32> -> vector<8x8xf32>
    %289 = tpu.concatenate %228, %248, %268, %288 in 1 : vector<8x8xf32>, vector<8x8xf32>, vector<8x8xf32>, vector<8x8xf32> -> vector<8x32xf32>
    %c1_134 = arith.constant 1 : index
    %c0_135 = arith.constant 0 : index
    %c0_136 = arith.constant 0 : index
    %290 = vector.load %arg11[%c1_134, %c0_135, %c0_136] : memref<2x32x32xf32, #tpu.memory_space<vmem>>, vector<1x32x32xf32>
    %291 = vector.shape_cast %290 : vector<1x32x32xf32> to vector<32x32xf32>
    %cst_137 = arith.constant dense<0.000000e+00> : vector<8x32xf32>
    %292 = tpu.matmul %289, %291, %cst_137 {dimension_numbers = #tpu.dot_dimension_numbers<[1], [0], [0], [1], [0, 0, 1, 1], [], []>} : vector<8x32xf32>, vector<32x32xf32>, vector<8x32xf32> -> vector<8x32xf32>
    %c1_138 = arith.constant 1 : index
    %c0_139 = arith.constant 0 : index
    %c0_140 = arith.constant 0 : index
    %293 = vector.load %arg12[%c1_138, %c0_139, %c0_140] : memref<2x1x32xf32, #tpu.memory_space<vmem>>, vector<1x1x32xf32>
    %294 = vector.shape_cast %293 : vector<1x1x32xf32> to vector<1x32xf32>
    %295 = vector.broadcast %294 : vector<1x32xf32> to vector<8x32xf32>
    %296 = arith.addf %292, %295 : vector<8x32xf32>
    %297 = arith.addf %185, %296 : vector<8x32xf32>
    %c1_141 = arith.constant 1 : index
    %c0_142 = arith.constant 0 : index
    %c0_143 = arith.constant 0 : index
    %298 = vector.load %arg17[%c1_141, %c0_142, %c0_143] : memref<2x1x32xf32, #tpu.memory_space<vmem>>, vector<1x1x32xf32>
    %299 = vector.shape_cast %298 : vector<1x1x32xf32> to vector<1x32xf32>
    %c1_144 = arith.constant 1 : index
    %c0_145 = arith.constant 0 : index
    %c0_146 = arith.constant 0 : index
    %300 = vector.load %arg18[%c1_144, %c0_145, %c0_146] : memref<2x1x32xf32, #tpu.memory_space<vmem>>, vector<1x1x32xf32>
    %301 = vector.shape_cast %300 : vector<1x1x32xf32> to vector<1x32xf32>
    %cst_147 = arith.constant dense<0.000000e+00> : vector<8xf32>
    %302 = vector.multi_reduction <add>, %297, %cst_147 [1] : vector<8x32xf32> to vector<8xf32>
    %303 = vector.shape_cast %302 : vector<8xf32> to vector<8x1xf32>
    %cst_148 = arith.constant 3.200000e+01 : f32
    %304 = vector.broadcast %cst_148 : f32 to vector<8x1xf32>
    %305 = arith.divf %303, %304 : vector<8x1xf32>
    %306 = vector.broadcast %305 : vector<8x1xf32> to vector<8x32xf32>
    %307 = arith.subf %297, %306 : vector<8x32xf32>
    %308 = arith.mulf %307, %307 : vector<8x32xf32>
    %cst_149 = arith.constant dense<0.000000e+00> : vector<8xf32>
    %309 = vector.multi_reduction <add>, %308, %cst_149 [1] : vector<8x32xf32> to vector<8xf32>
    %310 = vector.shape_cast %309 : vector<8xf32> to vector<8x1xf32>
    %cst_150 = arith.constant 3.200000e+01 : f32
    %311 = vector.broadcast %cst_150 : f32 to vector<8x1xf32>
    %312 = arith.divf %310, %311 : vector<8x1xf32>
    %313 = vector.broadcast %305 : vector<8x1xf32> to vector<8x32xf32>
    %314 = arith.subf %297, %313 : vector<8x32xf32>
    %cst_151 = arith.constant 9.99999974E-6 : f32
    %315 = vector.broadcast %cst_151 : f32 to vector<8x1xf32>
    %316 = arith.addf %312, %315 : vector<8x1xf32>
    %317 = math.rsqrt %316 : vector<8x1xf32>
    %318 = vector.broadcast %317 : vector<8x1xf32> to vector<8x32xf32>
    %319 = arith.mulf %314, %318 : vector<8x32xf32>
    %320 = vector.broadcast %299 : vector<1x32xf32> to vector<8x32xf32>
    %321 = arith.mulf %319, %320 : vector<8x32xf32>
    %322 = vector.broadcast %301 : vector<1x32xf32> to vector<8x32xf32>
    %323 = arith.addf %321, %322 : vector<8x32xf32>
    %c1_152 = arith.constant 1 : index
    %c0_153 = arith.constant 0 : index
    %c0_154 = arith.constant 0 : index
    %324 = vector.load %arg13[%c1_152, %c0_153, %c0_154] : memref<2x32x64xf32, #tpu.memory_space<vmem>>, vector<1x32x64xf32>
    %325 = vector.shape_cast %324 : vector<1x32x64xf32> to vector<32x64xf32>
    %cst_155 = arith.constant dense<0.000000e+00> : vector<8x64xf32>
    %326 = tpu.matmul %323, %325, %cst_155 {dimension_numbers = #tpu.dot_dimension_numbers<[1], [0], [0], [1], [0, 0, 1, 1], [], []>} : vector<8x32xf32>, vector<32x64xf32>, vector<8x64xf32> -> vector<8x64xf32>
    %c1_156 = arith.constant 1 : index
    %c0_157 = arith.constant 0 : index
    %c0_158 = arith.constant 0 : index
    %327 = vector.load %arg14[%c1_156, %c0_157, %c0_158] : memref<2x1x64xf32, #tpu.memory_space<vmem>>, vector<1x1x64xf32>
    %328 = vector.shape_cast %327 : vector<1x1x64xf32> to vector<1x64xf32>
    %329 = vector.broadcast %328 : vector<1x64xf32> to vector<8x64xf32>
    %330 = arith.addf %326, %329 : vector<8x64xf32>
    %cst_159 = arith.constant 0.000000e+00 : f32
    %331 = vector.broadcast %cst_159 : f32 to vector<8x64xf32>
    %332 = arith.maximumf %330, %331 : vector<8x64xf32>
    %c1_160 = arith.constant 1 : index
    %c0_161 = arith.constant 0 : index
    %c0_162 = arith.constant 0 : index
    %333 = vector.load %arg15[%c1_160, %c0_161, %c0_162] : memref<2x64x32xf32, #tpu.memory_space<vmem>>, vector<1x64x32xf32>
    %334 = vector.shape_cast %333 : vector<1x64x32xf32> to vector<64x32xf32>
    %cst_163 = arith.constant dense<0.000000e+00> : vector<8x32xf32>
    %335 = tpu.matmul %332, %334, %cst_163 {dimension_numbers = #tpu.dot_dimension_numbers<[1], [0], [0], [1], [0, 0, 1, 1], [], []>} : vector<8x64xf32>, vector<64x32xf32>, vector<8x32xf32> -> vector<8x32xf32>
    %336 = arith.addf %323, %335 : vector<8x32xf32>
    %c1_164 = arith.constant 1 : index
    %c0_165 = arith.constant 0 : index
    %c0_166 = arith.constant 0 : index
    %337 = vector.load %arg16[%c1_164, %c0_165, %c0_166] : memref<2x1x32xf32, #tpu.memory_space<vmem>>, vector<1x1x32xf32>
    %338 = vector.shape_cast %337 : vector<1x1x32xf32> to vector<1x32xf32>
    %339 = vector.broadcast %338 : vector<1x32xf32> to vector<8x32xf32>
    %340 = arith.addf %336, %339 : vector<8x32xf32>
    %c1_167 = arith.constant 1 : index
    %c0_168 = arith.constant 0 : index
    %c0_169 = arith.constant 0 : index
    %341 = vector.load %arg19[%c1_167, %c0_168, %c0_169] : memref<2x1x32xf32, #tpu.memory_space<vmem>>, vector<1x1x32xf32>
    %342 = vector.shape_cast %341 : vector<1x1x32xf32> to vector<1x32xf32>
    %c1_170 = arith.constant 1 : index
    %c0_171 = arith.constant 0 : index
    %c0_172 = arith.constant 0 : index
    %343 = vector.load %arg20[%c1_170, %c0_171, %c0_172] : memref<2x1x32xf32, #tpu.memory_space<vmem>>, vector<1x1x32xf32>
    %344 = vector.shape_cast %343 : vector<1x1x32xf32> to vector<1x32xf32>
    %cst_173 = arith.constant dense<0.000000e+00> : vector<8xf32>
    %345 = vector.multi_reduction <add>, %340, %cst_173 [1] : vector<8x32xf32> to vector<8xf32>
    %346 = vector.shape_cast %345 : vector<8xf32> to vector<8x1xf32>
    %cst_174 = arith.constant 3.200000e+01 : f32
    %347 = vector.broadcast %cst_174 : f32 to vector<8x1xf32>
    %348 = arith.divf %346, %347 : vector<8x1xf32>
    %349 = vector.broadcast %348 : vector<8x1xf32> to vector<8x32xf32>
    %350 = arith.subf %340, %349 : vector<8x32xf32>
    %351 = arith.mulf %350, %350 : vector<8x32xf32>
    %cst_175 = arith.constant dense<0.000000e+00> : vector<8xf32>
    %352 = vector.multi_reduction <add>, %351, %cst_175 [1] : vector<8x32xf32> to vector<8xf32>
    %353 = vector.shape_cast %352 : vector<8xf32> to vector<8x1xf32>
    %cst_176 = arith.constant 3.200000e+01 : f32
    %354 = vector.broadcast %cst_176 : f32 to vector<8x1xf32>
    %355 = arith.divf %353, %354 : vector<8x1xf32>
    %356 = vector.broadcast %348 : vector<8x1xf32> to vector<8x32xf32>
    %357 = arith.subf %340, %356 : vector<8x32xf32>
    %cst_177 = arith.constant 9.99999974E-6 : f32
    %358 = vector.broadcast %cst_177 : f32 to vector<8x1xf32>
    %359 = arith.addf %355, %358 : vector<8x1xf32>
    %360 = math.rsqrt %359 : vector<8x1xf32>
    %361 = vector.broadcast %360 : vector<8x1xf32> to vector<8x32xf32>
    %362 = arith.mulf %357, %361 : vector<8x32xf32>
    %363 = vector.broadcast %342 : vector<1x32xf32> to vector<8x32xf32>
    %364 = arith.mulf %362, %363 : vector<8x32xf32>
    %365 = vector.broadcast %344 : vector<1x32xf32> to vector<8x32xf32>
    %366 = arith.addf %364, %365 : vector<8x32xf32>
    %c0_178 = arith.constant 0 : index
    %c0_179 = arith.constant 0 : index
    %367 = vector.load %arg21[%c0_178, %c0_179] : memref<32x64xf32, #tpu.memory_space<vmem>>, vector<32x64xf32>
    %cst_180 = arith.constant dense<0.000000e+00> : vector<8x64xf32>
    %368 = tpu.matmul %366, %367, %cst_180 {dimension_numbers = #tpu.dot_dimension_numbers<[1], [0], [0], [1], [0, 0, 1, 1], [], []>} : vector<8x32xf32>, vector<32x64xf32>, vector<8x64xf32> -> vector<8x64xf32>
    %c0_181 = arith.constant 0 : index
    %c0_182 = arith.constant 0 : index
    %369 = vector.load %arg22[%c0_181, %c0_182] : memref<1x64xf32, #tpu.memory_space<vmem>>, vector<1x64xf32>
    %370 = vector.broadcast %369 : vector<1x64xf32> to vector<8x64xf32>
    %371 = arith.addf %368, %370 : vector<8x64xf32>
    %cst_183 = arith.constant 0.000000e+00 : f32
    %372 = vector.broadcast %cst_183 : f32 to vector<8x64xf32>
    %373 = arith.maximumf %371, %372 : vector<8x64xf32>
    %c0_184 = arith.constant 0 : index
    %c0_185 = arith.constant 0 : index
    %374 = vector.load %arg23[%c0_184, %c0_185] : memref<64x32xf32, #tpu.memory_space<vmem>>, vector<64x32xf32>
    %cst_186 = arith.constant dense<0.000000e+00> : vector<8x32xf32>
    %375 = tpu.matmul %373, %374, %cst_186 {dimension_numbers = #tpu.dot_dimension_numbers<[1], [0], [0], [1], [0, 0, 1, 1], [], []>} : vector<8x64xf32>, vector<64x32xf32>, vector<8x32xf32> -> vector<8x32xf32>
    %c0_187 = arith.constant 0 : index
    %c0_188 = arith.constant 0 : index
    %376 = vector.load %arg24[%c0_187, %c0_188] : memref<1x32xf32, #tpu.memory_space<vmem>>, vector<1x32xf32>
    %377 = vector.broadcast %376 : vector<1x32xf32> to vector<8x32xf32>
    %378 = arith.addf %375, %377 : vector<8x32xf32>
    %c0_189 = arith.constant 0 : index
    %c0_190 = arith.constant 0 : index
    %379 = vector.load %arg2[%c0_189, %c0_190] : memref<32x1568xf32, #tpu.memory_space<vmem>>, vector<32x1568xf32>
    %cst_191 = arith.constant dense<0.000000e+00> : vector<8x1568xf32>
    %380 = tpu.matmul %378, %379, %cst_191 {dimension_numbers = #tpu.dot_dimension_numbers<[1], [0], [0], [1], [0, 0, 1, 1], [], []>} : vector<8x32xf32>, vector<32x1568xf32>, vector<8x1568xf32> -> vector<8x1568xf32>
    %381 = arith.addf %0, %380 : vector<8x1568xf32>
    %c0_192 = arith.constant 0 : index
    %c0_193 = arith.constant 0 : index
    %382 = vector.load %arg25[%c0_192, %c0_193] : memref<8x1568xf32, #tpu.memory_space<vmem>>, vector<8x1568xf32>
    tpu.vector_store %arg25[%c0_192, %c0_193], %381 {strides = array<i32>} : memref<8x1568xf32, #tpu.memory_space<vmem>>, vector<8x1568xf32>,
    return
  }
}

</mosaic_0001>

<llo_original>
// kernel: tpu_custom_call.1
$region0: #{tpu_custom_call.1}
  #allocation0 [shape = 'u32[]', space=smem, size = 0x4, offset = 0x4, fixed_abs, tag = 'smem constant byte address 0x4 - core index']
  #allocation1 [shape = 'u32[144,128]{1,0:T(1,128)}', space=vmem, size = 0x12000, scoped, tag = 'internal scratch']
  %s0 = inlined_call_operand.vmem [shape: f32[8,1568], index: 0, kind: input, shape index: {}]
  %s1 = inlined_call_operand.vmem [shape: f32[1568,32], index: 1, kind: input, shape index: {}]
  %s2 = inlined_call_operand.vmem [shape: f32[32,1568], index: 2, kind: input, shape index: {}]
  %s3 = inlined_call_operand.vmem [shape: f32[10,41], index: 3, kind: input, shape index: {}]
  %s4 = inlined_call_operand.vmem [shape: f32[8,10], index: 4, kind: input, shape index: {}]
  %s5 = inlined_call_operand.vmem [shape: f32[2,32,32], index: 5, kind: input, shape index: {}]
  %s6 = inlined_call_operand.vmem [shape: f32[2,1,32], index: 6, kind: input, shape index: {}]
  %s7 = inlined_call_operand.vmem [shape: f32[2,41,32], index: 7, kind: input, shape index: {}]
  %s8 = inlined_call_operand.vmem [shape: f32[2,1,32], index: 8, kind: input, shape index: {}]
  %s9 = inlined_call_operand.vmem [shape: f32[2,41,32], index: 9, kind: input, shape index: {}]
  %s10 = inlined_call_operand.vmem [shape: f32[2,1,32], index: 10, kind: input, shape index: {}]
  %s11 = inlined_call_operand.vmem [shape: f32[2,32,32], index: 11, kind: input, shape index: {}]
  %s12 = inlined_call_operand.vmem [shape: f32[2,1,32], index: 12, kind: input, shape index: {}]
  %s13 = inlined_call_operand.vmem [shape: f32[2,32,64], index: 13, kind: input, shape index: {}]
  %s14 = inlined_call_operand.vmem [shape: f32[2,1,64], index: 14, kind: input, shape index: {}]
  %s15 = inlined_call_operand.vmem [shape: f32[2,64,32], index: 15, kind: input, shape index: {}]
  %s16 = inlined_call_operand.vmem [shape: f32[2,1,32], index: 16, kind: input, shape index: {}]
  %s17 = inlined_call_operand.vmem [shape: f32[2,1,32], index: 17, kind: input, shape index: {}]
  %s18 = inlined_call_operand.vmem [shape: f32[2,1,32], index: 18, kind: input, shape index: {}]
  %s19 = inlined_call_operand.vmem [shape: f32[2,1,32], index: 19, kind: input, shape index: {}]
  %s20 = inlined_call_operand.vmem [shape: f32[2,1,32], index: 20, kind: input, shape index: {}]
  %s21 = inlined_call_operand.vmem [shape: f32[32,64], index: 21, kind: input, shape index: {}]
  %s22 = inlined_call_operand.vmem [shape: f32[1,64], index: 22, kind: input, shape index: {}]
  %s23 = inlined_call_operand.vmem [shape: f32[64,32], index: 23, kind: input, shape index: {}]
  %s24 = inlined_call_operand.vmem [shape: f32[1,32], index: 24, kind: input, shape index: {}]
  %s25 = inlined_call_operand.hbm [shape: f32[8,1568], index: 25, kind: output, shape index: {}]
  %s26 = sld [smem:[#allocation0]]
  $region110: #{tpu_custom_call.1} parent=0
    _
  %s28 = ssub.s32 1, %s26
  %s29 = scalar_select 0, %s28, %s26
  $region1: #{tpu_custom_call.1} parent=0
    #allocation2 [shape = 'u8[53248]{0}', space=vmem, size = 0xd000, scoped, tag = 'output window, operand 0, single buffered']
    #allocation3 [shape = 's32[1]{0}', space=sflag, size = 0x4, scoped, tag = 'scoped memory for tpu_custom_call.1']
    %30 = vsyncpa [#allocation3], 0
    // Predicated region
    $region2: #{tpu_custom_call.1} parent=1 // pred_check
      _
    $region3: #{tpu_custom_call.1} parent=1 // pred_check_branch
      %32 = sbr.rel (0) target = $region5
    $region4: #{tpu_custom_call.1} parent=1 // pred_region
      _
    $region5: #{tpu_custom_call.1} parent=1 // pred_fallthru
      _
    // Predicated region
    $region6: #{tpu_custom_call.1} parent=1 // pred_check
      _
    $region7: #{tpu_custom_call.1} parent=1 // pred_check_branch
      %34 = sbr.rel (0) target = $region9
    $region8: #{tpu_custom_call.1} parent=1 // pred_region
      _
    $region9: #{tpu_custom_call.1} parent=1 // pred_fallthru
      _
    // Predicated region
    $region10: #{tpu_custom_call.1} parent=1 // pred_check
      _
    $region11: #{tpu_custom_call.1} parent=1 // pred_check_branch
      %36 = sbr.rel (0) target = $region13
    $region12: #{tpu_custom_call.1} parent=1 // pred_region
      _
    $region13: #{tpu_custom_call.1} parent=1 // pred_fallthru
      _
    // Predicated region
    $region14: #{tpu_custom_call.1} parent=1 // pred_check
      _
    $region15: #{tpu_custom_call.1} parent=1 // pred_check_branch
      %38 = sbr.rel (0) target = $region17
    $region16: #{tpu_custom_call.1} parent=1 // pred_region
      _
    $region17: #{tpu_custom_call.1} parent=1 // pred_fallthru
      _
    // Predicated region
    $region18: #{tpu_custom_call.1} parent=1 // pred_check
      _
    $region19: #{tpu_custom_call.1} parent=1 // pred_check_branch
      %40 = sbr.rel (0) target = $region21
    $region20: #{tpu_custom_call.1} parent=1 // pred_region
      _
    $region21: #{tpu_custom_call.1} parent=1 // pred_fallthru
      _
    // Predicated region
    $region22: #{tpu_custom_call.1} parent=1 // pred_check
      _
    $region23: #{tpu_custom_call.1} parent=1 // pred_check_branch
      %42 = sbr.rel (0) target = $region25
    $region24: #{tpu_custom_call.1} parent=1 // pred_region
      _
    $region25: #{tpu_custom_call.1} parent=1 // pred_fallthru
      _
    // Predicated region
    $region26: #{tpu_custom_call.1} parent=1 // pred_check
      _
    $region27: #{tpu_custom_call.1} parent=1 // pred_check_branch
      %44 = sbr.rel (0) target = $region29
    $region28: #{tpu_custom_call.1} parent=1 // pred_region
      _
    $region29: #{tpu_custom_call.1} parent=1 // pred_fallthru
      _
    // Predicated region
    $region30: #{tpu_custom_call.1} parent=1 // pred_check
      _
    $region31: #{tpu_custom_call.1} parent=1 // pred_check_branch
      %46 = sbr.rel (0) target = $region33
    $region32: #{tpu_custom_call.1} parent=1 // pred_region
      _
    $region33: #{tpu_custom_call.1} parent=1 // pred_fallthru
      _
    // Predicated region
    $region34: #{tpu_custom_call.1} parent=1 // pred_check
      _
    $region35: #{tpu_custom_call.1} parent=1 // pred_check_branch
      %48 = sbr.rel (0) target = $region37
    $region36: #{tpu_custom_call.1} parent=1 // pred_region
      _
    $region37: #{tpu_custom_call.1} parent=1 // pred_fallthru
      _
    // Predicated region
    $region38: #{tpu_custom_call.1} parent=1 // pred_check
      _
    $region39: #{tpu_custom_call.1} parent=1 // pred_check_branch
      %50 = sbr.rel (0) target = $region41
    $region40: #{tpu_custom_call.1} parent=1 // pred_region
      _
    $region41: #{tpu_custom_call.1} parent=1 // pred_fallthru
      _
    // Predicated region
    $region42: #{tpu_custom_call.1} parent=1 // pred_check
      _
    $region43: #{tpu_custom_call.1} parent=1 // pred_check_branch
      %52 = sbr.rel (0) target = $region45
    $region44: #{tpu_custom_call.1} parent=1 // pred_region
      _
    $region45: #{tpu_custom_call.1} parent=1 // pred_fallthru
      _
    // Predicated region
    $region46: #{tpu_custom_call.1} parent=1 // pred_check
      _
    $region47: #{tpu_custom_call.1} parent=1 // pred_check_branch
      %54 = sbr.rel (0) target = $region49
    $region48: #{tpu_custom_call.1} parent=1 // pred_region
      _
    $region49: #{tpu_custom_call.1} parent=1 // pred_fallthru
      _
    // Predicated region
    $region50: #{tpu_custom_call.1} parent=1 // pred_check
      _
    $region51: #{tpu_custom_call.1} parent=1 // pred_check_branch
      %56 = sbr.rel (0) target = $region53
    $region52: #{tpu_custom_call.1} parent=1 // pred_region
      _
    $region53: #{tpu_custom_call.1} parent=1 // pred_fallthru
      _
    // Predicated region
    $region54: #{tpu_custom_call.1} parent=1 // pred_check
      _
    $region55: #{tpu_custom_call.1} parent=1 // pred_check_branch
      %58 = sbr.rel (0) target = $region57
    $region56: #{tpu_custom_call.1} parent=1 // pred_region
      _
    $region57: #{tpu_custom_call.1} parent=1 // pred_fallthru
      _
    // Predicated region
    $region58: #{tpu_custom_call.1} parent=1 // pred_check
      _
    $region59: #{tpu_custom_call.1} parent=1 // pred_check_branch
      %60 = sbr.rel (0) target = $region61
    $region60: #{tpu_custom_call.1} parent=1 // pred_region
      _
    $region61: #{tpu_custom_call.1} parent=1 // pred_fallthru
      _
    // Predicated region
    $region62: #{tpu_custom_call.1} parent=1 // pred_check
      _
    $region63: #{tpu_custom_call.1} parent=1 // pred_check_branch
      %62 = sbr.rel (0) target = $region65
    $region64: #{tpu_custom_call.1} parent=1 // pred_region
      _
    $region65: #{tpu_custom_call.1} parent=1 // pred_fallthru
      _
    // Predicated region
    $region66: #{tpu_custom_call.1} parent=1 // pred_check
      _
    $region67: #{tpu_custom_call.1} parent=1 // pred_check_branch
      %64 = sbr.rel (0) target = $region69
    $region68: #{tpu_custom_call.1} parent=1 // pred_region
      _
    $region69: #{tpu_custom_call.1} parent=1 // pred_fallthru
      _
    // Predicated region
    $region70: #{tpu_custom_call.1} parent=1 // pred_check
      _
    $region71: #{tpu_custom_call.1} parent=1 // pred_check_branch
      %66 = sbr.rel (0) target = $region73
    $region72: #{tpu_custom_call.1} parent=1 // pred_region
      _
    $region73: #{tpu_custom_call.1} parent=1 // pred_fallthru
      _
    // Predicated region
    $region74: #{tpu_custom_call.1} parent=1 // pred_check
      _
    $region75: #{tpu_custom_call.1} parent=1 // pred_check_branch
      %68 = sbr.rel (0) target = $region77
    $region76: #{tpu_custom_call.1} parent=1 // pred_region
      _
    $region77: #{tpu_custom_call.1} parent=1 // pred_fallthru
      _
    // Predicated region
    $region78: #{tpu_custom_call.1} parent=1 // pred_check
      _
    $region79: #{tpu_custom_call.1} parent=1 // pred_check_branch
      %70 = sbr.rel (0) target = $region81
    $region80: #{tpu_custom_call.1} parent=1 // pred_region
      _
    $region81: #{tpu_custom_call.1} parent=1 // pred_fallthru
      _
    // Predicated region
    $region82: #{tpu_custom_call.1} parent=1 // pred_check
      _
    $region83: #{tpu_custom_call.1} parent=1 // pred_check_branch
      %72 = sbr.rel (0) target = $region85
    $region84: #{tpu_custom_call.1} parent=1 // pred_region
      _
    $region85: #{tpu_custom_call.1} parent=1 // pred_fallthru
      _
    // Predicated region
    $region86: #{tpu_custom_call.1} parent=1 // pred_check
      _
    $region87: #{tpu_custom_call.1} parent=1 // pred_check_branch
      %74 = sbr.rel (0) target = $region89
    $region88: #{tpu_custom_call.1} parent=1 // pred_region
      _
    $region89: #{tpu_custom_call.1} parent=1 // pred_fallthru
      _
    // Predicated region
    $region90: #{tpu_custom_call.1} parent=1 // pred_check
      _
    $region91: #{tpu_custom_call.1} parent=1 // pred_check_branch
      %76 = sbr.rel (0) target = $region93
    $region92: #{tpu_custom_call.1} parent=1 // pred_region
      _
    $region93: #{tpu_custom_call.1} parent=1 // pred_fallthru
      _
    // Predicated region
    $region94: #{tpu_custom_call.1} parent=1 // pred_check
      _
    $region95: #{tpu_custom_call.1} parent=1 // pred_check_branch
      %78 = sbr.rel (0) target = $region97
    $region96: #{tpu_custom_call.1} parent=1 // pred_region
      _
    $region97: #{tpu_custom_call.1} parent=1 // pred_fallthru
      _
    // Predicated region
    $region98: #{tpu_custom_call.1} parent=1 // pred_check
      _
    $region99: #{tpu_custom_call.1} parent=1 // pred_check_branch
      %80 = sbr.rel (0) target = $region101
    $region100: #{tpu_custom_call.1} parent=1 // pred_region
      _
    $region101: #{tpu_custom_call.1} parent=1 // pred_fallthru
      _
    %v81 = vld [vmem:[%s0] sm:$0xff]
    %v82 = vld [vmem:[%s0 + $0x8] sm:$0xff]
    %v83 = vld [vmem:[%s0 + $0x10] sm:$0xff]
    %v84 = vld [vmem:[%s0 + $0x18] sm:$0xff]
    %v85 = vld [vmem:[%s0 + $0x20] sm:$0xff]
    %v86 = vld [vmem:[%s0 + $0x28] sm:$0xff]
    %v87 = vld [vmem:[%s0 + $0x30] sm:$0xff]
    %v88 = vld [vmem:[%s0 + $0x38] sm:$0xff]
    %v89 = vld [vmem:[%s0 + $0x40] sm:$0xff]
    %v90 = vld [vmem:[%s0 + $0x48] sm:$0xff]
    %v91 = vld [vmem:[%s0 + $0x50] sm:$0xff]
    %v92 = vld [vmem:[%s0 + $0x58] sm:$0xff]
    %v93 = vld [vmem:[%s0 + $0x60] sm:$0xff]
    %v94 = vld [vmem:[%s3] sm:$0xff]
    %v95 = vld [vmem:[%s3 + $0x8] sm:$0x3]
    %v96 = vld [vmem:[%s4] sm:$0xff]
    %v97 = vld [vmem:[%s1] sm:$0xff]
    %v98 = vld [vmem:[%s1 + $0x8] sm:$0xff]
    %v99 = vld [vmem:[%s1 + $0x10] sm:$0xff]
    %v100 = vld [vmem:[%s1 + $0x18] sm:$0xff]
    %v101 = vld [vmem:[%s1 + $0x20] sm:$0xff]
    %v102 = vld [vmem:[%s1 + $0x28] sm:$0xff]
    %v103 = vld [vmem:[%s1 + $0x30] sm:$0xff]
    %v104 = vld [vmem:[%s1 + $0x38] sm:$0xff]
    %v105 = vld [vmem:[%s1 + $0x40] sm:$0xff]
    %v106 = vld [vmem:[%s1 + $0x48] sm:$0xff]
    %v107 = vld [vmem:[%s1 + $0x50] sm:$0xff]
    %v108 = vld [vmem:[%s1 + $0x58] sm:$0xff]
    %v109 = vld [vmem:[%s1 + $0x60] sm:$0xff]
    %v110 = vld [vmem:[%s1 + $0x68] sm:$0xff]
    %v111 = vld [vmem:[%s1 + $0x70] sm:$0xff]
    %v112 = vld [vmem:[%s1 + $0x78] sm:$0xff]
    %v113 = vld [vmem:[%s1 + $0x80] sm:$0xff]
    %v114 = vld [vmem:[%s1 + $0x88] sm:$0xff]
    %v115 = vld [vmem:[%s1 + $0x90] sm:$0xff]
    %v116 = vld [vmem:[%s1 + $0x98] sm:$0xff]
    %v117 = vld [vmem:[%s1 + $0xa0] sm:$0xff]
    %v118 = vld [vmem:[%s1 + $0xa8] sm:$0xff]
    %v119 = vld [vmem:[%s1 + $0xb0] sm:$0xff]
    %v120 = vld [vmem:[%s1 + $0xb8] sm:$0xff]
    %v121 = vld [vmem:[%s1 + $0xc0] sm:$0xff]
    %v122 = vld [vmem:[%s1 + $0xc8] sm:$0xff]
    %v123 = vld [vmem:[%s1 + $0xd0] sm:$0xff]
    %v124 = vld [vmem:[%s1 + $0xd8] sm:$0xff]
    %v125 = vld [vmem:[%s1 + $0xe0] sm:$0xff]
    %v126 = vld [vmem:[%s1 + $0xe8] sm:$0xff]
    %v127 = vld [vmem:[%s1 + $0xf0] sm:$0xff]
    %v128 = vld [vmem:[%s1 + $0xf8] sm:$0xff]
    %v129 = vld [vmem:[%s1 + $0x100] sm:$0xff]
    %v130 = vld [vmem:[%s1 + $0x108] sm:$0xff]
    %v131 = vld [vmem:[%s1 + $0x110] sm:$0xff]
    %v132 = vld [vmem:[%s1 + $0x118] sm:$0xff]
    %v133 = vld [vmem:[%s1 + $0x120] sm:$0xff]
    %v134 = vld [vmem:[%s1 + $0x128] sm:$0xff]
    %v135 = vld [vmem:[%s1 + $0x130] sm:$0xff]
    %v136 = vld [vmem:[%s1 + $0x138] sm:$0xff]
    %v137 = vld [vmem:[%s1 + $0x140] sm:$0xff]
    %v138 = vld [vmem:[%s1 + $0x148] sm:$0xff]
    %v139 = vld [vmem:[%s1 + $0x150] sm:$0xff]
    %v140 = vld [vmem:[%s1 + $0x158] sm:$0xff]
    %v141 = vld [vmem:[%s1 + $0x160] sm:$0xff]
    %v142 = vld [vmem:[%s1 + $0x168] sm:$0xff]
    %v143 = vld [vmem:[%s1 + $0x170] sm:$0xff]
    %v144 = vld [vmem:[%s1 + $0x178] sm:$0xff]
    %v145 = vld [vmem:[%s1 + $0x180] sm:$0xff]
    %v146 = vld [vmem:[%s1 + $0x188] sm:$0xff]
    %v147 = vld [vmem:[%s1 + $0x190] sm:$0xff]
    %v148 = vld [vmem:[%s1 + $0x198] sm:$0xff]
    %v149 = vld [vmem:[%s1 + $0x1a0] sm:$0xff]
    %v150 = vld [vmem:[%s1 + $0x1a8] sm:$0xff]
    %v151 = vld [vmem:[%s1 + $0x1b0] sm:$0xff]
    %v152 = vld [vmem:[%s1 + $0x1b8] sm:$0xff]
    %v153 = vld [vmem:[%s1 + $0x1c0] sm:$0xff]
    %v154 = vld [vmem:[%s1 + $0x1c8] sm:$0xff]
    %v155 = vld [vmem:[%s1 + $0x1d0] sm:$0xff]
    %v156 = vld [vmem:[%s1 + $0x1d8] sm:$0xff]
    %v157 = vld [vmem:[%s1 + $0x1e0] sm:$0xff]
    %v158 = vld [vmem:[%s1 + $0x1e8] sm:$0xff]
    %v159 = vld [vmem:[%s1 + $0x1f0] sm:$0xff]
    %v160 = vld [vmem:[%s1 + $0x1f8] sm:$0xff]
    %v161 = vld [vmem:[%s1 + $0x200] sm:$0xff]
    %v162 = vld [vmem:[%s1 + $0x208] sm:$0xff]
    %v163 = vld [vmem:[%s1 + $0x210] sm:$0xff]
    %v164 = vld [vmem:[%s1 + $0x218] sm:$0xff]
    %v165 = vld [vmem:[%s1 + $0x220] sm:$0xff]
    %v166 = vld [vmem:[%s1 + $0x228] sm:$0xff]
    %v167 = vld [vmem:[%s1 + $0x230] sm:$0xff]
    %v168 = vld [vmem:[%s1 + $0x238] sm:$0xff]
    %v169 = vld [vmem:[%s1 + $0x240] sm:$0xff]
    %v170 = vld [vmem:[%s1 + $0x248] sm:$0xff]
    %v171 = vld [vmem:[%s1 + $0x250] sm:$0xff]
    %v172 = vld [vmem:[%s1 + $0x258] sm:$0xff]
    %v173 = vld [vmem:[%s1 + $0x260] sm:$0xff]
    %v174 = vld [vmem:[%s1 + $0x268] sm:$0xff]
    %v175 = vld [vmem:[%s1 + $0x270] sm:$0xff]
    %v176 = vld [vmem:[%s1 + $0x278] sm:$0xff]
    %v177 = vld [vmem:[%s1 + $0x280] sm:$0xff]
    %v178 = vld [vmem:[%s1 + $0x288] sm:$0xff]
    %v179 = vld [vmem:[%s1 + $0x290] sm:$0xff]
    %v180 = vld [vmem:[%s1 + $0x298] sm:$0xff]
    %v181 = vld [vmem:[%s1 + $0x2a0] sm:$0xff]
    %v182 = vld [vmem:[%s1 + $0x2a8] sm:$0xff]
    %v183 = vld [vmem:[%s1 + $0x2b0] sm:$0xff]
    %v184 = vld [vmem:[%s1 + $0x2b8] sm:$0xff]
    %v185 = vld [vmem:[%s1 + $0x2c0] sm:$0xff]
    %v186 = vld [vmem:[%s1 + $0x2c8] sm:$0xff]
    %v187 = vld [vmem:[%s1 + $0x2d0] sm:$0xff]
    %v188 = vld [vmem:[%s1 + $0x2d8] sm:$0xff]
    %v189 = vld [vmem:[%s1 + $0x2e0] sm:$0xff]
    %v190 = vld [vmem:[%s1 + $0x2e8] sm:$0xff]
    %v191 = vld [vmem:[%s1 + $0x2f0] sm:$0xff]
    %v192 = vld [vmem:[%s1 + $0x2f8] sm:$0xff]
    %v193 = vld [vmem:[%s1 + $0x300] sm:$0xff]
    %v194 = vld [vmem:[%s1 + $0x308] sm:$0xff]
    %v195 = vld [vmem:[%s1 + $0x310] sm:$0xff]
    %v196 = vld [vmem:[%s1 + $0x318] sm:$0xff]
    %v197 = vld [vmem:[%s1 + $0x320] sm:$0xff]
    %v198 = vld [vmem:[%s1 + $0x328] sm:$0xff]
    %v199 = vld [vmem:[%s1 + $0x330] sm:$0xff]
    %v200 = vld [vmem:[%s1 + $0x338] sm:$0xff]
    %v201 = vld [vmem:[%s1 + $0x340] sm:$0xff]
    %v202 = vld [vmem:[%s1 + $0x348] sm:$0xff]
    %v203 = vld [vmem:[%s1 + $0x350] sm:$0xff]
    %v204 = vld [vmem:[%s1 + $0x358] sm:$0xff]
    %v205 = vld [vmem:[%s1 + $0x360] sm:$0xff]
    %v206 = vld [vmem:[%s1 + $0x368] sm:$0xff]
    %v207 = vld [vmem:[%s1 + $0x370] sm:$0xff]
    %v208 = vld [vmem:[%s1 + $0x378] sm:$0xff]
    %v209 = vld [vmem:[%s1 + $0x380] sm:$0xff]
    %v210 = vld [vmem:[%s1 + $0x388] sm:$0xff]
    %v211 = vld [vmem:[%s1 + $0x390] sm:$0xff]
    %v212 = vld [vmem:[%s1 + $0x398] sm:$0xff]
    %v213 = vld [vmem:[%s1 + $0x3a0] sm:$0xff]
    %v214 = vld [vmem:[%s1 + $0x3a8] sm:$0xff]
    %v215 = vld [vmem:[%s1 + $0x3b0] sm:$0xff]
    %v216 = vld [vmem:[%s1 + $0x3b8] sm:$0xff]
    %v217 = vld [vmem:[%s1 + $0x3c0] sm:$0xff]
    %v218 = vld [vmem:[%s1 + $0x3c8] sm:$0xff]
    %v219 = vld [vmem:[%s1 + $0x3d0] sm:$0xff]
    %v220 = vld [vmem:[%s1 + $0x3d8] sm:$0xff]
    %v221 = vld [vmem:[%s1 + $0x3e0] sm:$0xff]
    %v222 = vld [vmem:[%s1 + $0x3e8] sm:$0xff]
    %v223 = vld [vmem:[%s1 + $0x3f0] sm:$0xff]
    %v224 = vld [vmem:[%s1 + $0x3f8] sm:$0xff]
    %v225 = vld [vmem:[%s1 + $0x400] sm:$0xff]
    %v226 = vld [vmem:[%s1 + $0x408] sm:$0xff]
    %v227 = vld [vmem:[%s1 + $0x410] sm:$0xff]
    %v228 = vld [vmem:[%s1 + $0x418] sm:$0xff]
    %v229 = vld [vmem:[%s1 + $0x420] sm:$0xff]
    %v230 = vld [vmem:[%s1 + $0x428] sm:$0xff]
    %v231 = vld [vmem:[%s1 + $0x430] sm:$0xff]
    %v232 = vld [vmem:[%s1 + $0x438] sm:$0xff]
    %v233 = vld [vmem:[%s1 + $0x440] sm:$0xff]
    %v234 = vld [vmem:[%s1 + $0x448] sm:$0xff]
    %v235 = vld [vmem:[%s1 + $0x450] sm:$0xff]
    %v236 = vld [vmem:[%s1 + $0x458] sm:$0xff]
    %v237 = vld [vmem:[%s1 + $0x460] sm:$0xff]
    %v238 = vld [vmem:[%s1 + $0x468] sm:$0xff]
    %v239 = vld [vmem:[%s1 + $0x470] sm:$0xff]
    %v240 = vld [vmem:[%s1 + $0x478] sm:$0xff]
    %v241 = vld [vmem:[%s1 + $0x480] sm:$0xff]
    %v242 = vld [vmem:[%s1 + $0x488] sm:$0xff]
    %v243 = vld [vmem:[%s1 + $0x490] sm:$0xff]
    %v244 = vld [vmem:[%s1 + $0x498] sm:$0xff]
    %v245 = vld [vmem:[%s1 + $0x4a0] sm:$0xff]
    %v246 = vld [vmem:[%s1 + $0x4a8] sm:$0xff]
    %v247 = vld [vmem:[%s1 + $0x4b0] sm:$0xff]
    %v248 = vld [vmem:[%s1 + $0x4b8] sm:$0xff]
    %v249 = vld [vmem:[%s1 + $0x4c0] sm:$0xff]
    %v250 = vld [vmem:[%s1 + $0x4c8] sm:$0xff]
    %v251 = vld [vmem:[%s1 + $0x4d0] sm:$0xff]
    %v252 = vld [vmem:[%s1 + $0x4d8] sm:$0xff]
    %v253 = vld [vmem:[%s1 + $0x4e0] sm:$0xff]
    %v254 = vld [vmem:[%s1 + $0x4e8] sm:$0xff]
    %v255 = vld [vmem:[%s1 + $0x4f0] sm:$0xff]
    %v256 = vld [vmem:[%s1 + $0x4f8] sm:$0xff]
    %v257 = vld [vmem:[%s1 + $0x500] sm:$0xff]
    %v258 = vld [vmem:[%s1 + $0x508] sm:$0xff]
    %v259 = vld [vmem:[%s1 + $0x510] sm:$0xff]
    %v260 = vld [vmem:[%s1 + $0x518] sm:$0xff]
    %v261 = vld [vmem:[%s1 + $0x520] sm:$0xff]
    %v262 = vld [vmem:[%s1 + $0x528] sm:$0xff]
    %v263 = vld [vmem:[%s1 + $0x530] sm:$0xff]
    %v264 = vld [vmem:[%s1 + $0x538] sm:$0xff]
    %v265 = vld [vmem:[%s1 + $0x540] sm:$0xff]
    %v266 = vld [vmem:[%s1 + $0x548] sm:$0xff]
    %v267 = vld [vmem:[%s1 + $0x550] sm:$0xff]
    %v268 = vld [vmem:[%s1 + $0x558] sm:$0xff]
    %v269 = vld [vmem:[%s1 + $0x560] sm:$0xff]
    %v270 = vld [vmem:[%s1 + $0x568] sm:$0xff]
    %v271 = vld [vmem:[%s1 + $0x570] sm:$0xff]
    %v272 = vld [vmem:[%s1 + $0x578] sm:$0xff]
    %v273 = vld [vmem:[%s1 + $0x580] sm:$0xff]
    %v274 = vld [vmem:[%s1 + $0x588] sm:$0xff]
    %v275 = vld [vmem:[%s1 + $0x590] sm:$0xff]
    %v276 = vld [vmem:[%s1 + $0x598] sm:$0xff]
    %v277 = vld [vmem:[%s1 + $0x5a0] sm:$0xff]
    %v278 = vld [vmem:[%s1 + $0x5a8] sm:$0xff]
    %v279 = vld [vmem:[%s1 + $0x5b0] sm:$0xff]
    %v280 = vld [vmem:[%s1 + $0x5b8] sm:$0xff]
    %v281 = vld [vmem:[%s1 + $0x5c0] sm:$0xff]
    %v282 = vld [vmem:[%s1 + $0x5c8] sm:$0xff]
    %v283 = vld [vmem:[%s1 + $0x5d0] sm:$0xff]
    %v284 = vld [vmem:[%s1 + $0x5d8] sm:$0xff]
    %v285 = vld [vmem:[%s1 + $0x5e0] sm:$0xff]
    %v286 = vld [vmem:[%s1 + $0x5e8] sm:$0xff]
    %v287 = vld [vmem:[%s1 + $0x5f0] sm:$0xff]
    %v288 = vld [vmem:[%s1 + $0x5f8] sm:$0xff]
    %v289 = vld [vmem:[%s1 + $0x600] sm:$0xff]
    %v290 = vld [vmem:[%s1 + $0x608] sm:$0xff]
    %v291 = vld [vmem:[%s1 + $0x610] sm:$0xff]
    %v292 = vld [vmem:[%s1 + $0x618] sm:$0xff]
    %vm293 = vcmask 261120
    %v295 = vsel %vm293, %v93, 0
    %297 = vmatprep.subr.mxu0 0.0
    %298 = vmatpush1.msra.mxu0 %v97
    %299 = vmatprep.subr.mxu0 0.0
    %300 = vmatpush1.msra.mxu0 %v98
    %301 = vmatprep.subr.mxu0 0.0
    %302 = vmatpush1.msra.mxu0 %v99
    %303 = vmatprep.subr.mxu0 0.0
    %304 = vmatpush1.msra.mxu0 %v100
    %305 = vmatprep.subr.mxu0 0.0
    %306 = vmatpush1.msra.mxu0 %v101
    %307 = vmatprep.subr.mxu0 0.0
    %308 = vmatpush1.msra.mxu0 %v102
    %309 = vmatprep.subr.mxu0 0.0
    %310 = vmatpush1.msra.mxu0 %v103
    %311 = vmatprep.subr.mxu0 0.0
    %312 = vmatpush1.msra.mxu0 %v104
    %313 = vmatprep.subr.mxu0 0.0
    %314 = vmatpush1.msra.mxu0 %v105
    %315 = vmatprep.subr.mxu0 0.0
    %316 = vmatpush1.msra.mxu0 %v106
    %317 = vmatprep.subr.mxu0 0.0
    %318 = vmatpush1.msra.mxu0 %v107
    %319 = vmatprep.subr.mxu0 0.0
    %320 = vmatpush1.msra.mxu0 %v108
    %321 = vmatprep.subr.mxu0 0.0
    %322 = vmatpush1.msra.mxu0 %v109
    %323 = vmatprep.subr.mxu0 0.0
    %324 = vmatpush1.msra.mxu0 %v110
    %325 = vmatprep.subr.mxu0 0.0
    %326 = vmatpush1.msra.mxu0 %v111
    %327 = vmatprep.subr.mxu0 0.0
    %328 = vmatpush1.msra.mxu0 %v112
    %329 = vmatprep.subr.mxu0 0.0
    %330 = vmatpush1.msra.mxu0 %v113
    %331 = vmatprep.subr.mxu0 0.0
    %332 = vmatpush1.msra.mxu0 %v114
    %333 = vmatprep.subr.mxu0 0.0
    %334 = vmatpush1.msra.mxu0 %v115
    %335 = vmatprep.subr.mxu0 0.0
    %336 = vmatpush1.msra.mxu0 %v116
    %337 = vmatprep.subr.mxu0 0.0
    %338 = vmatpush1.msra.mxu0 %v117
    %339 = vmatprep.subr.mxu0 0.0
    %340 = vmatpush1.msra.mxu0 %v118
    %341 = vmatprep.subr.mxu0 0.0
    %342 = vmatpush1.msra.mxu0 %v119
    %343 = vmatprep.subr.mxu0 0.0
    %344 = vmatpush1.msra.mxu0 %v120
    %345 = vmatprep.subr.mxu0 0.0
    %346 = vmatpush1.msra.mxu0 %v121
    %347 = vmatprep.subr.mxu0 0.0
    %348 = vmatpush1.msra.mxu0 %v122
    %349 = vmatprep.subr.mxu0 0.0
    %350 = vmatpush1.msra.mxu0 %v123
    %351 = vmatprep.subr.mxu0 0.0
    %352 = vmatpush1.msra.mxu0 %v124
    %353 = vmatprep.subr.mxu0 0.0
    %354 = vmatpush1.msra.mxu0 %v125
    %355 = vmatprep.subr.mxu0 0.0
    %356 = vmatpush1.msra.mxu0 %v126
    %357 = vmatprep.subr.mxu0 0.0
    %358 = vmatpush1.msra.mxu0 %v127
    %359 = vmatprep.subr.mxu0 0.0
    %360 = vmatpush1.msra.mxu0 %v128
    %361 = vmatprep.mubr.f32.mxu0 %v82
    %362 = vmatmul.mubr.f32.gmra.mrb[0].mxu0 %v81
    %v363 = vpop.f32.mrb[0].mxu0
    %v364 = vadd.f32 0.0, %v363
    %v365 = vpop.f32.mrb[0].mxu0
    %366 = vdwg.mxu0
    %367 = vmatprep.subr.mxu0 0.0
    %368 = vmatpush1.msra.mxu0 %v129
    %369 = vmatprep.subr.mxu0 0.0
    %370 = vmatpush1.msra.mxu0 %v130
    %371 = vmatprep.subr.mxu0 0.0
    %372 = vmatpush1.msra.mxu0 %v131
    %373 = vmatprep.subr.mxu0 0.0
    %374 = vmatpush1.msra.mxu0 %v132
    %375 = vmatprep.subr.mxu0 0.0
    %376 = vmatpush1.msra.mxu0 %v133
    %377 = vmatprep.subr.mxu0 0.0
    %378 = vmatpush1.msra.mxu0 %v134
    %379 = vmatprep.subr.mxu0 0.0
    %380 = vmatpush1.msra.mxu0 %v135
    %381 = vmatprep.subr.mxu0 0.0
    %382 = vmatpush1.msra.mxu0 %v136
    %383 = vmatprep.subr.mxu0 0.0
    %384 = vmatpush1.msra.mxu0 %v137
    %385 = vmatprep.subr.mxu0 0.0
    %386 = vmatpush1.msra.mxu0 %v138
    %387 = vmatprep.subr.mxu0 0.0
    %388 = vmatpush1.msra.mxu0 %v139
    %389 = vmatprep.subr.mxu0 0.0
    %390 = vmatpush1.msra.mxu0 %v140
    %391 = vmatprep.subr.mxu0 0.0
    %392 = vmatpush1.msra.mxu0 %v141
    %393 = vmatprep.subr.mxu0 0.0
    %394 = vmatpush1.msra.mxu0 %v142
    %395 = vmatprep.subr.mxu0 0.0
    %396 = vmatpush1.msra.mxu0 %v143
    %397 = vmatprep.subr.mxu0 0.0
    %398 = vmatpush1.msra.mxu0 %v144
    %399 = vmatprep.subr.mxu0 0.0
    %400 = vmatpush1.msra.mxu0 %v145
    %401 = vmatprep.subr.mxu0 0.0
    %402 = vmatpush1.msra.mxu0 %v146
    %403 = vmatprep.subr.mxu0 0.0
    %404 = vmatpush1.msra.mxu0 %v147
    %405 = vmatprep.subr.mxu0 0.0
    %406 = vmatpush1.msra.mxu0 %v148
    %407 = vmatprep.subr.mxu0 0.0
    %408 = vmatpush1.msra.mxu0 %v149
    %409 = vmatprep.subr.mxu0 0.0
    %410 = vmatpush1.msra.mxu0 %v150
    %411 = vmatprep.subr.mxu0 0.0
    %412 = vmatpush1.msra.mxu0 %v151
    %413 = vmatprep.subr.mxu0 0.0
    %414 = vmatpush1.msra.mxu0 %v152
    %415 = vmatprep.subr.mxu0 0.0
    %416 = vmatpush1.msra.mxu0 %v153
    %417 = vmatprep.subr.mxu0 0.0
    %418 = vmatpush1.msra.mxu0 %v154
    %419 = vmatprep.subr.mxu0 0.0
    %420 = vmatpush1.msra.mxu0 %v155
    %421 = vmatprep.subr.mxu0 0.0
    %422 = vmatpush1.msra.mxu0 %v156
    %423 = vmatprep.subr.mxu0 0.0
    %424 = vmatpush1.msra.mxu0 %v157
    %425 = vmatprep.subr.mxu0 0.0
    %426 = vmatpush1.msra.mxu0 %v158
    %427 = vmatprep.subr.mxu0 0.0
    %428 = vmatpush1.msra.mxu0 %v159
    %429 = vmatprep.subr.mxu0 0.0
    %430 = vmatpush1.msra.mxu0 %v160
    %431 = vmatprep.mubr.f32.mxu0 %v84
    %432 = vmatmul.mubr.f32.gmra.mrb[0].mxu0 %v83
    %v433 = vpop.f32.mrb[0].mxu0
    %v434 = vadd.f32 %v364, %v433
    %v435 = vpop.f32.mrb[0].mxu0
    %436 = vdwg.mxu0
    %437 = vmatprep.subr.mxu0 0.0
    %438 = vmatpush1.msra.mxu0 %v161
    %439 = vmatprep.subr.mxu0 0.0
    %440 = vmatpush1.msra.mxu0 %v162
    %441 = vmatprep.subr.mxu0 0.0
    %442 = vmatpush1.msra.mxu0 %v163
    %443 = vmatprep.subr.mxu0 0.0
    %444 = vmatpush1.msra.mxu0 %v164
    %445 = vmatprep.subr.mxu0 0.0
    %446 = vmatpush1.msra.mxu0 %v165
    %447 = vmatprep.subr.mxu0 0.0
    %448 = vmatpush1.msra.mxu0 %v166
    %449 = vmatprep.subr.mxu0 0.0
    %450 = vmatpush1.msra.mxu0 %v167
    %451 = vmatprep.subr.mxu0 0.0
    %452 = vmatpush1.msra.mxu0 %v168
    %453 = vmatprep.subr.mxu0 0.0
    %454 = vmatpush1.msra.mxu0 %v169
    %455 = vmatprep.subr.mxu0 0.0
    %456 = vmatpush1.msra.mxu0 %v170
    %457 = vmatprep.subr.mxu0 0.0
    %458 = vmatpush1.msra.mxu0 %v171
    %459 = vmatprep.subr.mxu0 0.0
    %460 = vmatpush1.msra.mxu0 %v172
    %461 = vmatprep.subr.mxu0 0.0
    %462 = vmatpush1.msra.mxu0 %v173
    %463 = vmatprep.subr.mxu0 0.0
    %464 = vmatpush1.msra.mxu0 %v174
    %465 = vmatprep.subr.mxu0 0.0
    %466 = vmatpush1.msra.mxu0 %v175
    %467 = vmatprep.subr.mxu0 0.0
    %468 = vmatpush1.msra.mxu0 %v176
    %469 = vmatprep.subr.mxu0 0.0
    %470 = vmatpush1.msra.mxu0 %v177
    %471 = vmatprep.subr.mxu0 0.0
    %472 = vmatpush1.msra.mxu0 %v178
    %473 = vmatprep.subr.mxu0 0.0
    %474 = vmatpush1.msra.mxu0 %v179
    %475 = vmatprep.subr.mxu0 0.0
    %476 = vmatpush1.msra.mxu0 %v180
    %477 = vmatprep.subr.mxu0 0.0
    %478 = vmatpush1.msra.mxu0 %v181
    %479 = vmatprep.subr.mxu0 0.0
    %480 = vmatpush1.msra.mxu0 %v182
    %481 = vmatprep.subr.mxu0 0.0
    %482 = vmatpush1.msra.mxu0 %v183
    %483 = vmatprep.subr.mxu0 0.0
    %484 = vmatpush1.msra.mxu0 %v184
    %485 = vmatprep.subr.mxu0 0.0
    %486 = vmatpush1.msra.mxu0 %v185
    %487 = vmatprep.subr.mxu0 0.0
    %488 = vmatpush1.msra.mxu0 %v186
    %489 = vmatprep.subr.mxu0 0.0
    %490 = vmatpush1.msra.mxu0 %v187
    %491 = vmatprep.subr.mxu0 0.0
    %492 = vmatpush1.msra.mxu0 %v188
    %493 = vmatprep.subr.mxu0 0.0
    %494 = vmatpush1.msra.mxu0 %v189
    %495 = vmatprep.subr.mxu0 0.0
    %496 = vmatpush1.msra.mxu0 %v190
    %497 = vmatprep.subr.mxu0 0.0
    %498 = vmatpush1.msra.mxu0 %v191
    %499 = vmatprep.subr.mxu0 0.0
    %500 = vmatpush1.msra.mxu0 %v192
    %501 = vmatprep.mubr.f32.mxu0 %v86
    %502 = vmatmul.mubr.f32.gmra.mrb[0].mxu0 %v85
    %v503 = vpop.f32.mrb[0].mxu0
    %v504 = vadd.f32 %v434, %v503
    %v505 = vpop.f32.mrb[0].mxu0
    %506 = vdwg.mxu0
    %507 = vmatprep.subr.mxu0 0.0
    %508 = vmatpush1.msra.mxu0 %v193
    %509 = vmatprep.subr.mxu0 0.0
    %510 = vmatpush1.msra.mxu0 %v194
    %511 = vmatprep.subr.mxu0 0.0
    %512 = vmatpush1.msra.mxu0 %v195
    %513 = vmatprep.subr.mxu0 0.0
    %514 = vmatpush1.msra.mxu0 %v196
    %515 = vmatprep.subr.mxu0 0.0
    %516 = vmatpush1.msra.mxu0 %v197
    %517 = vmatprep.subr.mxu0 0.0
    %518 = vmatpush1.msra.mxu0 %v198
    %519 = vmatprep.subr.mxu0 0.0
    %520 = vmatpush1.msra.mxu0 %v199
    %521 = vmatprep.subr.mxu0 0.0
    %522 = vmatpush1.msra.mxu0 %v200
    %523 = vmatprep.subr.mxu0 0.0
    %524 = vmatpush1.msra.mxu0 %v201
    %525 = vmatprep.subr.mxu0 0.0
    %526 = vmatpush1.msra.mxu0 %v202
    %527 = vmatprep.subr.mxu0 0.0
    %528 = vmatpush1.msra.mxu0 %v203
    %529 = vmatprep.subr.mxu0 0.0
    %530 = vmatpush1.msra.mxu0 %v204
    %531 = vmatprep.subr.mxu0 0.0
    %532 = vmatpush1.msra.mxu0 %v205
    %533 = vmatprep.subr.mxu0 0.0
    %534 = vmatpush1.msra.mxu0 %v206
    %535 = vmatprep.subr.mxu0 0.0
    %536 = vmatpush1.msra.mxu0 %v207
    %537 = vmatprep.subr.mxu0 0.0
    %538 = vmatpush1.msra.mxu0 %v208
    %539 = vmatprep.subr.mxu0 0.0
    %540 = vmatpush1.msra.mxu0 %v209
    %541 = vmatprep.subr.mxu0 0.0
    %542 = vmatpush1.msra.mxu0 %v210
    %543 = vmatprep.subr.mxu0 0.0
    %544 = vmatpush1.msra.mxu0 %v211
    %545 = vmatprep.subr.mxu0 0.0
    %546 = vmatpush1.msra.mxu0 %v212
    %547 = vmatprep.subr.mxu0 0.0
    %548 = vmatpush1.msra.mxu0 %v213
    %549 = vmatprep.subr.mxu0 0.0
    %550 = vmatpush1.msra.mxu0 %v214
    %551 = vmatprep.subr.mxu0 0.0
    %552 = vmatpush1.msra.mxu0 %v215
    %553 = vmatprep.subr.mxu0 0.0
    %554 = vmatpush1.msra.mxu0 %v216
    %555 = vmatprep.subr.mxu0 0.0
    %556 = vmatpush1.msra.mxu0 %v217
    %557 = vmatprep.subr.mxu0 0.0
    %558 = vmatpush1.msra.mxu0 %v218
    %559 = vmatprep.subr.mxu0 0.0
    %560 = vmatpush1.msra.mxu0 %v219
    %561 = vmatprep.subr.mxu0 0.0
    %562 = vmatpush1.msra.mxu0 %v220
    %563 = vmatprep.subr.mxu0 0.0
    %564 = vmatpush1.msra.mxu0 %v221
    %565 = vmatprep.subr.mxu0 0.0
    %566 = vmatpush1.msra.mxu0 %v222
    %567 = vmatprep.subr.mxu0 0.0
    %568 = vmatpush1.msra.mxu0 %v223
    %569 = vmatprep.subr.mxu0 0.0
    %570 = vmatpush1.msra.mxu0 %v224
    %571 = vmatprep.mubr.f32.mxu0 %v88
    %572 = vmatmul.mubr.f32.gmra.mrb[0].mxu0 %v87
    %v573 = vpop.f32.mrb[0].mxu0
    %v574 = vadd.f32 %v504, %v573
    %v575 = vpop.f32.mrb[0].mxu0
    %576 = vdwg.mxu0
    %577 = vmatprep.subr.mxu0 0.0
    %578 = vmatpush1.msra.mxu0 %v225
    %579 = vmatprep.subr.mxu0 0.0
    %580 = vmatpush1.msra.mxu0 %v226
    %581 = vmatprep.subr.mxu0 0.0
    %582 = vmatpush1.msra.mxu0 %v227
    %583 = vmatprep.subr.mxu0 0.0
    %584 = vmatpush1.msra.mxu0 %v228
    %585 = vmatprep.subr.mxu0 0.0
    %586 = vmatpush1.msra.mxu0 %v229
    %587 = vmatprep.subr.mxu0 0.0
    %588 = vmatpush1.msra.mxu0 %v230
    %589 = vmatprep.subr.mxu0 0.0
    %590 = vmatpush1.msra.mxu0 %v231
    %591 = vmatprep.subr.mxu0 0.0
    %592 = vmatpush1.msra.mxu0 %v232
    %593 = vmatprep.subr.mxu0 0.0
    %594 = vmatpush1.msra.mxu0 %v233
    %595 = vmatprep.subr.mxu0 0.0
    %596 = vmatpush1.msra.mxu0 %v234
    %597 = vmatprep.subr.mxu0 0.0
    %598 = vmatpush1.msra.mxu0 %v235
    %599 = vmatprep.subr.mxu0 0.0
    %600 = vmatpush1.msra.mxu0 %v236
    %601 = vmatprep.subr.mxu0 0.0
    %602 = vmatpush1.msra.mxu0 %v237
    %603 = vmatprep.subr.mxu0 0.0
    %604 = vmatpush1.msra.mxu0 %v238
    %605 = vmatprep.subr.mxu0 0.0
    %606 = vmatpush1.msra.mxu0 %v239
    %607 = vmatprep.subr.mxu0 0.0
    %608 = vmatpush1.msra.mxu0 %v240
    %609 = vmatprep.subr.mxu0 0.0
    %610 = vmatpush1.msra.mxu0 %v241
    %611 = vmatprep.subr.mxu0 0.0
    %612 = vmatpush1.msra.mxu0 %v242
    %613 = vmatprep.subr.mxu0 0.0
    %614 = vmatpush1.msra.mxu0 %v243
    %615 = vmatprep.subr.mxu0 0.0
    %616 = vmatpush1.msra.mxu0 %v244
    %617 = vmatprep.subr.mxu0 0.0
    %618 = vmatpush1.msra.mxu0 %v245
    %619 = vmatprep.subr.mxu0 0.0
    %620 = vmatpush1.msra.mxu0 %v246
    %621 = vmatprep.subr.mxu0 0.0
    %622 = vmatpush1.msra.mxu0 %v247
    %623 = vmatprep.subr.mxu0 0.0
    %624 = vmatpush1.msra.mxu0 %v248
    %625 = vmatprep.subr.mxu0 0.0
    %626 = vmatpush1.msra.mxu0 %v249
    %627 = vmatprep.subr.mxu0 0.0
    %628 = vmatpush1.msra.mxu0 %v250
    %629 = vmatprep.subr.mxu0 0.0
    %630 = vmatpush1.msra.mxu0 %v251
    %631 = vmatprep.subr.mxu0 0.0
    %632 = vmatpush1.msra.mxu0 %v252
    %633 = vmatprep.subr.mxu0 0.0
    %634 = vmatpush1.msra.mxu0 %v253
    %635 = vmatprep.subr.mxu0 0.0
    %636 = vmatpush1.msra.mxu0 %v254
    %637 = vmatprep.subr.mxu0 0.0
    %638 = vmatpush1.msra.mxu0 %v255
    %639 = vmatprep.subr.mxu0 0.0
    %640 = vmatpush1.msra.mxu0 %v256
    %641 = vmatprep.mubr.f32.mxu0 %v90
    %642 = vmatmul.mubr.f32.gmra.mrb[0].mxu0 %v89
    %v643 = vpop.f32.mrb[0].mxu0
    %v644 = vadd.f32 %v574, %v643
    %v645 = vpop.f32.mrb[0].mxu0
    %646 = vdwg.mxu0
    %647 = vmatprep.subr.mxu0 0.0
    %648 = vmatpush1.msra.mxu0 %v257
    %649 = vmatprep.subr.mxu0 0.0
    %650 = vmatpush1.msra.mxu0 %v258
    %651 = vmatprep.subr.mxu0 0.0
    %652 = vmatpush1.msra.mxu0 %v259
    %653 = vmatprep.subr.mxu0 0.0
    %654 = vmatpush1.msra.mxu0 %v260
    %655 = vmatprep.subr.mxu0 0.0
    %656 = vmatpush1.msra.mxu0 %v261
    %657 = vmatprep.subr.mxu0 0.0
    %658 = vmatpush1.msra.mxu0 %v262
    %659 = vmatprep.subr.mxu0 0.0
    %660 = vmatpush1.msra.mxu0 %v263
    %661 = vmatprep.subr.mxu0 0.0
    %662 = vmatpush1.msra.mxu0 %v264
    %663 = vmatprep.subr.mxu0 0.0
    %664 = vmatpush1.msra.mxu0 %v265
    %665 = vmatprep.subr.mxu0 0.0
    %666 = vmatpush1.msra.mxu0 %v266
    %667 = vmatprep.subr.mxu0 0.0
    %668 = vmatpush1.msra.mxu0 %v267
    %669 = vmatprep.subr.mxu0 0.0
    %670 = vmatpush1.msra.mxu0 %v268
    %671 = vmatprep.subr.mxu0 0.0
    %672 = vmatpush1.msra.mxu0 %v269
    %673 = vmatprep.subr.mxu0 0.0
    %674 = vmatpush1.msra.mxu0 %v270
    %675 = vmatprep.subr.mxu0 0.0
    %676 = vmatpush1.msra.mxu0 %v271
    %677 = vmatprep.subr.mxu0 0.0
    %678 = vmatpush1.msra.mxu0 %v272
    %679 = vmatprep.subr.mxu0 0.0
    %680 = vmatpush1.msra.mxu0 %v273
    %681 = vmatprep.subr.mxu0 0.0
    %682 = vmatpush1.msra.mxu0 %v274
    %683 = vmatprep.subr.mxu0 0.0
    %684 = vmatpush1.msra.mxu0 %v275
    %685 = vmatprep.subr.mxu0 0.0
    %686 = vmatpush1.msra.mxu0 %v276
    %687 = vmatprep.subr.mxu0 0.0
    %688 = vmatpush1.msra.mxu0 %v277
    %689 = vmatprep.subr.mxu0 0.0
    %690 = vmatpush1.msra.mxu0 %v278
    %691 = vmatprep.subr.mxu0 0.0
    %692 = vmatpush1.msra.mxu0 %v279
    %693 = vmatprep.subr.mxu0 0.0
    %694 = vmatpush1.msra.mxu0 %v280
    %695 = vmatprep.subr.mxu0 0.0
    %696 = vmatpush1.msra.mxu0 %v281
    %697 = vmatprep.subr.mxu0 0.0
    %698 = vmatpush1.msra.mxu0 %v282
    %699 = vmatprep.subr.mxu0 0.0
    %700 = vmatpush1.msra.mxu0 %v283
    %701 = vmatprep.subr.mxu0 0.0
    %702 = vmatpush1.msra.mxu0 %v284
    %703 = vmatprep.subr.mxu0 0.0
    %704 = vmatpush1.msra.mxu0 %v285
    %705 = vmatprep.subr.mxu0 0.0
    %706 = vmatpush1.msra.mxu0 %v286
    %707 = vmatprep.subr.mxu0 0.0
    %708 = vmatpush1.msra.mxu0 %v287
    %709 = vmatprep.subr.mxu0 0.0
    %710 = vmatpush1.msra.mxu0 %v288
    %711 = vmatprep.mubr.f32.mxu0 %v92
    %712 = vmatmul.mubr.f32.gmra.mrb[0].mxu0 %v91
    %v713 = vpop.f32.mrb[0].mxu0
    %v714 = vadd.f32 %v644, %v713
    %v715 = vpop.f32.mrb[0].mxu0
    %716 = vdwg.mxu0
    %717 = vmatprep.subr.mxu0 0.0
    %718 = vmatpush1.msra.mxu0 %v289
    %719 = vmatprep.subr.mxu0 0.0
    %720 = vmatpush1.msra.mxu0 %v290
    %721 = vmatprep.subr.mxu0 0.0
    %722 = vmatpush1.msra.mxu0 %v291
    %723 = vmatprep.subr.mxu0 0.0
    %724 = vmatpush1.msra.mxu0 %v292
    %725 = vmatprep.subr.mxu0 0.0
    %726 = vmatpush1.msra.mxu0 0.0
    %727 = vmatprep.subr.mxu0 0.0
    %728 = vmatpush1.msra.mxu0 0.0
    %729 = vmatprep.subr.mxu0 0.0
    %730 = vmatpush1.msra.mxu0 0.0
    %731 = vmatprep.subr.mxu0 0.0
    %732 = vmatpush1.msra.mxu0 0.0
    %733 = vmatprep.subr.mxu0 0.0
    %734 = vmatpush1.msra.mxu0 0.0
    %735 = vmatprep.subr.mxu0 0.0
    %736 = vmatpush1.msra.mxu0 0.0
    %737 = vmatprep.subr.mxu0 0.0
    %738 = vmatpush1.msra.mxu0 0.0
    %739 = vmatprep.subr.mxu0 0.0
    %740 = vmatpush1.msra.mxu0 0.0
    %741 = vmatprep.subr.mxu0 0.0
    %742 = vmatpush1.msra.mxu0 0.0
    %743 = vmatprep.subr.mxu0 0.0
    %744 = vmatpush1.msra.mxu0 0.0
    %745 = vmatprep.subr.mxu0 0.0
    %746 = vmatpush1.msra.mxu0 0.0
    %747 = vmatprep.subr.mxu0 0.0
    %748 = vmatpush1.msra.mxu0 0.0
    %749 = vmatprep.subr.mxu0 0.0
    %750 = vmatpush1.msra.mxu0 0.0
    %751 = vmatprep.subr.mxu0 0.0
    %752 = vmatpush1.msra.mxu0 0.0
    %753 = vmatprep.subr.mxu0 0.0
    %754 = vmatpush1.msra.mxu0 0.0
    %755 = vmatprep.subr.mxu0 0.0
    %756 = vmatpush1.msra.mxu0 0.0
    %757 = vmatprep.subr.mxu0 0.0
    %758 = vmatpush1.msra.mxu0 0.0
    %759 = vmatprep.subr.mxu0 0.0
    %760 = vmatpush1.msra.mxu0 0.0
    %761 = vmatprep.subr.mxu0 0.0
    %762 = vmatpush1.msra.mxu0 0.0
    %763 = vmatprep.subr.mxu0 0.0
    %764 = vmatpush1.msra.mxu0 0.0
    %765 = vmatprep.subr.mxu0 0.0
    %766 = vmatpush1.msra.mxu0 0.0
    %767 = vmatprep.subr.mxu0 0.0
    %768 = vmatpush1.msra.mxu0 0.0
    %769 = vmatprep.subr.mxu0 0.0
    %770 = vmatpush1.msra.mxu0 0.0
    %771 = vmatprep.subr.mxu0 0.0
    %772 = vmatpush1.msra.mxu0 0.0
    %773 = vmatprep.subr.mxu0 0.0
    %774 = vmatpush1.msra.mxu0 0.0
    %775 = vmatprep.subr.mxu0 0.0
    %776 = vmatpush1.msra.mxu0 0.0
    %777 = vmatprep.subr.mxu0 0.0
    %778 = vmatpush1.msra.mxu0 0.0
    %779 = vmatprep.subr.mxu0 0.0
    %780 = vmatpush1.msra.mxu0 0.0
    %781 = vmatprep.mubr.f32.mxu0 0.0
    %782 = vmatmul.mubr.f32.gmra.mrb[0].mxu0 %v295
    %v783 = vpop.f32.mrb[0].mxu0
    %v784 = vadd.f32 %v714, %v783
    %v785 = vpop.f32.mrb[0].mxu0
    %786 = vdwg.mxu0
    %v787 = vld [vmem:[%s5] sm:$0xff]
    %v788 = vld [vmem:[%s5 + $0x8] sm:$0xff]
    %v789 = vld [vmem:[%s5 + $0x10] sm:$0xff]
    %v790 = vld [vmem:[%s5 + $0x18] sm:$0xff]
    %v791 = vld [vmem:[%s6] sm:$0x1]
    %v793 = vlaneseq
    %v794 = vshrl.u32 %v793, 7
    %v795 = vsub.s32 0, %v794
    %v796 = vrot.slane %v791, %v795
    %v799 = vsel %vm293, %v784, 0
    %801 = vmatprep.subr.mxu0 0.0
    %802 = vmatpush1.msra.mxu0 %v787
    %803 = vmatprep.subr.mxu0 0.0
    %804 = vmatpush1.msra.mxu0 %v788
    %805 = vmatprep.subr.mxu0 0.0
    %806 = vmatpush1.msra.mxu0 %v789
    %807 = vmatprep.subr.mxu0 0.0
    %808 = vmatpush1.msra.mxu0 %v790
    %809 = vmatprep.subr.mxu0 0.0
    %810 = vmatpush1.msra.mxu0 0.0
    %811 = vmatprep.subr.mxu0 0.0
    %812 = vmatpush1.msra.mxu0 0.0
    %813 = vmatprep.subr.mxu0 0.0
    %814 = vmatpush1.msra.mxu0 0.0
    %815 = vmatprep.subr.mxu0 0.0
    %816 = vmatpush1.msra.mxu0 0.0
    %817 = vmatprep.subr.mxu0 0.0
    %818 = vmatpush1.msra.mxu0 0.0
    %819 = vmatprep.subr.mxu0 0.0
    %820 = vmatpush1.msra.mxu0 0.0
    %821 = vmatprep.subr.mxu0 0.0
    %822 = vmatpush1.msra.mxu0 0.0
    %823 = vmatprep.subr.mxu0 0.0
    %824 = vmatpush1.msra.mxu0 0.0
    %825 = vmatprep.subr.mxu0 0.0
    %826 = vmatpush1.msra.mxu0 0.0
    %827 = vmatprep.subr.mxu0 0.0
    %828 = vmatpush1.msra.mxu0 0.0
    %829 = vmatprep.subr.mxu0 0.0
    %830 = vmatpush1.msra.mxu0 0.0
    %831 = vmatprep.subr.mxu0 0.0
    %832 = vmatpush1.msra.mxu0 0.0
    %833 = vmatprep.subr.mxu0 0.0
    %834 = vmatpush1.msra.mxu0 0.0
    %835 = vmatprep.subr.mxu0 0.0
    %836 = vmatpush1.msra.mxu0 0.0
    %837 = vmatprep.subr.mxu0 0.0
    %838 = vmatpush1.msra.mxu0 0.0
    %839 = vmatprep.subr.mxu0 0.0
    %840 = vmatpush1.msra.mxu0 0.0
    %841 = vmatprep.subr.mxu0 0.0
    %842 = vmatpush1.msra.mxu0 0.0
    %843 = vmatprep.subr.mxu0 0.0
    %844 = vmatpush1.msra.mxu0 0.0
    %845 = vmatprep.subr.mxu0 0.0
    %846 = vmatpush1.msra.mxu0 0.0
    %847 = vmatprep.subr.mxu0 0.0
    %848 = vmatpush1.msra.mxu0 0.0
    %849 = vmatprep.subr.mxu0 0.0
    %850 = vmatpush1.msra.mxu0 0.0
    %851 = vmatprep.subr.mxu0 0.0
    %852 = vmatpush1.msra.mxu0 0.0
    %853 = vmatprep.subr.mxu0 0.0
    %854 = vmatpush1.msra.mxu0 0.0
    %855 = vmatprep.subr.mxu0 0.0
    %856 = vmatpush1.msra.mxu0 0.0
    %857 = vmatprep.subr.mxu0 0.0
    %858 = vmatpush1.msra.mxu0 0.0
    %859 = vmatprep.subr.mxu0 0.0
    %860 = vmatpush1.msra.mxu0 0.0
    %861 = vmatprep.subr.mxu0 0.0
    %862 = vmatpush1.msra.mxu0 0.0
    %863 = vmatprep.subr.mxu0 0.0
    %864 = vmatpush1.msra.mxu0 0.0
    %865 = vmatprep.mubr.f32.mxu0 0.0
    %866 = vmatmul.mubr.f32.gmra.mrb[0].mxu0 %v799
    %v867 = vpop.f32.mrb[0].mxu0
    %v868 = vadd.f32 %v796, %v867
    %v869 = vpop.f32.mrb[0].mxu0
    %870 = vdwg.mxu0
    %v871 = vmul.f32 %v868, 0.35355338
    %v872 = vld [vmem:[%s7] sm:$0xff]
    %v873 = vld [vmem:[%s7 + $0x8] sm:$0xff]
    %v874 = vld [vmem:[%s7 + $0x10] sm:$0xff]
    %v875 = vld [vmem:[%s7 + $0x18] sm:$0xff]
    %v876 = vld [vmem:[%s7 + $0x20] sm:$0xff]
    %v877 = vld [vmem:[%s7 + $0x28] sm:$0x1]
    %v878 = vld [vmem:[%s8] sm:$0x1]
    %v880 = vlaneseq
    %v881 = vshrl.u32 %v880, 7
    %v882 = vsub.s32 0, %v881
    %v883 = vrot.slane %v878, %v882
    %vm885 = vcmask 334848
    %v887 = vsel %vm885, %v94, 0
    %v890 = vsel %vm885, %v95, 0
    %vm892 = vcmask 1040384
    %v894 = vsel %vm892, %v877, 0
    %896 = vmatprep.subr.mxu0 0.0
    %897 = vmatpush1.msra.mxu0 %v872
    %898 = vmatprep.subr.mxu0 0.0
    %899 = vmatpush1.msra.mxu0 %v873
    %900 = vmatprep.subr.mxu0 0.0
    %901 = vmatpush1.msra.mxu0 %v874
    %902 = vmatprep.subr.mxu0 0.0
    %903 = vmatpush1.msra.mxu0 %v875
    %904 = vmatprep.subr.mxu0 0.0
    %905 = vmatpush1.msra.mxu0 %v876
    %906 = vmatprep.subr.mxu0 0.0
    %907 = vmatpush1.msra.mxu0 %v894
    %908 = vmatprep.subr.mxu0 0.0
    %909 = vmatpush1.msra.mxu0 0.0
    %910 = vmatprep.subr.mxu0 0.0
    %911 = vmatpush1.msra.mxu0 0.0
    %912 = vmatprep.subr.mxu0 0.0
    %913 = vmatpush1.msra.mxu0 0.0
    %914 = vmatprep.subr.mxu0 0.0
    %915 = vmatpush1.msra.mxu0 0.0
    %916 = vmatprep.subr.mxu0 0.0
    %917 = vmatpush1.msra.mxu0 0.0
    %918 = vmatprep.subr.mxu0 0.0
    %919 = vmatpush1.msra.mxu0 0.0
    %920 = vmatprep.subr.mxu0 0.0
    %921 = vmatpush1.msra.mxu0 0.0
    %922 = vmatprep.subr.mxu0 0.0
    %923 = vmatpush1.msra.mxu0 0.0
    %924 = vmatprep.subr.mxu0 0.0
    %925 = vmatpush1.msra.mxu0 0.0
    %926 = vmatprep.subr.mxu0 0.0
    %927 = vmatpush1.msra.mxu0 0.0
    %928 = vmatprep.subr.mxu0 0.0
    %929 = vmatpush1.msra.mxu0 0.0
    %930 = vmatprep.subr.mxu0 0.0
    %931 = vmatpush1.msra.mxu0 0.0
    %932 = vmatprep.subr.mxu0 0.0
    %933 = vmatpush1.msra.mxu0 0.0
    %934 = vmatprep.subr.mxu0 0.0
    %935 = vmatpush1.msra.mxu0 0.0
    %936 = vmatprep.subr.mxu0 0.0
    %937 = vmatpush1.msra.mxu0 0.0
    %938 = vmatprep.subr.mxu0 0.0
    %939 = vmatpush1.msra.mxu0 0.0
    %940 = vmatprep.subr.mxu0 0.0
    %941 = vmatpush1.msra.mxu0 0.0
    %942 = vmatprep.subr.mxu0 0.0
    %943 = vmatpush1.msra.mxu0 0.0
    %944 = vmatprep.subr.mxu0 0.0
    %945 = vmatpush1.msra.mxu0 0.0
    %946 = vmatprep.subr.mxu0 0.0
    %947 = vmatpush1.msra.mxu0 0.0
    %948 = vmatprep.subr.mxu0 0.0
    %949 = vmatpush1.msra.mxu0 0.0
    %950 = vmatprep.subr.mxu0 0.0
    %951 = vmatpush1.msra.mxu0 0.0
    %952 = vmatprep.subr.mxu0 0.0
    %953 = vmatpush1.msra.mxu0 0.0
    %954 = vmatprep.subr.mxu0 0.0
    %955 = vmatpush1.msra.mxu0 0.0
    %956 = vmatprep.subr.mxu0 0.0
    %957 = vmatpush1.msra.mxu0 0.0
    %958 = vmatprep.subr.mxu0 0.0
    %959 = vmatpush1.msra.mxu0 0.0
    %960 = vmatprep.mubr.f32.mxu0 0.0
    %961 = vmatmul.mubr.f32.gmra.mrb[0].mxu0 %v887
    %v962 = vpop.f32.mrb[0].mxu0
    %v963 = vadd.f32 %v883, %v962
    %v964 = vpop.f32.mrb[0].mxu0
    %965 = vmatprep.mubr.f32.mxu0 0.0
    %966 = vmatmul.mubr.f32.gmra.mrb[0].mxu0 %v890
    %v967 = vpop.f32.mrb[0].mxu0
    %v968 = vadd.f32 %v883, %v967
    %v969 = vpop.f32.mrb[0].mxu0
    %970 = vdwg.mxu0
    %v971 = vld [vmem:[%s9] sm:$0xff]
    %v972 = vld [vmem:[%s9 + $0x8] sm:$0xff]
    %v973 = vld [vmem:[%s9 + $0x10] sm:$0xff]
    %v974 = vld [vmem:[%s9 + $0x18] sm:$0xff]
    %v975 = vld [vmem:[%s9 + $0x20] sm:$0xff]
    %v976 = vld [vmem:[%s9 + $0x28] sm:$0x1]
    %v977 = vld [vmem:[%s10] sm:$0x1]
    %v979 = vlaneseq
    %v980 = vshrl.u32 %v979, 7
    %v981 = vsub.s32 0, %v980
    %v982 = vrot.slane %v977, %v981
    %v985 = vsel %vm892, %v976, 0
    %987 = vmatprep.subr.mxu0 0.0
    %988 = vmatpush1.msra.mxu0 %v971
    %989 = vmatprep.subr.mxu0 0.0
    %990 = vmatpush1.msra.mxu0 %v972
    %991 = vmatprep.subr.mxu0 0.0
    %992 = vmatpush1.msra.mxu0 %v973
    %993 = vmatprep.subr.mxu0 0.0
    %994 = vmatpush1.msra.mxu0 %v974
    %995 = vmatprep.subr.mxu0 0.0
    %996 = vmatpush1.msra.mxu0 %v975
    %997 = vmatprep.subr.mxu0 0.0
    %998 = vmatpush1.msra.mxu0 %v985
    %999 = vmatprep.subr.mxu0 0.0
    %1000 = vmatpush1.msra.mxu0 0.0
    %1001 = vmatprep.subr.mxu0 0.0
    %1002 = vmatpush1.msra.mxu0 0.0
    %1003 = vmatprep.subr.mxu0 0.0
    %1004 = vmatpush1.msra.mxu0 0.0
    %1005 = vmatprep.subr.mxu0 0.0
    %1006 = vmatpush1.msra.mxu0 0.0
    %1007 = vmatprep.subr.mxu0 0.0
    %1008 = vmatpush1.msra.mxu0 0.0
    %1009 = vmatprep.subr.mxu0 0.0
    %1010 = vmatpush1.msra.mxu0 0.0
    %1011 = vmatprep.subr.mxu0 0.0
    %1012 = vmatpush1.msra.mxu0 0.0
    %1013 = vmatprep.subr.mxu0 0.0
    %1014 = vmatpush1.msra.mxu0 0.0
    %1015 = vmatprep.subr.mxu0 0.0
    %1016 = vmatpush1.msra.mxu0 0.0
    %1017 = vmatprep.subr.mxu0 0.0
    %1018 = vmatpush1.msra.mxu0 0.0
    %1019 = vmatprep.subr.mxu0 0.0
    %1020 = vmatpush1.msra.mxu0 0.0
    %1021 = vmatprep.subr.mxu0 0.0
    %1022 = vmatpush1.msra.mxu0 0.0
    %1023 = vmatprep.subr.mxu0 0.0
    %1024 = vmatpush1.msra.mxu0 0.0
    %1025 = vmatprep.subr.mxu0 0.0
    %1026 = vmatpush1.msra.mxu0 0.0
    %1027 = vmatprep.subr.mxu0 0.0
    %1028 = vmatpush1.msra.mxu0 0.0
    %1029 = vmatprep.subr.mxu0 0.0
    %1030 = vmatpush1.msra.mxu0 0.0
    %1031 = vmatprep.subr.mxu0 0.0
    %1032 = vmatpush1.msra.mxu0 0.0
    %1033 = vmatprep.subr.mxu0 0.0
    %1034 = vmatpush1.msra.mxu0 0.0
    %1035 = vmatprep.subr.mxu0 0.0
    %1036 = vmatpush1.msra.mxu0 0.0
    %1037 = vmatprep.subr.mxu0 0.0
    %1038 = vmatpush1.msra.mxu0 0.0
    %1039 = vmatprep.subr.mxu0 0.0
    %1040 = vmatpush1.msra.mxu0 0.0
    %1041 = vmatprep.subr.mxu0 0.0
    %1042 = vmatpush1.msra.mxu0 0.0
    %1043 = vmatprep.subr.mxu0 0.0
    %1044 = vmatpush1.msra.mxu0 0.0
    %1045 = vmatprep.subr.mxu0 0.0
    %1046 = vmatpush1.msra.mxu0 0.0
    %1047 = vmatprep.subr.mxu0 0.0
    %1048 = vmatpush1.msra.mxu0 0.0
    %1049 = vmatprep.subr.mxu0 0.0
    %1050 = vmatpush1.msra.mxu0 0.0
    %1051 = vmatprep.mubr.f32.mxu0 0.0
    %1052 = vmatmul.mubr.f32.gmra.mrb[0].mxu0 %v887
    %v1053 = vpop.f32.mrb[0].mxu0
    %v1054 = vadd.f32 %v982, %v1053
    %v1055 = vpop.f32.mrb[0].mxu0
    %1056 = vmatprep.mubr.f32.mxu0 0.0
    %1057 = vmatmul.mubr.f32.gmra.mrb[0].mxu0 %v890
    %v1058 = vpop.f32.mrb[0].mxu0
    %v1059 = vadd.f32 %v982, %v1058
    %v1060 = vpop.f32.mrb[0].mxu0
    %1061 = vdwg.mxu0
    %vm1062 = vcmask 64512
    %v1064 = vsel %vm1062, %v871, 0
    %v1067 = vsel %vm1062, %v963, 0
    %v1070 = vsel %vm1062, %v968, 0
    %1072 = vmatprep.subr.mxu0 0.0
    %1073 = vmatpush1.xpose.msra.mxu0 %v1067
    %1074 = vmatprep.subr.mxu0 0.0
    %1075 = vmatpush1.xpose.msra.mxu0 %v1070
    %1076 = vmatprep.subr.mxu0 0.0
    %1077 = vmatpush1.xpose.msra.mxu0 0.0
    %1078 = vmatprep.subr.mxu0 0.0
    %1079 = vmatpush1.xpose.msra.mxu0 0.0
    %1080 = vmatprep.subr.mxu0 0.0
    %1081 = vmatpush1.xpose.msra.mxu0 0.0
    %1082 = vmatprep.subr.mxu0 0.0
    %1083 = vmatpush1.xpose.msra.mxu0 0.0
    %1084 = vmatprep.subr.mxu0 0.0
    %1085 = vmatpush1.xpose.msra.mxu0 0.0
    %1086 = vmatprep.subr.mxu0 0.0
    %1087 = vmatpush1.xpose.msra.mxu0 0.0
    %1088 = vmatprep.subr.mxu0 0.0
    %1089 = vmatpush1.xpose.msra.mxu0 0.0
    %1090 = vmatprep.subr.mxu0 0.0
    %1091 = vmatpush1.xpose.msra.mxu0 0.0
    %1092 = vmatprep.subr.mxu0 0.0
    %1093 = vmatpush1.xpose.msra.mxu0 0.0
    %1094 = vmatprep.subr.mxu0 0.0
    %1095 = vmatpush1.xpose.msra.mxu0 0.0
    %1096 = vmatprep.subr.mxu0 0.0
    %1097 = vmatpush1.xpose.msra.mxu0 0.0
    %1098 = vmatprep.subr.mxu0 0.0
    %1099 = vmatpush1.xpose.msra.mxu0 0.0
    %1100 = vmatprep.subr.mxu0 0.0
    %1101 = vmatpush1.xpose.msra.mxu0 0.0
    %1102 = vmatprep.subr.mxu0 0.0
    %1103 = vmatpush1.xpose.msra.mxu0 0.0
    %1104 = vmatprep.subr.mxu0 0.0
    %1105 = vmatpush1.xpose.msra.mxu0 0.0
    %1106 = vmatprep.subr.mxu0 0.0
    %1107 = vmatpush1.xpose.msra.mxu0 0.0
    %1108 = vmatprep.subr.mxu0 0.0
    %1109 = vmatpush1.xpose.msra.mxu0 0.0
    %1110 = vmatprep.subr.mxu0 0.0
    %1111 = vmatpush1.xpose.msra.mxu0 0.0
    %1112 = vmatprep.subr.mxu0 0.0
    %1113 = vmatpush1.xpose.msra.mxu0 0.0
    %1114 = vmatprep.subr.mxu0 0.0
    %1115 = vmatpush1.xpose.msra.mxu0 0.0
    %1116 = vmatprep.subr.mxu0 0.0
    %1117 = vmatpush1.xpose.msra.mxu0 0.0
    %1118 = vmatprep.subr.mxu0 0.0
    %1119 = vmatpush1.xpose.msra.mxu0 0.0
    %1120 = vmatprep.subr.mxu0 0.0
    %1121 = vmatpush1.xpose.msra.mxu0 0.0
    %1122 = vmatprep.subr.mxu0 0.0
    %1123 = vmatpush1.xpose.msra.mxu0 0.0
    %1124 = vmatprep.subr.mxu0 0.0
    %1125 = vmatpush1.xpose.msra.mxu0 0.0
    %1126 = vmatprep.subr.mxu0 0.0
    %1127 = vmatpush1.xpose.msra.mxu0 0.0
    %1128 = vmatprep.subr.mxu0 0.0
    %1129 = vmatpush1.xpose.msra.mxu0 0.0
    %1130 = vmatprep.subr.mxu0 0.0
    %1131 = vmatpush1.xpose.msra.mxu0 0.0
    %1132 = vmatprep.subr.mxu0 0.0
    %1133 = vmatpush1.xpose.msra.mxu0 0.0
    %1134 = vmatprep.subr.mxu0 0.0
    %1135 = vmatpush1.xpose.msra.mxu0 0.0
    %1136 = vmatprep.mubr.f32.mxu0 0.0
    %1137 = vmatmul.mubr.f32.gmra.mrb[0].mxu0 %v1064
    %v1138 = vpop.f32.mrb[0].mxu0
    %v1139 = vadd.f32 %v96, %v1138
    %v1140 = vpop.f32.mrb[0].mxu0
    %1141 = vdwg.mxu0
    %vm1142 = vcmask 80896
    %v1143 = vsel %vm1142, %v1139, -inf
    %1144 = vmax.xlane.f32.xlu0 %v1143
    %v1145 = vpop.xlane.xlu0 %1144
    %v1146 = vsub.f32 %v1139, %v1145
    %v1147 = vmul.f32 %v1146, 1.442695
    %v1148 = vpow.pop %v1147
    %v1149 = vsel %vm1142, %v1148, 0.0
    %1150 = vadd.xlane.f32.xlu0 %v1149
    %v1151 = vpop.xlane.xlu0 %1150
    %v1152 = vrcp.pop %v1151
    %v1153 = vmul.f32 %v1151, %v1152
    %v1154 = vsub.f32 2.0, %v1153
    %v1155 = vmul.f32 %v1152, %v1154
    %v1156 = vmul.f32 %v1148, %v1155
    %v1158 = vsel %vm1142, %v1156, 0
    %vm1160 = vcmask 1041408
    %v1162 = vsel %vm1160, %v1059, 0
    %1164 = vmatprep.subr.mxu0 0.0
    %1165 = vmatpush1.msra.mxu0 %v1054
    %1166 = vmatprep.subr.mxu0 0.0
    %1167 = vmatpush1.msra.mxu0 %v1162
    %1168 = vmatprep.subr.mxu0 0.0
    %1169 = vmatpush1.msra.mxu0 0.0
    %1170 = vmatprep.subr.mxu0 0.0
    %1171 = vmatpush1.msra.mxu0 0.0
    %1172 = vmatprep.subr.mxu0 0.0
    %1173 = vmatpush1.msra.mxu0 0.0
    %1174 = vmatprep.subr.mxu0 0.0
    %1175 = vmatpush1.msra.mxu0 0.0
    %1176 = vmatprep.subr.mxu0 0.0
    %1177 = vmatpush1.msra.mxu0 0.0
    %1178 = vmatprep.subr.mxu0 0.0
    %1179 = vmatpush1.msra.mxu0 0.0
    %1180 = vmatprep.subr.mxu0 0.0
    %1181 = vmatpush1.msra.mxu0 0.0
    %1182 = vmatprep.subr.mxu0 0.0
    %1183 = vmatpush1.msra.mxu0 0.0
    %1184 = vmatprep.subr.mxu0 0.0
    %1185 = vmatpush1.msra.mxu0 0.0
    %1186 = vmatprep.subr.mxu0 0.0
    %1187 = vmatpush1.msra.mxu0 0.0
    %1188 = vmatprep.subr.mxu0 0.0
    %1189 = vmatpush1.msra.mxu0 0.0
    %1190 = vmatprep.subr.mxu0 0.0
    %1191 = vmatpush1.msra.mxu0 0.0
    %1192 = vmatprep.subr.mxu0 0.0
    %1193 = vmatpush1.msra.mxu0 0.0
    %1194 = vmatprep.subr.mxu0 0.0
    %1195 = vmatpush1.msra.mxu0 0.0
    %1196 = vmatprep.subr.mxu0 0.0
    %1197 = vmatpush1.msra.mxu0 0.0
    %1198 = vmatprep.subr.mxu0 0.0
    %1199 = vmatpush1.msra.mxu0 0.0
    %1200 = vmatprep.subr.mxu0 0.0
    %1201 = vmatpush1.msra.mxu0 0.0
    %1202 = vmatprep.subr.mxu0 0.0
    %1203 = vmatpush1.msra.mxu0 0.0
    %1204 = vmatprep.subr.mxu0 0.0
    %1205 = vmatpush1.msra.mxu0 0.0
    %1206 = vmatprep.subr.mxu0 0.0
    %1207 = vmatpush1.msra.mxu0 0.0
    %1208 = vmatprep.subr.mxu0 0.0
    %1209 = vmatpush1.msra.mxu0 0.0
    %1210 = vmatprep.subr.mxu0 0.0
    %1211 = vmatpush1.msra.mxu0 0.0
    %1212 = vmatprep.subr.mxu0 0.0
    %1213 = vmatpush1.msra.mxu0 0.0
    %1214 = vmatprep.subr.mxu0 0.0
    %1215 = vmatpush1.msra.mxu0 0.0
    %1216 = vmatprep.subr.mxu0 0.0
    %1217 = vmatpush1.msra.mxu0 0.0
    %1218 = vmatprep.subr.mxu0 0.0
    %1219 = vmatpush1.msra.mxu0 0.0
    %1220 = vmatprep.subr.mxu0 0.0
    %1221 = vmatpush1.msra.mxu0 0.0
    %1222 = vmatprep.subr.mxu0 0.0
    %1223 = vmatpush1.msra.mxu0 0.0
    %1224 = vmatprep.subr.mxu0 0.0
    %1225 = vmatpush1.msra.mxu0 0.0
    %1226 = vmatprep.subr.mxu0 0.0
    %1227 = vmatpush1.msra.mxu0 0.0
    %1228 = vmatprep.mubr.f32.mxu0 0.0
    %1229 = vmatmul.mubr.f32.gmra.mrb[0].mxu0 %v1158
    %v1230 = vpop.f32.mrb[0].mxu0
    %v1231 = vadd.f32 0.0, %v1230
    %v1232 = vpop.f32.mrb[0].mxu0
    %1233 = vdwg.mxu0
    %1234 = vrot.lane.b32.xlu0 %v871, 120
    %v1235 = vpop.permute.xlu0 %1234
    %1236 = vrot.lane.b32.xlu0 %v963, 120
    %v1237 = vpop.permute.xlu0 %1236
    %1238 = vrot.lane.b32.xlu0 %v968, 120
    %v1239 = vpop.permute.xlu0 %1238
    %v1240 = vsel %vm1062, %v1235, 0
    %v1242 = vsel %vm1062, %v1237, 0
    %v1244 = vsel %vm1062, %v1239, 0
    %1246 = vmatprep.subr.mxu0 0.0
    %1247 = vmatpush1.xpose.msra.mxu0 %v1242
    %1248 = vmatprep.subr.mxu0 0.0
    %1249 = vmatpush1.xpose.msra.mxu0 %v1244
    %1250 = vmatprep.subr.mxu0 0.0
    %1251 = vmatpush1.xpose.msra.mxu0 0.0
    %1252 = vmatprep.subr.mxu0 0.0
    %1253 = vmatpush1.xpose.msra.mxu0 0.0
    %1254 = vmatprep.subr.mxu0 0.0
    %1255 = vmatpush1.xpose.msra.mxu0 0.0
    %1256 = vmatprep.subr.mxu0 0.0
    %1257 = vmatpush1.xpose.msra.mxu0 0.0
    %1258 = vmatprep.subr.mxu0 0.0
    %1259 = vmatpush1.xpose.msra.mxu0 0.0
    %1260 = vmatprep.subr.mxu0 0.0
    %1261 = vmatpush1.xpose.msra.mxu0 0.0
    %1262 = vmatprep.subr.mxu0 0.0
    %1263 = vmatpush1.xpose.msra.mxu0 0.0
    %1264 = vmatprep.subr.mxu0 0.0
    %1265 = vmatpush1.xpose.msra.mxu0 0.0
    %1266 = vmatprep.subr.mxu0 0.0
    %1267 = vmatpush1.xpose.msra.mxu0 0.0
    %1268 = vmatprep.subr.mxu0 0.0
    %1269 = vmatpush1.xpose.msra.mxu0 0.0
    %1270 = vmatprep.subr.mxu0 0.0
    %1271 = vmatpush1.xpose.msra.mxu0 0.0
    %1272 = vmatprep.subr.mxu0 0.0
    %1273 = vmatpush1.xpose.msra.mxu0 0.0
    %1274 = vmatprep.subr.mxu0 0.0
    %1275 = vmatpush1.xpose.msra.mxu0 0.0
    %1276 = vmatprep.subr.mxu0 0.0
    %1277 = vmatpush1.xpose.msra.mxu0 0.0
    %1278 = vmatprep.subr.mxu0 0.0
    %1279 = vmatpush1.xpose.msra.mxu0 0.0
    %1280 = vmatprep.subr.mxu0 0.0
    %1281 = vmatpush1.xpose.msra.mxu0 0.0
    %1282 = vmatprep.subr.mxu0 0.0
    %1283 = vmatpush1.xpose.msra.mxu0 0.0
    %1284 = vmatprep.subr.mxu0 0.0
    %1285 = vmatpush1.xpose.msra.mxu0 0.0
    %1286 = vmatprep.subr.mxu0 0.0
    %1287 = vmatpush1.xpose.msra.mxu0 0.0
    %1288 = vmatprep.subr.mxu0 0.0
    %1289 = vmatpush1.xpose.msra.mxu0 0.0
    %1290 = vmatprep.subr.mxu0 0.0
    %1291 = vmatpush1.xpose.msra.mxu0 0.0
    %1292 = vmatprep.subr.mxu0 0.0
    %1293 = vmatpush1.xpose.msra.mxu0 0.0
    %1294 = vmatprep.subr.mxu0 0.0
    %1295 = vmatpush1.xpose.msra.mxu0 0.0
    %1296 = vmatprep.subr.mxu0 0.0
    %1297 = vmatpush1.xpose.msra.mxu0 0.0
    %1298 = vmatprep.subr.mxu0 0.0
    %1299 = vmatpush1.xpose.msra.mxu0 0.0
    %1300 = vmatprep.subr.mxu0 0.0
    %1301 = vmatpush1.xpose.msra.mxu0 0.0
    %1302 = vmatprep.subr.mxu0 0.0
    %1303 = vmatpush1.xpose.msra.mxu0 0.0
    %1304 = vmatprep.subr.mxu0 0.0
    %1305 = vmatpush1.xpose.msra.mxu0 0.0
    %1306 = vmatprep.subr.mxu0 0.0
    %1307 = vmatpush1.xpose.msra.mxu0 0.0
    %1308 = vmatprep.subr.mxu0 0.0
    %1309 = vmatpush1.xpose.msra.mxu0 0.0
    %1310 = vmatprep.mubr.f32.mxu0 0.0
    %1311 = vmatmul.mubr.f32.gmra.mrb[0].mxu0 %v1240
    %v1312 = vpop.f32.mrb[0].mxu0
    %v1313 = vadd.f32 %v96, %v1312
    %v1314 = vpop.f32.mrb[0].mxu0
    %1315 = vdwg.mxu0
    %v1316 = vsel %vm1142, %v1313, -inf
    %1317 = vmax.xlane.f32.xlu0 %v1316
    %v1318 = vpop.xlane.xlu0 %1317
    %v1319 = vsub.f32 %v1313, %v1318
    %v1320 = vmul.f32 %v1319, 1.442695
    %v1321 = vpow.pop %v1320
    %v1322 = vsel %vm1142, %v1321, 0.0
    %1323 = vadd.xlane.f32.xlu0 %v1322
    %v1324 = vpop.xlane.xlu0 %1323
    %v1325 = vrcp.pop %v1324
    %v1326 = vmul.f32 %v1324, %v1325
    %v1327 = vsub.f32 2.0, %v1326
    %v1328 = vmul.f32 %v1325, %v1327
    %v1329 = vmul.f32 %v1321, %v1328
    %1331 = vrot.lane.b32.xlu0 %v1054, 120
    %v1332 = vpop.permute.xlu0 %1331
    %1333 = vrot.lane.b32.xlu0 %v1059, 120
    %v1334 = vpop.permute.xlu0 %1333
    %v1337 = vsel %vm1142, %v1329, 0
    %v1339 = vsel %vm1160, %v1334, 0
    %1341 = vmatprep.subr.mxu0 0.0
    %1342 = vmatpush1.msra.mxu0 %v1332
    %1343 = vmatprep.subr.mxu0 0.0
    %1344 = vmatpush1.msra.mxu0 %v1339
    %1345 = vmatprep.subr.mxu0 0.0
    %1346 = vmatpush1.msra.mxu0 0.0
    %1347 = vmatprep.subr.mxu0 0.0
    %1348 = vmatpush1.msra.mxu0 0.0
    %1349 = vmatprep.subr.mxu0 0.0
    %1350 = vmatpush1.msra.mxu0 0.0
    %1351 = vmatprep.subr.mxu0 0.0
    %1352 = vmatpush1.msra.mxu0 0.0
    %1353 = vmatprep.subr.mxu0 0.0
    %1354 = vmatpush1.msra.mxu0 0.0
    %1355 = vmatprep.subr.mxu0 0.0
    %1356 = vmatpush1.msra.mxu0 0.0
    %1357 = vmatprep.subr.mxu0 0.0
    %1358 = vmatpush1.msra.mxu0 0.0
    %1359 = vmatprep.subr.mxu0 0.0
    %1360 = vmatpush1.msra.mxu0 0.0
    %1361 = vmatprep.subr.mxu0 0.0
    %1362 = vmatpush1.msra.mxu0 0.0
    %1363 = vmatprep.subr.mxu0 0.0
    %1364 = vmatpush1.msra.mxu0 0.0
    %1365 = vmatprep.subr.mxu0 0.0
    %1366 = vmatpush1.msra.mxu0 0.0
    %1367 = vmatprep.subr.mxu0 0.0
    %1368 = vmatpush1.msra.mxu0 0.0
    %1369 = vmatprep.subr.mxu0 0.0
    %1370 = vmatpush1.msra.mxu0 0.0
    %1371 = vmatprep.subr.mxu0 0.0
    %1372 = vmatpush1.msra.mxu0 0.0
    %1373 = vmatprep.subr.mxu0 0.0
    %1374 = vmatpush1.msra.mxu0 0.0
    %1375 = vmatprep.subr.mxu0 0.0
    %1376 = vmatpush1.msra.mxu0 0.0
    %1377 = vmatprep.subr.mxu0 0.0
    %1378 = vmatpush1.msra.mxu0 0.0
    %1379 = vmatprep.subr.mxu0 0.0
    %1380 = vmatpush1.msra.mxu0 0.0
    %1381 = vmatprep.subr.mxu0 0.0
    %1382 = vmatpush1.msra.mxu0 0.0
    %1383 = vmatprep.subr.mxu0 0.0
    %1384 = vmatpush1.msra.mxu0 0.0
    %1385 = vmatprep.subr.mxu0 0.0
    %1386 = vmatpush1.msra.mxu0 0.0
    %1387 = vmatprep.subr.mxu0 0.0
    %1388 = vmatpush1.msra.mxu0 0.0
    %1389 = vmatprep.subr.mxu0 0.0
    %1390 = vmatpush1.msra.mxu0 0.0
    %1391 = vmatprep.subr.mxu0 0.0
    %1392 = vmatpush1.msra.mxu0 0.0
    %1393 = vmatprep.subr.mxu0 0.0
    %1394 = vmatpush1.msra.mxu0 0.0
    %1395 = vmatprep.subr.mxu0 0.0
    %1396 = vmatpush1.msra.mxu0 0.0
    %1397 = vmatprep.subr.mxu0 0.0
    %1398 = vmatpush1.msra.mxu0 0.0
    %1399 = vmatprep.subr.mxu0 0.0
    %1400 = vmatpush1.msra.mxu0 0.0
    %1401 = vmatprep.subr.mxu0 0.0
    %1402 = vmatpush1.msra.mxu0 0.0
    %1403 = vmatprep.subr.mxu0 0.0
    %1404 = vmatpush1.msra.mxu0 0.0
    %1405 = vmatprep.mubr.f32.mxu0 0.0
    %1406 = vmatmul.mubr.f32.gmra.mrb[0].mxu0 %v1337
    %v1407 = vpop.f32.mrb[0].mxu0
    %v1408 = vadd.f32 0.0, %v1407
    %v1409 = vpop.f32.mrb[0].mxu0
    %1410 = vdwg.mxu0
    %1411 = vrot.lane.b32.xlu0 %v871, 112
    %v1412 = vpop.permute.xlu0 %1411
    %1413 = vrot.lane.b32.xlu0 %v963, 112
    %v1414 = vpop.permute.xlu0 %1413
    %1415 = vrot.lane.b32.xlu0 %v968, 112
    %v1416 = vpop.permute.xlu0 %1415
    %v1417 = vsel %vm1062, %v1412, 0
    %v1419 = vsel %vm1062, %v1414, 0
    %v1421 = vsel %vm1062, %v1416, 0
    %1423 = vmatprep.subr.mxu0 0.0
    %1424 = vmatpush1.xpose.msra.mxu0 %v1419
    %1425 = vmatprep.subr.mxu0 0.0
    %1426 = vmatpush1.xpose.msra.mxu0 %v1421
    %1427 = vmatprep.subr.mxu0 0.0
    %1428 = vmatpush1.xpose.msra.mxu0 0.0
    %1429 = vmatprep.subr.mxu0 0.0
    %1430 = vmatpush1.xpose.msra.mxu0 0.0
    %1431 = vmatprep.subr.mxu0 0.0
    %1432 = vmatpush1.xpose.msra.mxu0 0.0
    %1433 = vmatprep.subr.mxu0 0.0
    %1434 = vmatpush1.xpose.msra.mxu0 0.0
    %1435 = vmatprep.subr.mxu0 0.0
    %1436 = vmatpush1.xpose.msra.mxu0 0.0
    %1437 = vmatprep.subr.mxu0 0.0
    %1438 = vmatpush1.xpose.msra.mxu0 0.0
    %1439 = vmatprep.subr.mxu0 0.0
    %1440 = vmatpush1.xpose.msra.mxu0 0.0
    %1441 = vmatprep.subr.mxu0 0.0
    %1442 = vmatpush1.xpose.msra.mxu0 0.0
    %1443 = vmatprep.subr.mxu0 0.0
    %1444 = vmatpush1.xpose.msra.mxu0 0.0
    %1445 = vmatprep.subr.mxu0 0.0
    %1446 = vmatpush1.xpose.msra.mxu0 0.0
    %1447 = vmatprep.subr.mxu0 0.0
    %1448 = vmatpush1.xpose.msra.mxu0 0.0
    %1449 = vmatprep.subr.mxu0 0.0
    %1450 = vmatpush1.xpose.msra.mxu0 0.0
    %1451 = vmatprep.subr.mxu0 0.0
    %1452 = vmatpush1.xpose.msra.mxu0 0.0
    %1453 = vmatprep.subr.mxu0 0.0
    %1454 = vmatpush1.xpose.msra.mxu0 0.0
    %1455 = vmatprep.subr.mxu0 0.0
    %1456 = vmatpush1.xpose.msra.mxu0 0.0
    %1457 = vmatprep.subr.mxu0 0.0
    %1458 = vmatpush1.xpose.msra.mxu0 0.0
    %1459 = vmatprep.subr.mxu0 0.0
    %1460 = vmatpush1.xpose.msra.mxu0 0.0
    %1461 = vmatprep.subr.mxu0 0.0
    %1462 = vmatpush1.xpose.msra.mxu0 0.0
    %1463 = vmatprep.subr.mxu0 0.0
    %1464 = vmatpush1.xpose.msra.mxu0 0.0
    %1465 = vmatprep.subr.mxu0 0.0
    %1466 = vmatpush1.xpose.msra.mxu0 0.0
    %1467 = vmatprep.subr.mxu0 0.0
    %1468 = vmatpush1.xpose.msra.mxu0 0.0
    %1469 = vmatprep.subr.mxu0 0.0
    %1470 = vmatpush1.xpose.msra.mxu0 0.0
    %1471 = vmatprep.subr.mxu0 0.0
    %1472 = vmatpush1.xpose.msra.mxu0 0.0
    %1473 = vmatprep.subr.mxu0 0.0
    %1474 = vmatpush1.xpose.msra.mxu0 0.0
    %1475 = vmatprep.subr.mxu0 0.0
    %1476 = vmatpush1.xpose.msra.mxu0 0.0
    %1477 = vmatprep.subr.mxu0 0.0
    %1478 = vmatpush1.xpose.msra.mxu0 0.0
    %1479 = vmatprep.subr.mxu0 0.0
    %1480 = vmatpush1.xpose.msra.mxu0 0.0
    %1481 = vmatprep.subr.mxu0 0.0
    %1482 = vmatpush1.xpose.msra.mxu0 0.0
    %1483 = vmatprep.subr.mxu0 0.0
    %1484 = vmatpush1.xpose.msra.mxu0 0.0
    %1485 = vmatprep.subr.mxu0 0.0
    %1486 = vmatpush1.xpose.msra.mxu0 0.0
    %1487 = vmatprep.mubr.f32.mxu0 0.0
    %1488 = vmatmul.mubr.f32.gmra.mrb[0].mxu0 %v1417
    %v1489 = vpop.f32.mrb[0].mxu0
    %v1490 = vadd.f32 %v96, %v1489
    %v1491 = vpop.f32.mrb[0].mxu0
    %1492 = vdwg.mxu0
    %v1493 = vsel %vm1142, %v1490, -inf
    %1494 = vmax.xlane.f32.xlu0 %v1493
    %v1495 = vpop.xlane.xlu0 %1494
    %v1496 = vsub.f32 %v1490, %v1495
    %v1497 = vmul.f32 %v1496, 1.442695
    %v1498 = vpow.pop %v1497
    %v1499 = vsel %vm1142, %v1498, 0.0
    %1500 = vadd.xlane.f32.xlu0 %v1499
    %v1501 = vpop.xlane.xlu0 %1500
    %v1502 = vrcp.pop %v1501
    %v1503 = vmul.f32 %v1501, %v1502
    %v1504 = vsub.f32 2.0, %v1503
    %v1505 = vmul.f32 %v1502, %v1504
    %v1506 = vmul.f32 %v1498, %v1505
    %1507 = vrot.lane.b32.xlu0 %v1054, 112
    %v1508 = vpop.permute.xlu0 %1507
    %1509 = vrot.lane.b32.xlu0 %v1059, 112
    %v1510 = vpop.permute.xlu0 %1509
    %v1513 = vsel %vm1142, %v1506, 0
    %v1515 = vsel %vm1160, %v1510, 0
    %1517 = vmatprep.subr.mxu0 0.0
    %1518 = vmatpush1.msra.mxu0 %v1508
    %1519 = vmatprep.subr.mxu0 0.0
    %1520 = vmatpush1.msra.mxu0 %v1515
    %1521 = vmatprep.subr.mxu0 0.0
    %1522 = vmatpush1.msra.mxu0 0.0
    %1523 = vmatprep.subr.mxu0 0.0
    %1524 = vmatpush1.msra.mxu0 0.0
    %1525 = vmatprep.subr.mxu0 0.0
    %1526 = vmatpush1.msra.mxu0 0.0
    %1527 = vmatprep.subr.mxu0 0.0
    %1528 = vmatpush1.msra.mxu0 0.0
    %1529 = vmatprep.subr.mxu0 0.0
    %1530 = vmatpush1.msra.mxu0 0.0
    %1531 = vmatprep.subr.mxu0 0.0
    %1532 = vmatpush1.msra.mxu0 0.0
    %1533 = vmatprep.subr.mxu0 0.0
    %1534 = vmatpush1.msra.mxu0 0.0
    %1535 = vmatprep.subr.mxu0 0.0
    %1536 = vmatpush1.msra.mxu0 0.0
    %1537 = vmatprep.subr.mxu0 0.0
    %1538 = vmatpush1.msra.mxu0 0.0
    %1539 = vmatprep.subr.mxu0 0.0
    %1540 = vmatpush1.msra.mxu0 0.0
    %1541 = vmatprep.subr.mxu0 0.0
    %1542 = vmatpush1.msra.mxu0 0.0
    %1543 = vmatprep.subr.mxu0 0.0
    %1544 = vmatpush1.msra.mxu0 0.0
    %1545 = vmatprep.subr.mxu0 0.0
    %1546 = vmatpush1.msra.mxu0 0.0
    %1547 = vmatprep.subr.mxu0 0.0
    %1548 = vmatpush1.msra.mxu0 0.0
    %1549 = vmatprep.subr.mxu0 0.0
    %1550 = vmatpush1.msra.mxu0 0.0
    %1551 = vmatprep.subr.mxu0 0.0
    %1552 = vmatpush1.msra.mxu0 0.0
    %1553 = vmatprep.subr.mxu0 0.0
    %1554 = vmatpush1.msra.mxu0 0.0
    %1555 = vmatprep.subr.mxu0 0.0
    %1556 = vmatpush1.msra.mxu0 0.0
    %1557 = vmatprep.subr.mxu0 0.0
    %1558 = vmatpush1.msra.mxu0 0.0
    %1559 = vmatprep.subr.mxu0 0.0
    %1560 = vmatpush1.msra.mxu0 0.0
    %1561 = vmatprep.subr.mxu0 0.0
    %1562 = vmatpush1.msra.mxu0 0.0
    %1563 = vmatprep.subr.mxu0 0.0
    %1564 = vmatpush1.msra.mxu0 0.0
    %1565 = vmatprep.subr.mxu0 0.0
    %1566 = vmatpush1.msra.mxu0 0.0
    %1567 = vmatprep.subr.mxu0 0.0
    %1568 = vmatpush1.msra.mxu0 0.0
    %1569 = vmatprep.subr.mxu0 0.0
    %1570 = vmatpush1.msra.mxu0 0.0
    %1571 = vmatprep.subr.mxu0 0.0
    %1572 = vmatpush1.msra.mxu0 0.0
    %1573 = vmatprep.subr.mxu0 0.0
    %1574 = vmatpush1.msra.mxu0 0.0
    %1575 = vmatprep.subr.mxu0 0.0
    %1576 = vmatpush1.msra.mxu0 0.0
    %1577 = vmatprep.subr.mxu0 0.0
    %1578 = vmatpush1.msra.mxu0 0.0
    %1579 = vmatprep.subr.mxu0 0.0
    %1580 = vmatpush1.msra.mxu0 0.0
    %1581 = vmatprep.mubr.f32.mxu0 0.0
    %1582 = vmatmul.mubr.f32.gmra.mrb[0].mxu0 %v1513
    %v1583 = vpop.f32.mrb[0].mxu0
    %v1584 = vadd.f32 0.0, %v1583
    %v1585 = vpop.f32.mrb[0].mxu0
    %1586 = vdwg.mxu0
    %1587 = vrot.lane.b32.xlu0 %v871, 104
    %v1588 = vpop.permute.xlu0 %1587
    %1589 = vrot.lane.b32.xlu0 %v963, 104
    %v1590 = vpop.permute.xlu0 %1589
    %1591 = vrot.lane.b32.xlu0 %v968, 104
    %v1592 = vpop.permute.xlu0 %1591
    %v1593 = vsel %vm1062, %v1588, 0
    %v1595 = vsel %vm1062, %v1590, 0
    %v1597 = vsel %vm1062, %v1592, 0
    %1599 = vmatprep.subr.mxu0 0.0
    %1600 = vmatpush1.xpose.msra.mxu0 %v1595
    %1601 = vmatprep.subr.mxu0 0.0
    %1602 = vmatpush1.xpose.msra.mxu0 %v1597
    %1603 = vmatprep.subr.mxu0 0.0
    %1604 = vmatpush1.xpose.msra.mxu0 0.0
    %1605 = vmatprep.subr.mxu0 0.0
    %1606 = vmatpush1.xpose.msra.mxu0 0.0
    %1607 = vmatprep.subr.mxu0 0.0
    %1608 = vmatpush1.xpose.msra.mxu0 0.0
    %1609 = vmatprep.subr.mxu0 0.0
    %1610 = vmatpush1.xpose.msra.mxu0 0.0
    %1611 = vmatprep.subr.mxu0 0.0
    %1612 = vmatpush1.xpose.msra.mxu0 0.0
    %1613 = vmatprep.subr.mxu0 0.0
    %1614 = vmatpush1.xpose.msra.mxu0 0.0
    %1615 = vmatprep.subr.mxu0 0.0
    %1616 = vmatpush1.xpose.msra.mxu0 0.0
    %1617 = vmatprep.subr.mxu0 0.0
    %1618 = vmatpush1.xpose.msra.mxu0 0.0
    %1619 = vmatprep.subr.mxu0 0.0
    %1620 = vmatpush1.xpose.msra.mxu0 0.0
    %1621 = vmatprep.subr.mxu0 0.0
    %1622 = vmatpush1.xpose.msra.mxu0 0.0
    %1623 = vmatprep.subr.mxu0 0.0
    %1624 = vmatpush1.xpose.msra.mxu0 0.0
    %1625 = vmatprep.subr.mxu0 0.0
    %1626 = vmatpush1.xpose.msra.mxu0 0.0
    %1627 = vmatprep.subr.mxu0 0.0
    %1628 = vmatpush1.xpose.msra.mxu0 0.0
    %1629 = vmatprep.subr.mxu0 0.0
    %1630 = vmatpush1.xpose.msra.mxu0 0.0
    %1631 = vmatprep.subr.mxu0 0.0
    %1632 = vmatpush1.xpose.msra.mxu0 0.0
    %1633 = vmatprep.subr.mxu0 0.0
    %1634 = vmatpush1.xpose.msra.mxu0 0.0
    %1635 = vmatprep.subr.mxu0 0.0
    %1636 = vmatpush1.xpose.msra.mxu0 0.0
    %1637 = vmatprep.subr.mxu0 0.0
    %1638 = vmatpush1.xpose.msra.mxu0 0.0
    %1639 = vmatprep.subr.mxu0 0.0
    %1640 = vmatpush1.xpose.msra.mxu0 0.0
    %1641 = vmatprep.subr.mxu0 0.0
    %1642 = vmatpush1.xpose.msra.mxu0 0.0
    %1643 = vmatprep.subr.mxu0 0.0
    %1644 = vmatpush1.xpose.msra.mxu0 0.0
    %1645 = vmatprep.subr.mxu0 0.0
    %1646 = vmatpush1.xpose.msra.mxu0 0.0
    %1647 = vmatprep.subr.mxu0 0.0
    %1648 = vmatpush1.xpose.msra.mxu0 0.0
    %1649 = vmatprep.subr.mxu0 0.0
    %1650 = vmatpush1.xpose.msra.mxu0 0.0
    %1651 = vmatprep.subr.mxu0 0.0
    %1652 = vmatpush1.xpose.msra.mxu0 0.0
    %1653 = vmatprep.subr.mxu0 0.0
    %1654 = vmatpush1.xpose.msra.mxu0 0.0
    %1655 = vmatprep.subr.mxu0 0.0
    %1656 = vmatpush1.xpose.msra.mxu0 0.0
    %1657 = vmatprep.subr.mxu0 0.0
    %1658 = vmatpush1.xpose.msra.mxu0 0.0
    %1659 = vmatprep.subr.mxu0 0.0
    %1660 = vmatpush1.xpose.msra.mxu0 0.0
    %1661 = vmatprep.subr.mxu0 0.0
    %1662 = vmatpush1.xpose.msra.mxu0 0.0
    %1663 = vmatprep.mubr.f32.mxu0 0.0
    %1664 = vmatmul.mubr.f32.gmra.mrb[0].mxu0 %v1593
    %v1665 = vpop.f32.mrb[0].mxu0
    %v1666 = vadd.f32 %v96, %v1665
    %v1667 = vpop.f32.mrb[0].mxu0
    %1668 = vdwg.mxu0
    %v1669 = vsel %vm1142, %v1666, -inf
    %1670 = vmax.xlane.f32.xlu0 %v1669
    %v1671 = vpop.xlane.xlu0 %1670
    %v1672 = vsub.f32 %v1666, %v1671
    %v1673 = vmul.f32 %v1672, 1.442695
    %v1674 = vpow.pop %v1673
    %v1675 = vsel %vm1142, %v1674, 0.0
    %1676 = vadd.xlane.f32.xlu0 %v1675
    %v1677 = vpop.xlane.xlu0 %1676
    %v1678 = vrcp.pop %v1677
    %v1679 = vmul.f32 %v1677, %v1678
    %v1680 = vsub.f32 2.0, %v1679
    %v1681 = vmul.f32 %v1678, %v1680
    %v1682 = vmul.f32 %v1674, %v1681
    %1683 = vrot.lane.b32.xlu0 %v1054, 104
    %v1684 = vpop.permute.xlu0 %1683
    %1685 = vrot.lane.b32.xlu0 %v1059, 104
    %v1686 = vpop.permute.xlu0 %1685
    %v1689 = vsel %vm1142, %v1682, 0
    %v1691 = vsel %vm1160, %v1686, 0
    %1693 = vmatprep.subr.mxu0 0.0
    %1694 = vmatpush1.msra.mxu0 %v1684
    %1695 = vmatprep.subr.mxu0 0.0
    %1696 = vmatpush1.msra.mxu0 %v1691
    %1697 = vmatprep.subr.mxu0 0.0
    %1698 = vmatpush1.msra.mxu0 0.0
    %1699 = vmatprep.subr.mxu0 0.0
    %1700 = vmatpush1.msra.mxu0 0.0
    %1701 = vmatprep.subr.mxu0 0.0
    %1702 = vmatpush1.msra.mxu0 0.0
    %1703 = vmatprep.subr.mxu0 0.0
    %1704 = vmatpush1.msra.mxu0 0.0
    %1705 = vmatprep.subr.mxu0 0.0
    %1706 = vmatpush1.msra.mxu0 0.0
    %1707 = vmatprep.subr.mxu0 0.0
    %1708 = vmatpush1.msra.mxu0 0.0
    %1709 = vmatprep.subr.mxu0 0.0
    %1710 = vmatpush1.msra.mxu0 0.0
    %1711 = vmatprep.subr.mxu0 0.0
    %1712 = vmatpush1.msra.mxu0 0.0
    %1713 = vmatprep.subr.mxu0 0.0
    %1714 = vmatpush1.msra.mxu0 0.0
    %1715 = vmatprep.subr.mxu0 0.0
    %1716 = vmatpush1.msra.mxu0 0.0
    %1717 = vmatprep.subr.mxu0 0.0
    %1718 = vmatpush1.msra.mxu0 0.0
    %1719 = vmatprep.subr.mxu0 0.0
    %1720 = vmatpush1.msra.mxu0 0.0
    %1721 = vmatprep.subr.mxu0 0.0
    %1722 = vmatpush1.msra.mxu0 0.0
    %1723 = vmatprep.subr.mxu0 0.0
    %1724 = vmatpush1.msra.mxu0 0.0
    %1725 = vmatprep.subr.mxu0 0.0
    %1726 = vmatpush1.msra.mxu0 0.0
    %1727 = vmatprep.subr.mxu0 0.0
    %1728 = vmatpush1.msra.mxu0 0.0
    %1729 = vmatprep.subr.mxu0 0.0
    %1730 = vmatpush1.msra.mxu0 0.0
    %1731 = vmatprep.subr.mxu0 0.0
    %1732 = vmatpush1.msra.mxu0 0.0
    %1733 = vmatprep.subr.mxu0 0.0
    %1734 = vmatpush1.msra.mxu0 0.0
    %1735 = vmatprep.subr.mxu0 0.0
    %1736 = vmatpush1.msra.mxu0 0.0
    %1737 = vmatprep.subr.mxu0 0.0
    %1738 = vmatpush1.msra.mxu0 0.0
    %1739 = vmatprep.subr.mxu0 0.0
    %1740 = vmatpush1.msra.mxu0 0.0
    %1741 = vmatprep.subr.mxu0 0.0
    %1742 = vmatpush1.msra.mxu0 0.0
    %1743 = vmatprep.subr.mxu0 0.0
    %1744 = vmatpush1.msra.mxu0 0.0
    %1745 = vmatprep.subr.mxu0 0.0
    %1746 = vmatpush1.msra.mxu0 0.0
    %1747 = vmatprep.subr.mxu0 0.0
    %1748 = vmatpush1.msra.mxu0 0.0
    %1749 = vmatprep.subr.mxu0 0.0
    %1750 = vmatpush1.msra.mxu0 0.0
    %1751 = vmatprep.subr.mxu0 0.0
    %1752 = vmatpush1.msra.mxu0 0.0
    %1753 = vmatprep.subr.mxu0 0.0
    %1754 = vmatpush1.msra.mxu0 0.0
    %1755 = vmatprep.subr.mxu0 0.0
    %1756 = vmatpush1.msra.mxu0 0.0
    %1757 = vmatprep.mubr.f32.mxu0 0.0
    %1758 = vmatmul.mubr.f32.gmra.mrb[0].mxu0 %v1689
    %v1759 = vpop.f32.mrb[0].mxu0
    %v1760 = vadd.f32 0.0, %v1759
    %v1761 = vpop.f32.mrb[0].mxu0
    %1762 = vdwg.mxu0
    %1764 = vrot.lane.b32.xlu0 %v1408, 8
    %v1765 = vpop.permute.xlu0 %1764
    %1768 = vrot.lane.b32.xlu0 %v1584, 16
    %v1769 = vpop.permute.xlu0 %1768
    %1772 = vrot.lane.b32.xlu0 %v1760, 24
    %v1773 = vpop.permute.xlu0 %1772
    %v1775 = vsel %vm1062, %v1231, %v1765
    %vm1776 = vcmask 130048
    %v1777 = vsel %vm1776, %v1775, %v1769
    %vm1778 = vcmask 195584
    %v1779 = vsel %vm1778, %v1777, %v1773
    %v1780 = vld [vmem:[%s11] sm:$0xff]
    %v1781 = vld [vmem:[%s11 + $0x8] sm:$0xff]
    %v1782 = vld [vmem:[%s11 + $0x10] sm:$0xff]
    %v1783 = vld [vmem:[%s11 + $0x18] sm:$0xff]
    %v1784 = vld [vmem:[%s12] sm:$0x1]
    %v1786 = vlaneseq
    %v1787 = vshrl.u32 %v1786, 7
    %v1788 = vsub.s32 0, %v1787
    %v1789 = vrot.slane %v1784, %v1788
    %v1792 = vsel %vm293, %v1779, 0
    %1794 = vmatprep.subr.mxu0 0.0
    %1795 = vmatpush1.msra.mxu0 %v1780
    %1796 = vmatprep.subr.mxu0 0.0
    %1797 = vmatpush1.msra.mxu0 %v1781
    %1798 = vmatprep.subr.mxu0 0.0
    %1799 = vmatpush1.msra.mxu0 %v1782
    %1800 = vmatprep.subr.mxu0 0.0
    %1801 = vmatpush1.msra.mxu0 %v1783
    %1802 = vmatprep.subr.mxu0 0.0
    %1803 = vmatpush1.msra.mxu0 0.0
    %1804 = vmatprep.subr.mxu0 0.0
    %1805 = vmatpush1.msra.mxu0 0.0
    %1806 = vmatprep.subr.mxu0 0.0
    %1807 = vmatpush1.msra.mxu0 0.0
    %1808 = vmatprep.subr.mxu0 0.0
    %1809 = vmatpush1.msra.mxu0 0.0
    %1810 = vmatprep.subr.mxu0 0.0
    %1811 = vmatpush1.msra.mxu0 0.0
    %1812 = vmatprep.subr.mxu0 0.0
    %1813 = vmatpush1.msra.mxu0 0.0
    %1814 = vmatprep.subr.mxu0 0.0
    %1815 = vmatpush1.msra.mxu0 0.0
    %1816 = vmatprep.subr.mxu0 0.0
    %1817 = vmatpush1.msra.mxu0 0.0
    %1818 = vmatprep.subr.mxu0 0.0
    %1819 = vmatpush1.msra.mxu0 0.0
    %1820 = vmatprep.subr.mxu0 0.0
    %1821 = vmatpush1.msra.mxu0 0.0
    %1822 = vmatprep.subr.mxu0 0.0
    %1823 = vmatpush1.msra.mxu0 0.0
    %1824 = vmatprep.subr.mxu0 0.0
    %1825 = vmatpush1.msra.mxu0 0.0
    %1826 = vmatprep.subr.mxu0 0.0
    %1827 = vmatpush1.msra.mxu0 0.0
    %1828 = vmatprep.subr.mxu0 0.0
    %1829 = vmatpush1.msra.mxu0 0.0
    %1830 = vmatprep.subr.mxu0 0.0
    %1831 = vmatpush1.msra.mxu0 0.0
    %1832 = vmatprep.subr.mxu0 0.0
    %1833 = vmatpush1.msra.mxu0 0.0
    %1834 = vmatprep.subr.mxu0 0.0
    %1835 = vmatpush1.msra.mxu0 0.0
    %1836 = vmatprep.subr.mxu0 0.0
    %1837 = vmatpush1.msra.mxu0 0.0
    %1838 = vmatprep.subr.mxu0 0.0
    %1839 = vmatpush1.msra.mxu0 0.0
    %1840 = vmatprep.subr.mxu0 0.0
    %1841 = vmatpush1.msra.mxu0 0.0
    %1842 = vmatprep.subr.mxu0 0.0
    %1843 = vmatpush1.msra.mxu0 0.0
    %1844 = vmatprep.subr.mxu0 0.0
    %1845 = vmatpush1.msra.mxu0 0.0
    %1846 = vmatprep.subr.mxu0 0.0
    %1847 = vmatpush1.msra.mxu0 0.0
    %1848 = vmatprep.subr.mxu0 0.0
    %1849 = vmatpush1.msra.mxu0 0.0
    %1850 = vmatprep.subr.mxu0 0.0
    %1851 = vmatpush1.msra.mxu0 0.0
    %1852 = vmatprep.subr.mxu0 0.0
    %1853 = vmatpush1.msra.mxu0 0.0
    %1854 = vmatprep.subr.mxu0 0.0
    %1855 = vmatpush1.msra.mxu0 0.0
    %1856 = vmatprep.subr.mxu0 0.0
    %1857 = vmatpush1.msra.mxu0 0.0
    %1858 = vmatprep.mubr.f32.mxu0 0.0
    %1859 = vmatmul.mubr.f32.gmra.mrb[0].mxu0 %v1792
    %v1860 = vpop.f32.mrb[0].mxu0
    %v1861 = vadd.f32 %v1789, %v1860
    %v1862 = vpop.f32.mrb[0].mxu0
    %1863 = vdwg.mxu0
    %v1864 = vadd.f32 %v784, %v1861
    %v1865 = vld [vmem:[%s17] sm:$0x1]
    %v1866 = vld [vmem:[%s18] sm:$0x1]
    %v1867 = vsel %vm293, %v1864, 0.0
    %1868 = vadd.xlane.f32.xlu0 %v1867
    %v1869 = vpop.xlane.xlu0 %1868
    %v1870 = vrcp.pop 32.0
    %v1871 = vmul.f32 %v1869, %v1870
    %v1872 = vsub.f32 %v1864, %v1871
    %v1873 = vmul.f32 %v1872, %v1872
    %v1874 = vsel %vm293, %v1873, 0.0
    %1875 = vadd.xlane.f32.xlu0 %v1874
    %v1876 = vpop.xlane.xlu0 %1875
    %v1877 = vmul.f32 %v1876, %v1870
    %v1878 = vadd.f32 %v1877, 1e-05
    %v1879 = vrsqrt.pop %v1878
    %v1880 = vmul.f32 %v1872, %v1879
    %v1882 = vlaneseq
    %v1883 = vshrl.u32 %v1882, 7
    %v1884 = vsub.s32 0, %v1883
    %v1885 = vrot.slane %v1865, %v1884
    %v1887 = vmul.f32 %v1880, %v1885
    %v1889 = vlaneseq
    %v1890 = vshrl.u32 %v1889, 7
    %v1891 = vsub.s32 0, %v1890
    %v1892 = vrot.slane %v1866, %v1891
    %v1894 = vadd.f32 %v1887, %v1892
    %v1895 = vld [vmem:[%s13] sm:$0xff]
    %v1896 = vld [vmem:[%s13 + $0x8] sm:$0xff]
    %v1897 = vld [vmem:[%s13 + $0x10] sm:$0xff]
    %v1898 = vld [vmem:[%s13 + $0x18] sm:$0xff]
    %v1899 = vld [vmem:[%s14] sm:$0x1]
    %v1901 = vlaneseq
    %v1902 = vshrl.u32 %v1901, 7
    %v1903 = vsub.s32 0, %v1902
    %v1904 = vrot.slane %v1899, %v1903
    %v1907 = vsel %vm293, %v1894, 0
    %1909 = vmatprep.subr.mxu0 0.0
    %1910 = vmatpush1.msra.mxu0 %v1895
    %1911 = vmatprep.subr.mxu0 0.0
    %1912 = vmatpush1.msra.mxu0 %v1896
    %1913 = vmatprep.subr.mxu0 0.0
    %1914 = vmatpush1.msra.mxu0 %v1897
    %1915 = vmatprep.subr.mxu0 0.0
    %1916 = vmatpush1.msra.mxu0 %v1898
    %1917 = vmatprep.subr.mxu0 0.0
    %1918 = vmatpush1.msra.mxu0 0.0
    %1919 = vmatprep.subr.mxu0 0.0
    %1920 = vmatpush1.msra.mxu0 0.0
    %1921 = vmatprep.subr.mxu0 0.0
    %1922 = vmatpush1.msra.mxu0 0.0
    %1923 = vmatprep.subr.mxu0 0.0
    %1924 = vmatpush1.msra.mxu0 0.0
    %1925 = vmatprep.subr.mxu0 0.0
    %1926 = vmatpush1.msra.mxu0 0.0
    %1927 = vmatprep.subr.mxu0 0.0
    %1928 = vmatpush1.msra.mxu0 0.0
    %1929 = vmatprep.subr.mxu0 0.0
    %1930 = vmatpush1.msra.mxu0 0.0
    %1931 = vmatprep.subr.mxu0 0.0
    %1932 = vmatpush1.msra.mxu0 0.0
    %1933 = vmatprep.subr.mxu0 0.0
    %1934 = vmatpush1.msra.mxu0 0.0
    %1935 = vmatprep.subr.mxu0 0.0
    %1936 = vmatpush1.msra.mxu0 0.0
    %1937 = vmatprep.subr.mxu0 0.0
    %1938 = vmatpush1.msra.mxu0 0.0
    %1939 = vmatprep.subr.mxu0 0.0
    %1940 = vmatpush1.msra.mxu0 0.0
    %1941 = vmatprep.subr.mxu0 0.0
    %1942 = vmatpush1.msra.mxu0 0.0
    %1943 = vmatprep.subr.mxu0 0.0
    %1944 = vmatpush1.msra.mxu0 0.0
    %1945 = vmatprep.subr.mxu0 0.0
    %1946 = vmatpush1.msra.mxu0 0.0
    %1947 = vmatprep.subr.mxu0 0.0
    %1948 = vmatpush1.msra.mxu0 0.0
    %1949 = vmatprep.subr.mxu0 0.0
    %1950 = vmatpush1.msra.mxu0 0.0
    %1951 = vmatprep.subr.mxu0 0.0
    %1952 = vmatpush1.msra.mxu0 0.0
    %1953 = vmatprep.subr.mxu0 0.0
    %1954 = vmatpush1.msra.mxu0 0.0
    %1955 = vmatprep.subr.mxu0 0.0
    %1956 = vmatpush1.msra.mxu0 0.0
    %1957 = vmatprep.subr.mxu0 0.0
    %1958 = vmatpush1.msra.mxu0 0.0
    %1959 = vmatprep.subr.mxu0 0.0
    %1960 = vmatpush1.msra.mxu0 0.0
    %1961 = vmatprep.subr.mxu0 0.0
    %1962 = vmatpush1.msra.mxu0 0.0
    %1963 = vmatprep.subr.mxu0 0.0
    %1964 = vmatpush1.msra.mxu0 0.0
    %1965 = vmatprep.subr.mxu0 0.0
    %1966 = vmatpush1.msra.mxu0 0.0
    %1967 = vmatprep.subr.mxu0 0.0
    %1968 = vmatpush1.msra.mxu0 0.0
    %1969 = vmatprep.subr.mxu0 0.0
    %1970 = vmatpush1.msra.mxu0 0.0
    %1971 = vmatprep.subr.mxu0 0.0
    %1972 = vmatpush1.msra.mxu0 0.0
    %1973 = vmatprep.mubr.f32.mxu0 0.0
    %1974 = vmatmul.mubr.f32.gmra.mrb[0].mxu0 %v1907
    %v1975 = vpop.f32.mrb[0].mxu0
    %v1976 = vadd.f32 %v1904, %v1975
    %v1977 = vpop.f32.mrb[0].mxu0
    %1978 = vdwg.mxu0
    %v1979 = vmax.f32 %v1976, 0.0
    %v1980 = vld [vmem:[%s15] sm:$0xff]
    %v1981 = vld [vmem:[%s15 + $0x8] sm:$0xff]
    %v1982 = vld [vmem:[%s15 + $0x10] sm:$0xff]
    %v1983 = vld [vmem:[%s15 + $0x18] sm:$0xff]
    %v1984 = vld [vmem:[%s15 + $0x20] sm:$0xff]
    %v1985 = vld [vmem:[%s15 + $0x28] sm:$0xff]
    %v1986 = vld [vmem:[%s15 + $0x30] sm:$0xff]
    %v1987 = vld [vmem:[%s15 + $0x38] sm:$0xff]
    %vm1988 = vcmask 523264
    %v1990 = vsel %vm1988, %v1979, 0
    %1992 = vmatprep.subr.mxu0 0.0
    %1993 = vmatpush1.msra.mxu0 %v1980
    %1994 = vmatprep.subr.mxu0 0.0
    %1995 = vmatpush1.msra.mxu0 %v1981
    %1996 = vmatprep.subr.mxu0 0.0
    %1997 = vmatpush1.msra.mxu0 %v1982
    %1998 = vmatprep.subr.mxu0 0.0
    %1999 = vmatpush1.msra.mxu0 %v1983
    %2000 = vmatprep.subr.mxu0 0.0
    %2001 = vmatpush1.msra.mxu0 %v1984
    %2002 = vmatprep.subr.mxu0 0.0
    %2003 = vmatpush1.msra.mxu0 %v1985
    %2004 = vmatprep.subr.mxu0 0.0
    %2005 = vmatpush1.msra.mxu0 %v1986
    %2006 = vmatprep.subr.mxu0 0.0
    %2007 = vmatpush1.msra.mxu0 %v1987
    %2008 = vmatprep.subr.mxu0 0.0
    %2009 = vmatpush1.msra.mxu0 0.0
    %2010 = vmatprep.subr.mxu0 0.0
    %2011 = vmatpush1.msra.mxu0 0.0
    %2012 = vmatprep.subr.mxu0 0.0
    %2013 = vmatpush1.msra.mxu0 0.0
    %2014 = vmatprep.subr.mxu0 0.0
    %2015 = vmatpush1.msra.mxu0 0.0
    %2016 = vmatprep.subr.mxu0 0.0
    %2017 = vmatpush1.msra.mxu0 0.0
    %2018 = vmatprep.subr.mxu0 0.0
    %2019 = vmatpush1.msra.mxu0 0.0
    %2020 = vmatprep.subr.mxu0 0.0
    %2021 = vmatpush1.msra.mxu0 0.0
    %2022 = vmatprep.subr.mxu0 0.0
    %2023 = vmatpush1.msra.mxu0 0.0
    %2024 = vmatprep.subr.mxu0 0.0
    %2025 = vmatpush1.msra.mxu0 0.0
    %2026 = vmatprep.subr.mxu0 0.0
    %2027 = vmatpush1.msra.mxu0 0.0
    %2028 = vmatprep.subr.mxu0 0.0
    %2029 = vmatpush1.msra.mxu0 0.0
    %2030 = vmatprep.subr.mxu0 0.0
    %2031 = vmatpush1.msra.mxu0 0.0
    %2032 = vmatprep.subr.mxu0 0.0
    %2033 = vmatpush1.msra.mxu0 0.0
    %2034 = vmatprep.subr.mxu0 0.0
    %2035 = vmatpush1.msra.mxu0 0.0
    %2036 = vmatprep.subr.mxu0 0.0
    %2037 = vmatpush1.msra.mxu0 0.0
    %2038 = vmatprep.subr.mxu0 0.0
    %2039 = vmatpush1.msra.mxu0 0.0
    %2040 = vmatprep.subr.mxu0 0.0
    %2041 = vmatpush1.msra.mxu0 0.0
    %2042 = vmatprep.subr.mxu0 0.0
    %2043 = vmatpush1.msra.mxu0 0.0
    %2044 = vmatprep.subr.mxu0 0.0
    %2045 = vmatpush1.msra.mxu0 0.0
    %2046 = vmatprep.subr.mxu0 0.0
    %2047 = vmatpush1.msra.mxu0 0.0
    %2048 = vmatprep.subr.mxu0 0.0
    %2049 = vmatpush1.msra.mxu0 0.0
    %2050 = vmatprep.subr.mxu0 0.0
    %2051 = vmatpush1.msra.mxu0 0.0
    %2052 = vmatprep.subr.mxu0 0.0
    %2053 = vmatpush1.msra.mxu0 0.0
    %2054 = vmatprep.subr.mxu0 0.0
    %2055 = vmatpush1.msra.mxu0 0.0
    %2056 = vmatprep.mubr.f32.mxu0 0.0
    %2057 = vmatmul.mubr.f32.gmra.mrb[0].mxu0 %v1990
    %v2058 = vpop.f32.mrb[0].mxu0
    %v2059 = vadd.f32 0.0, %v2058
    %v2060 = vpop.f32.mrb[0].mxu0
    %2061 = vdwg.mxu0
    %v2062 = vadd.f32 %v1894, %v2059
    %v2063 = vld [vmem:[%s16] sm:$0x1]
    %v2065 = vlaneseq
    %v2066 = vshrl.u32 %v2065, 7
    %v2067 = vsub.s32 0, %v2066
    %v2068 = vrot.slane %v2063, %v2067
    %v2070 = vadd.f32 %v2062, %v2068
    %v2071 = vld [vmem:[%s19] sm:$0x1]
    %v2072 = vld [vmem:[%s20] sm:$0x1]
    %v2073 = vsel %vm293, %v2070, 0.0
    %2074 = vadd.xlane.f32.xlu0 %v2073
    %v2075 = vpop.xlane.xlu0 %2074
    %v2076 = vmul.f32 %v2075, %v1870
    %v2077 = vsub.f32 %v2070, %v2076
    %v2078 = vmul.f32 %v2077, %v2077
    %v2079 = vsel %vm293, %v2078, 0.0
    %2080 = vadd.xlane.f32.xlu0 %v2079
    %v2081 = vpop.xlane.xlu0 %2080
    %v2082 = vmul.f32 %v2081, %v1870
    %v2083 = vadd.f32 %v2082, 1e-05
    %v2084 = vrsqrt.pop %v2083
    %v2085 = vmul.f32 %v2077, %v2084
    %v2087 = vlaneseq
    %v2088 = vshrl.u32 %v2087, 7
    %v2089 = vsub.s32 0, %v2088
    %v2090 = vrot.slane %v2071, %v2089
    %v2092 = vmul.f32 %v2085, %v2090
    %v2094 = vlaneseq
    %v2095 = vshrl.u32 %v2094, 7
    %v2096 = vsub.s32 0, %v2095
    %v2097 = vrot.slane %v2072, %v2096
    %v2099 = vadd.f32 %v2092, %v2097
    %s2100 = scalar_lea.vmem %s5, 32
    %v2101 = vld [vmem:[%s2100] sm:$0xff]
    %v2102 = vld [vmem:[%s2100 + $0x8] sm:$0xff]
    %v2103 = vld [vmem:[%s2100 + $0x10] sm:$0xff]
    %v2104 = vld [vmem:[%s2100 + $0x18] sm:$0xff]
    %s2105 = scalar_lea.vmem %s6, 1
    %v2106 = vld [vmem:[%s2105] sm:$0x1]
    %v2108 = vlaneseq
    %v2109 = vshrl.u32 %v2108, 7
    %v2110 = vsub.s32 0, %v2109
    %v2111 = vrot.slane %v2106, %v2110
    %v2114 = vsel %vm293, %v2099, 0
    %2116 = vmatprep.subr.mxu0 0.0
    %2117 = vmatpush1.msra.mxu0 %v2101
    %2118 = vmatprep.subr.mxu0 0.0
    %2119 = vmatpush1.msra.mxu0 %v2102
    %2120 = vmatprep.subr.mxu0 0.0
    %2121 = vmatpush1.msra.mxu0 %v2103
    %2122 = vmatprep.subr.mxu0 0.0
    %2123 = vmatpush1.msra.mxu0 %v2104
    %2124 = vmatprep.subr.mxu0 0.0
    %2125 = vmatpush1.msra.mxu0 0.0
    %2126 = vmatprep.subr.mxu0 0.0
    %2127 = vmatpush1.msra.mxu0 0.0
    %2128 = vmatprep.subr.mxu0 0.0
    %2129 = vmatpush1.msra.mxu0 0.0
    %2130 = vmatprep.subr.mxu0 0.0
    %2131 = vmatpush1.msra.mxu0 0.0
    %2132 = vmatprep.subr.mxu0 0.0
    %2133 = vmatpush1.msra.mxu0 0.0
    %2134 = vmatprep.subr.mxu0 0.0
    %2135 = vmatpush1.msra.mxu0 0.0
    %2136 = vmatprep.subr.mxu0 0.0
    %2137 = vmatpush1.msra.mxu0 0.0
    %2138 = vmatprep.subr.mxu0 0.0
    %2139 = vmatpush1.msra.mxu0 0.0
    %2140 = vmatprep.subr.mxu0 0.0
    %2141 = vmatpush1.msra.mxu0 0.0
    %2142 = vmatprep.subr.mxu0 0.0
    %2143 = vmatpush1.msra.mxu0 0.0
    %2144 = vmatprep.subr.mxu0 0.0
    %2145 = vmatpush1.msra.mxu0 0.0
    %2146 = vmatprep.subr.mxu0 0.0
    %2147 = vmatpush1.msra.mxu0 0.0
    %2148 = vmatprep.subr.mxu0 0.0
    %2149 = vmatpush1.msra.mxu0 0.0
    %2150 = vmatprep.subr.mxu0 0.0
    %2151 = vmatpush1.msra.mxu0 0.0
    %2152 = vmatprep.subr.mxu0 0.0
    %2153 = vmatpush1.msra.mxu0 0.0
    %2154 = vmatprep.subr.mxu0 0.0
    %2155 = vmatpush1.msra.mxu0 0.0
    %2156 = vmatprep.subr.mxu0 0.0
    %2157 = vmatpush1.msra.mxu0 0.0
    %2158 = vmatprep.subr.mxu0 0.0
    %2159 = vmatpush1.msra.mxu0 0.0
    %2160 = vmatprep.subr.mxu0 0.0
    %2161 = vmatpush1.msra.mxu0 0.0
    %2162 = vmatprep.subr.mxu0 0.0
    %2163 = vmatpush1.msra.mxu0 0.0
    %2164 = vmatprep.subr.mxu0 0.0
    %2165 = vmatpush1.msra.mxu0 0.0
    %2166 = vmatprep.subr.mxu0 0.0
    %2167 = vmatpush1.msra.mxu0 0.0
    %2168 = vmatprep.subr.mxu0 0.0
    %2169 = vmatpush1.msra.mxu0 0.0
    %2170 = vmatprep.subr.mxu0 0.0
    %2171 = vmatpush1.msra.mxu0 0.0
    %2172 = vmatprep.subr.mxu0 0.0
    %2173 = vmatpush1.msra.mxu0 0.0
    %2174 = vmatprep.subr.mxu0 0.0
    %2175 = vmatpush1.msra.mxu0 0.0
    %2176 = vmatprep.subr.mxu0 0.0
    %2177 = vmatpush1.msra.mxu0 0.0
    %2178 = vmatprep.subr.mxu0 0.0
    %2179 = vmatpush1.msra.mxu0 0.0
    %2180 = vmatprep.mubr.f32.mxu0 0.0
    %2181 = vmatmul.mubr.f32.gmra.mrb[0].mxu0 %v2114
    %v2182 = vpop.f32.mrb[0].mxu0
    %v2183 = vadd.f32 %v2111, %v2182
    %v2184 = vpop.f32.mrb[0].mxu0
    %2185 = vdwg.mxu0
    %v2186 = vmul.f32 %v2183, 0.35355338
    %s2187 = scalar_lea.vmem %s7, 48
    %v2188 = vld [vmem:[%s2187] sm:$0xff]
    %v2189 = vld [vmem:[%s2187 + $0x8] sm:$0xff]
    %v2190 = vld [vmem:[%s2187 + $0x10] sm:$0xff]
    %v2191 = vld [vmem:[%s2187 + $0x18] sm:$0xff]
    %v2192 = vld [vmem:[%s2187 + $0x20] sm:$0xff]
    %v2193 = vld [vmem:[%s2187 + $0x28] sm:$0x1]
    %s2194 = scalar_lea.vmem %s8, 1
    %v2195 = vld [vmem:[%s2194] sm:$0x1]
    %v2197 = vlaneseq
    %v2198 = vshrl.u32 %v2197, 7
    %v2199 = vsub.s32 0, %v2198
    %v2200 = vrot.slane %v2195, %v2199
    %v2203 = vsel %vm892, %v2193, 0
    %2205 = vmatprep.subr.mxu0 0.0
    %2206 = vmatpush1.msra.mxu0 %v2188
    %2207 = vmatprep.subr.mxu0 0.0
    %2208 = vmatpush1.msra.mxu0 %v2189
    %2209 = vmatprep.subr.mxu0 0.0
    %2210 = vmatpush1.msra.mxu0 %v2190
    %2211 = vmatprep.subr.mxu0 0.0
    %2212 = vmatpush1.msra.mxu0 %v2191
    %2213 = vmatprep.subr.mxu0 0.0
    %2214 = vmatpush1.msra.mxu0 %v2192
    %2215 = vmatprep.subr.mxu0 0.0
    %2216 = vmatpush1.msra.mxu0 %v2203
    %2217 = vmatprep.subr.mxu0 0.0
    %2218 = vmatpush1.msra.mxu0 0.0
    %2219 = vmatprep.subr.mxu0 0.0
    %2220 = vmatpush1.msra.mxu0 0.0
    %2221 = vmatprep.subr.mxu0 0.0
    %2222 = vmatpush1.msra.mxu0 0.0
    %2223 = vmatprep.subr.mxu0 0.0
    %2224 = vmatpush1.msra.mxu0 0.0
    %2225 = vmatprep.subr.mxu0 0.0
    %2226 = vmatpush1.msra.mxu0 0.0
    %2227 = vmatprep.subr.mxu0 0.0
    %2228 = vmatpush1.msra.mxu0 0.0
    %2229 = vmatprep.subr.mxu0 0.0
    %2230 = vmatpush1.msra.mxu0 0.0
    %2231 = vmatprep.subr.mxu0 0.0
    %2232 = vmatpush1.msra.mxu0 0.0
    %2233 = vmatprep.subr.mxu0 0.0
    %2234 = vmatpush1.msra.mxu0 0.0
    %2235 = vmatprep.subr.mxu0 0.0
    %2236 = vmatpush1.msra.mxu0 0.0
    %2237 = vmatprep.subr.mxu0 0.0
    %2238 = vmatpush1.msra.mxu0 0.0
    %2239 = vmatprep.subr.mxu0 0.0
    %2240 = vmatpush1.msra.mxu0 0.0
    %2241 = vmatprep.subr.mxu0 0.0
    %2242 = vmatpush1.msra.mxu0 0.0
    %2243 = vmatprep.subr.mxu0 0.0
    %2244 = vmatpush1.msra.mxu0 0.0
    %2245 = vmatprep.subr.mxu0 0.0
    %2246 = vmatpush1.msra.mxu0 0.0
    %2247 = vmatprep.subr.mxu0 0.0
    %2248 = vmatpush1.msra.mxu0 0.0
    %2249 = vmatprep.subr.mxu0 0.0
    %2250 = vmatpush1.msra.mxu0 0.0
    %2251 = vmatprep.subr.mxu0 0.0
    %2252 = vmatpush1.msra.mxu0 0.0
    %2253 = vmatprep.subr.mxu0 0.0
    %2254 = vmatpush1.msra.mxu0 0.0
    %2255 = vmatprep.subr.mxu0 0.0
    %2256 = vmatpush1.msra.mxu0 0.0
    %2257 = vmatprep.subr.mxu0 0.0
    %2258 = vmatpush1.msra.mxu0 0.0
    %2259 = vmatprep.subr.mxu0 0.0
    %2260 = vmatpush1.msra.mxu0 0.0
    %2261 = vmatprep.subr.mxu0 0.0
    %2262 = vmatpush1.msra.mxu0 0.0
    %2263 = vmatprep.subr.mxu0 0.0
    %2264 = vmatpush1.msra.mxu0 0.0
    %2265 = vmatprep.subr.mxu0 0.0
    %2266 = vmatpush1.msra.mxu0 0.0
    %2267 = vmatprep.subr.mxu0 0.0
    %2268 = vmatpush1.msra.mxu0 0.0
    %2269 = vmatprep.mubr.f32.mxu0 0.0
    %2270 = vmatmul.mubr.f32.gmra.mrb[0].mxu0 %v887
    %v2271 = vpop.f32.mrb[0].mxu0
    %v2272 = vadd.f32 %v2200, %v2271
    %v2273 = vpop.f32.mrb[0].mxu0
    %2274 = vmatprep.mubr.f32.mxu0 0.0
    %2275 = vmatmul.mubr.f32.gmra.mrb[0].mxu0 %v890
    %v2276 = vpop.f32.mrb[0].mxu0
    %v2277 = vadd.f32 %v2200, %v2276
    %v2278 = vpop.f32.mrb[0].mxu0
    %2279 = vdwg.mxu0
    %s2280 = scalar_lea.vmem %s9, 48
    %v2281 = vld [vmem:[%s2280] sm:$0xff]
    %v2282 = vld [vmem:[%s2280 + $0x8] sm:$0xff]
    %v2283 = vld [vmem:[%s2280 + $0x10] sm:$0xff]
    %v2284 = vld [vmem:[%s2280 + $0x18] sm:$0xff]
    %v2285 = vld [vmem:[%s2280 + $0x20] sm:$0xff]
    %v2286 = vld [vmem:[%s2280 + $0x28] sm:$0x1]
    %s2287 = scalar_lea.vmem %s10, 1
    %v2288 = vld [vmem:[%s2287] sm:$0x1]
    %v2290 = vlaneseq
    %v2291 = vshrl.u32 %v2290, 7
    %v2292 = vsub.s32 0, %v2291
    %v2293 = vrot.slane %v2288, %v2292
    %v2296 = vsel %vm892, %v2286, 0
    %2298 = vmatprep.subr.mxu0 0.0
    %2299 = vmatpush1.msra.mxu0 %v2281
    %2300 = vmatprep.subr.mxu0 0.0
    %2301 = vmatpush1.msra.mxu0 %v2282
    %2302 = vmatprep.subr.mxu0 0.0
    %2303 = vmatpush1.msra.mxu0 %v2283
    %2304 = vmatprep.subr.mxu0 0.0
    %2305 = vmatpush1.msra.mxu0 %v2284
    %2306 = vmatprep.subr.mxu0 0.0
    %2307 = vmatpush1.msra.mxu0 %v2285
    %2308 = vmatprep.subr.mxu0 0.0
    %2309 = vmatpush1.msra.mxu0 %v2296
    %2310 = vmatprep.subr.mxu0 0.0
    %2311 = vmatpush1.msra.mxu0 0.0
    %2312 = vmatprep.subr.mxu0 0.0
    %2313 = vmatpush1.msra.mxu0 0.0
    %2314 = vmatprep.subr.mxu0 0.0
    %2315 = vmatpush1.msra.mxu0 0.0
    %2316 = vmatprep.subr.mxu0 0.0
    %2317 = vmatpush1.msra.mxu0 0.0
    %2318 = vmatprep.subr.mxu0 0.0
    %2319 = vmatpush1.msra.mxu0 0.0
    %2320 = vmatprep.subr.mxu0 0.0
    %2321 = vmatpush1.msra.mxu0 0.0
    %2322 = vmatprep.subr.mxu0 0.0
    %2323 = vmatpush1.msra.mxu0 0.0
    %2324 = vmatprep.subr.mxu0 0.0
    %2325 = vmatpush1.msra.mxu0 0.0
    %2326 = vmatprep.subr.mxu0 0.0
    %2327 = vmatpush1.msra.mxu0 0.0
    %2328 = vmatprep.subr.mxu0 0.0
    %2329 = vmatpush1.msra.mxu0 0.0
    %2330 = vmatprep.subr.mxu0 0.0
    %2331 = vmatpush1.msra.mxu0 0.0
    %2332 = vmatprep.subr.mxu0 0.0
    %2333 = vmatpush1.msra.mxu0 0.0
    %2334 = vmatprep.subr.mxu0 0.0
    %2335 = vmatpush1.msra.mxu0 0.0
    %2336 = vmatprep.subr.mxu0 0.0
    %2337 = vmatpush1.msra.mxu0 0.0
    %2338 = vmatprep.subr.mxu0 0.0
    %2339 = vmatpush1.msra.mxu0 0.0
    %2340 = vmatprep.subr.mxu0 0.0
    %2341 = vmatpush1.msra.mxu0 0.0
    %2342 = vmatprep.subr.mxu0 0.0
    %2343 = vmatpush1.msra.mxu0 0.0
    %2344 = vmatprep.subr.mxu0 0.0
    %2345 = vmatpush1.msra.mxu0 0.0
    %2346 = vmatprep.subr.mxu0 0.0
    %2347 = vmatpush1.msra.mxu0 0.0
    %2348 = vmatprep.subr.mxu0 0.0
    %2349 = vmatpush1.msra.mxu0 0.0
    %2350 = vmatprep.subr.mxu0 0.0
    %2351 = vmatpush1.msra.mxu0 0.0
    %2352 = vmatprep.subr.mxu0 0.0
    %2353 = vmatpush1.msra.mxu0 0.0
    %2354 = vmatprep.subr.mxu0 0.0
    %2355 = vmatpush1.msra.mxu0 0.0
    %2356 = vmatprep.subr.mxu0 0.0
    %2357 = vmatpush1.msra.mxu0 0.0
    %2358 = vmatprep.subr.mxu0 0.0
    %2359 = vmatpush1.msra.mxu0 0.0
    %2360 = vmatprep.subr.mxu0 0.0
    %2361 = vmatpush1.msra.mxu0 0.0
    %2362 = vmatprep.mubr.f32.mxu0 0.0
    %2363 = vmatmul.mubr.f32.gmra.mrb[0].mxu0 %v887
    %v2364 = vpop.f32.mrb[0].mxu0
    %v2365 = vadd.f32 %v2293, %v2364
    %v2366 = vpop.f32.mrb[0].mxu0
    %2367 = vmatprep.mubr.f32.mxu0 0.0
    %2368 = vmatmul.mubr.f32.gmra.mrb[0].mxu0 %v890
    %v2369 = vpop.f32.mrb[0].mxu0
    %v2370 = vadd.f32 %v2293, %v2369
    %v2371 = vpop.f32.mrb[0].mxu0
    %2372 = vdwg.mxu0
    %v2374 = vsel %vm1062, %v2186, 0
    %v2377 = vsel %vm1062, %v2272, 0
    %v2380 = vsel %vm1062, %v2277, 0
    %2382 = vmatprep.subr.mxu0 0.0
    %2383 = vmatpush1.xpose.msra.mxu0 %v2377
    %2384 = vmatprep.subr.mxu0 0.0
    %2385 = vmatpush1.xpose.msra.mxu0 %v2380
    %2386 = vmatprep.subr.mxu0 0.0
    %2387 = vmatpush1.xpose.msra.mxu0 0.0
    %2388 = vmatprep.subr.mxu0 0.0
    %2389 = vmatpush1.xpose.msra.mxu0 0.0
    %2390 = vmatprep.subr.mxu0 0.0
    %2391 = vmatpush1.xpose.msra.mxu0 0.0
    %2392 = vmatprep.subr.mxu0 0.0
    %2393 = vmatpush1.xpose.msra.mxu0 0.0
    %2394 = vmatprep.subr.mxu0 0.0
    %2395 = vmatpush1.xpose.msra.mxu0 0.0
    %2396 = vmatprep.subr.mxu0 0.0
    %2397 = vmatpush1.xpose.msra.mxu0 0.0
    %2398 = vmatprep.subr.mxu0 0.0
    %2399 = vmatpush1.xpose.msra.mxu0 0.0
    %2400 = vmatprep.subr.mxu0 0.0
    %2401 = vmatpush1.xpose.msra.mxu0 0.0
    %2402 = vmatprep.subr.mxu0 0.0
    %2403 = vmatpush1.xpose.msra.mxu0 0.0
    %2404 = vmatprep.subr.mxu0 0.0
    %2405 = vmatpush1.xpose.msra.mxu0 0.0
    %2406 = vmatprep.subr.mxu0 0.0
    %2407 = vmatpush1.xpose.msra.mxu0 0.0
    %2408 = vmatprep.subr.mxu0 0.0
    %2409 = vmatpush1.xpose.msra.mxu0 0.0
    %2410 = vmatprep.subr.mxu0 0.0
    %2411 = vmatpush1.xpose.msra.mxu0 0.0
    %2412 = vmatprep.subr.mxu0 0.0
    %2413 = vmatpush1.xpose.msra.mxu0 0.0
    %2414 = vmatprep.subr.mxu0 0.0
    %2415 = vmatpush1.xpose.msra.mxu0 0.0
    %2416 = vmatprep.subr.mxu0 0.0
    %2417 = vmatpush1.xpose.msra.mxu0 0.0
    %2418 = vmatprep.subr.mxu0 0.0
    %2419 = vmatpush1.xpose.msra.mxu0 0.0
    %2420 = vmatprep.subr.mxu0 0.0
    %2421 = vmatpush1.xpose.msra.mxu0 0.0
    %2422 = vmatprep.subr.mxu0 0.0
    %2423 = vmatpush1.xpose.msra.mxu0 0.0
    %2424 = vmatprep.subr.mxu0 0.0
    %2425 = vmatpush1.xpose.msra.mxu0 0.0
    %2426 = vmatprep.subr.mxu0 0.0
    %2427 = vmatpush1.xpose.msra.mxu0 0.0
    %2428 = vmatprep.subr.mxu0 0.0
    %2429 = vmatpush1.xpose.msra.mxu0 0.0
    %2430 = vmatprep.subr.mxu0 0.0
    %2431 = vmatpush1.xpose.msra.mxu0 0.0
    %2432 = vmatprep.subr.mxu0 0.0
    %2433 = vmatpush1.xpose.msra.mxu0 0.0
    %2434 = vmatprep.subr.mxu0 0.0
    %2435 = vmatpush1.xpose.msra.mxu0 0.0
    %2436 = vmatprep.subr.mxu0 0.0
    %2437 = vmatpush1.xpose.msra.mxu0 0.0
    %2438 = vmatprep.subr.mxu0 0.0
    %2439 = vmatpush1.xpose.msra.mxu0 0.0
    %2440 = vmatprep.subr.mxu0 0.0
    %2441 = vmatpush1.xpose.msra.mxu0 0.0
    %2442 = vmatprep.subr.mxu0 0.0
    %2443 = vmatpush1.xpose.msra.mxu0 0.0
    %2444 = vmatprep.subr.mxu0 0.0
    %2445 = vmatpush1.xpose.msra.mxu0 0.0
    %2446 = vmatprep.mubr.f32.mxu0 0.0
    %2447 = vmatmul.mubr.f32.gmra.mrb[0].mxu0 %v2374
    %v2448 = vpop.f32.mrb[0].mxu0
    %v2449 = vadd.f32 %v96, %v2448
    %v2450 = vpop.f32.mrb[0].mxu0
    %2451 = vdwg.mxu0
    %v2452 = vsel %vm1142, %v2449, -inf
    %2453 = vmax.xlane.f32.xlu0 %v2452
    %v2454 = vpop.xlane.xlu0 %2453
    %v2455 = vsub.f32 %v2449, %v2454
    %v2456 = vmul.f32 %v2455, 1.442695
    %v2457 = vpow.pop %v2456
    %v2458 = vsel %vm1142, %v2457, 0.0
    %2459 = vadd.xlane.f32.xlu0 %v2458
    %v2460 = vpop.xlane.xlu0 %2459
    %v2461 = vrcp.pop %v2460
    %v2462 = vmul.f32 %v2460, %v2461
    %v2463 = vsub.f32 2.0, %v2462
    %v2464 = vmul.f32 %v2461, %v2463
    %v2465 = vmul.f32 %v2457, %v2464
    %v2467 = vsel %vm1142, %v2465, 0
    %v2470 = vsel %vm1160, %v2370, 0
    %2472 = vmatprep.subr.mxu0 0.0
    %2473 = vmatpush1.msra.mxu0 %v2365
    %2474 = vmatprep.subr.mxu0 0.0
    %2475 = vmatpush1.msra.mxu0 %v2470
    %2476 = vmatprep.subr.mxu0 0.0
    %2477 = vmatpush1.msra.mxu0 0.0
    %2478 = vmatprep.subr.mxu0 0.0
    %2479 = vmatpush1.msra.mxu0 0.0
    %2480 = vmatprep.subr.mxu0 0.0
    %2481 = vmatpush1.msra.mxu0 0.0
    %2482 = vmatprep.subr.mxu0 0.0
    %2483 = vmatpush1.msra.mxu0 0.0
    %2484 = vmatprep.subr.mxu0 0.0
    %2485 = vmatpush1.msra.mxu0 0.0
    %2486 = vmatprep.subr.mxu0 0.0
    %2487 = vmatpush1.msra.mxu0 0.0
    %2488 = vmatprep.subr.mxu0 0.0
    %2489 = vmatpush1.msra.mxu0 0.0
    %2490 = vmatprep.subr.mxu0 0.0
    %2491 = vmatpush1.msra.mxu0 0.0
    %2492 = vmatprep.subr.mxu0 0.0
    %2493 = vmatpush1.msra.mxu0 0.0
    %2494 = vmatprep.subr.mxu0 0.0
    %2495 = vmatpush1.msra.mxu0 0.0
    %2496 = vmatprep.subr.mxu0 0.0
    %2497 = vmatpush1.msra.mxu0 0.0
    %2498 = vmatprep.subr.mxu0 0.0
    %2499 = vmatpush1.msra.mxu0 0.0
    %2500 = vmatprep.subr.mxu0 0.0
    %2501 = vmatpush1.msra.mxu0 0.0
    %2502 = vmatprep.subr.mxu0 0.0
    %2503 = vmatpush1.msra.mxu0 0.0
    %2504 = vmatprep.subr.mxu0 0.0
    %2505 = vmatpush1.msra.mxu0 0.0
    %2506 = vmatprep.subr.mxu0 0.0
    %2507 = vmatpush1.msra.mxu0 0.0
    %2508 = vmatprep.subr.mxu0 0.0
    %2509 = vmatpush1.msra.mxu0 0.0
    %2510 = vmatprep.subr.mxu0 0.0
    %2511 = vmatpush1.msra.mxu0 0.0
    %2512 = vmatprep.subr.mxu0 0.0
    %2513 = vmatpush1.msra.mxu0 0.0
    %2514 = vmatprep.subr.mxu0 0.0
    %2515 = vmatpush1.msra.mxu0 0.0
    %2516 = vmatprep.subr.mxu0 0.0
    %2517 = vmatpush1.msra.mxu0 0.0
    %2518 = vmatprep.subr.mxu0 0.0
    %2519 = vmatpush1.msra.mxu0 0.0
    %2520 = vmatprep.subr.mxu0 0.0
    %2521 = vmatpush1.msra.mxu0 0.0
    %2522 = vmatprep.subr.mxu0 0.0
    %2523 = vmatpush1.msra.mxu0 0.0
    %2524 = vmatprep.subr.mxu0 0.0
    %2525 = vmatpush1.msra.mxu0 0.0
    %2526 = vmatprep.subr.mxu0 0.0
    %2527 = vmatpush1.msra.mxu0 0.0
    %2528 = vmatprep.subr.mxu0 0.0
    %2529 = vmatpush1.msra.mxu0 0.0
    %2530 = vmatprep.subr.mxu0 0.0
    %2531 = vmatpush1.msra.mxu0 0.0
    %2532 = vmatprep.subr.mxu0 0.0
    %2533 = vmatpush1.msra.mxu0 0.0
    %2534 = vmatprep.subr.mxu0 0.0
    %2535 = vmatpush1.msra.mxu0 0.0
    %2536 = vmatprep.mubr.f32.mxu0 0.0
    %2537 = vmatmul.mubr.f32.gmra.mrb[0].mxu0 %v2467
    %v2538 = vpop.f32.mrb[0].mxu0
    %v2539 = vadd.f32 0.0, %v2538
    %v2540 = vpop.f32.mrb[0].mxu0
    %2541 = vdwg.mxu0
    %2542 = vrot.lane.b32.xlu0 %v2186, 120
    %v2543 = vpop.permute.xlu0 %2542
    %2544 = vrot.lane.b32.xlu0 %v2272, 120
    %v2545 = vpop.permute.xlu0 %2544
    %2546 = vrot.lane.b32.xlu0 %v2277, 120
    %v2547 = vpop.permute.xlu0 %2546
    %v2548 = vsel %vm1062, %v2543, 0
    %v2550 = vsel %vm1062, %v2545, 0
    %v2552 = vsel %vm1062, %v2547, 0
    %2554 = vmatprep.subr.mxu0 0.0
    %2555 = vmatpush1.xpose.msra.mxu0 %v2550
    %2556 = vmatprep.subr.mxu0 0.0
    %2557 = vmatpush1.xpose.msra.mxu0 %v2552
    %2558 = vmatprep.subr.mxu0 0.0
    %2559 = vmatpush1.xpose.msra.mxu0 0.0
    %2560 = vmatprep.subr.mxu0 0.0
    %2561 = vmatpush1.xpose.msra.mxu0 0.0
    %2562 = vmatprep.subr.mxu0 0.0
    %2563 = vmatpush1.xpose.msra.mxu0 0.0
    %2564 = vmatprep.subr.mxu0 0.0
    %2565 = vmatpush1.xpose.msra.mxu0 0.0
    %2566 = vmatprep.subr.mxu0 0.0
    %2567 = vmatpush1.xpose.msra.mxu0 0.0
    %2568 = vmatprep.subr.mxu0 0.0
    %2569 = vmatpush1.xpose.msra.mxu0 0.0
    %2570 = vmatprep.subr.mxu0 0.0
    %2571 = vmatpush1.xpose.msra.mxu0 0.0
    %2572 = vmatprep.subr.mxu0 0.0
    %2573 = vmatpush1.xpose.msra.mxu0 0.0
    %2574 = vmatprep.subr.mxu0 0.0
    %2575 = vmatpush1.xpose.msra.mxu0 0.0
    %2576 = vmatprep.subr.mxu0 0.0
    %2577 = vmatpush1.xpose.msra.mxu0 0.0
    %2578 = vmatprep.subr.mxu0 0.0
    %2579 = vmatpush1.xpose.msra.mxu0 0.0
    %2580 = vmatprep.subr.mxu0 0.0
    %2581 = vmatpush1.xpose.msra.mxu0 0.0
    %2582 = vmatprep.subr.mxu0 0.0
    %2583 = vmatpush1.xpose.msra.mxu0 0.0
    %2584 = vmatprep.subr.mxu0 0.0
    %2585 = vmatpush1.xpose.msra.mxu0 0.0
    %2586 = vmatprep.subr.mxu0 0.0
    %2587 = vmatpush1.xpose.msra.mxu0 0.0
    %2588 = vmatprep.subr.mxu0 0.0
    %2589 = vmatpush1.xpose.msra.mxu0 0.0
    %2590 = vmatprep.subr.mxu0 0.0
    %2591 = vmatpush1.xpose.msra.mxu0 0.0
    %2592 = vmatprep.subr.mxu0 0.0
    %2593 = vmatpush1.xpose.msra.mxu0 0.0
    %2594 = vmatprep.subr.mxu0 0.0
    %2595 = vmatpush1.xpose.msra.mxu0 0.0
    %2596 = vmatprep.subr.mxu0 0.0
    %2597 = vmatpush1.xpose.msra.mxu0 0.0
    %2598 = vmatprep.subr.mxu0 0.0
    %2599 = vmatpush1.xpose.msra.mxu0 0.0
    %2600 = vmatprep.subr.mxu0 0.0
    %2601 = vmatpush1.xpose.msra.mxu0 0.0
    %2602 = vmatprep.subr.mxu0 0.0
    %2603 = vmatpush1.xpose.msra.mxu0 0.0
    %2604 = vmatprep.subr.mxu0 0.0
    %2605 = vmatpush1.xpose.msra.mxu0 0.0
    %2606 = vmatprep.subr.mxu0 0.0
    %2607 = vmatpush1.xpose.msra.mxu0 0.0
    %2608 = vmatprep.subr.mxu0 0.0
    %2609 = vmatpush1.xpose.msra.mxu0 0.0
    %2610 = vmatprep.subr.mxu0 0.0
    %2611 = vmatpush1.xpose.msra.mxu0 0.0
    %2612 = vmatprep.subr.mxu0 0.0
    %2613 = vmatpush1.xpose.msra.mxu0 0.0
    %2614 = vmatprep.subr.mxu0 0.0
    %2615 = vmatpush1.xpose.msra.mxu0 0.0
    %2616 = vmatprep.subr.mxu0 0.0
    %2617 = vmatpush1.xpose.msra.mxu0 0.0
    %2618 = vmatprep.mubr.f32.mxu0 0.0
    %2619 = vmatmul.mubr.f32.gmra.mrb[0].mxu0 %v2548
    %v2620 = vpop.f32.mrb[0].mxu0
    %v2621 = vadd.f32 %v96, %v2620
    %v2622 = vpop.f32.mrb[0].mxu0
    %2623 = vdwg.mxu0
    %v2624 = vsel %vm1142, %v2621, -inf
    %2625 = vmax.xlane.f32.xlu0 %v2624
    %v2626 = vpop.xlane.xlu0 %2625
    %v2627 = vsub.f32 %v2621, %v2626
    %v2628 = vmul.f32 %v2627, 1.442695
    %v2629 = vpow.pop %v2628
    %v2630 = vsel %vm1142, %v2629, 0.0
    %2631 = vadd.xlane.f32.xlu0 %v2630
    %v2632 = vpop.xlane.xlu0 %2631
    %v2633 = vrcp.pop %v2632
    %v2634 = vmul.f32 %v2632, %v2633
    %v2635 = vsub.f32 2.0, %v2634
    %v2636 = vmul.f32 %v2633, %v2635
    %v2637 = vmul.f32 %v2629, %v2636
    %2639 = vrot.lane.b32.xlu0 %v2365, 120
    %v2640 = vpop.permute.xlu0 %2639
    %2641 = vrot.lane.b32.xlu0 %v2370, 120
    %v2642 = vpop.permute.xlu0 %2641
    %v2645 = vsel %vm1142, %v2637, 0
    %v2647 = vsel %vm1160, %v2642, 0
    %2649 = vmatprep.subr.mxu0 0.0
    %2650 = vmatpush1.msra.mxu0 %v2640
    %2651 = vmatprep.subr.mxu0 0.0
    %2652 = vmatpush1.msra.mxu0 %v2647
    %2653 = vmatprep.subr.mxu0 0.0
    %2654 = vmatpush1.msra.mxu0 0.0
    %2655 = vmatprep.subr.mxu0 0.0
    %2656 = vmatpush1.msra.mxu0 0.0
    %2657 = vmatprep.subr.mxu0 0.0
    %2658 = vmatpush1.msra.mxu0 0.0
    %2659 = vmatprep.subr.mxu0 0.0
    %2660 = vmatpush1.msra.mxu0 0.0
    %2661 = vmatprep.subr.mxu0 0.0
    %2662 = vmatpush1.msra.mxu0 0.0
    %2663 = vmatprep.subr.mxu0 0.0
    %2664 = vmatpush1.msra.mxu0 0.0
    %2665 = vmatprep.subr.mxu0 0.0
    %2666 = vmatpush1.msra.mxu0 0.0
    %2667 = vmatprep.subr.mxu0 0.0
    %2668 = vmatpush1.msra.mxu0 0.0
    %2669 = vmatprep.subr.mxu0 0.0
    %2670 = vmatpush1.msra.mxu0 0.0
    %2671 = vmatprep.subr.mxu0 0.0
    %2672 = vmatpush1.msra.mxu0 0.0
    %2673 = vmatprep.subr.mxu0 0.0
    %2674 = vmatpush1.msra.mxu0 0.0
    %2675 = vmatprep.subr.mxu0 0.0
    %2676 = vmatpush1.msra.mxu0 0.0
    %2677 = vmatprep.subr.mxu0 0.0
    %2678 = vmatpush1.msra.mxu0 0.0
    %2679 = vmatprep.subr.mxu0 0.0
    %2680 = vmatpush1.msra.mxu0 0.0
    %2681 = vmatprep.subr.mxu0 0.0
    %2682 = vmatpush1.msra.mxu0 0.0
    %2683 = vmatprep.subr.mxu0 0.0
    %2684 = vmatpush1.msra.mxu0 0.0
    %2685 = vmatprep.subr.mxu0 0.0
    %2686 = vmatpush1.msra.mxu0 0.0
    %2687 = vmatprep.subr.mxu0 0.0
    %2688 = vmatpush1.msra.mxu0 0.0
    %2689 = vmatprep.subr.mxu0 0.0
    %2690 = vmatpush1.msra.mxu0 0.0
    %2691 = vmatprep.subr.mxu0 0.0
    %2692 = vmatpush1.msra.mxu0 0.0
    %2693 = vmatprep.subr.mxu0 0.0
    %2694 = vmatpush1.msra.mxu0 0.0
    %2695 = vmatprep.subr.mxu0 0.0
    %2696 = vmatpush1.msra.mxu0 0.0
    %2697 = vmatprep.subr.mxu0 0.0
    %2698 = vmatpush1.msra.mxu0 0.0
    %2699 = vmatprep.subr.mxu0 0.0
    %2700 = vmatpush1.msra.mxu0 0.0
    %2701 = vmatprep.subr.mxu0 0.0
    %2702 = vmatpush1.msra.mxu0 0.0
    %2703 = vmatprep.subr.mxu0 0.0
    %2704 = vmatpush1.msra.mxu0 0.0
    %2705 = vmatprep.subr.mxu0 0.0
    %2706 = vmatpush1.msra.mxu0 0.0
    %2707 = vmatprep.subr.mxu0 0.0
    %2708 = vmatpush1.msra.mxu0 0.0
    %2709 = vmatprep.subr.mxu0 0.0
    %2710 = vmatpush1.msra.mxu0 0.0
    %2711 = vmatprep.subr.mxu0 0.0
    %2712 = vmatpush1.msra.mxu0 0.0
    %2713 = vmatprep.mubr.f32.mxu0 0.0
    %2714 = vmatmul.mubr.f32.gmra.mrb[0].mxu0 %v2645
    %v2715 = vpop.f32.mrb[0].mxu0
    %v2716 = vadd.f32 0.0, %v2715
    %v2717 = vpop.f32.mrb[0].mxu0
    %2718 = vdwg.mxu0
    %2719 = vrot.lane.b32.xlu0 %v2186, 112
    %v2720 = vpop.permute.xlu0 %2719
    %2721 = vrot.lane.b32.xlu0 %v2272, 112
    %v2722 = vpop.permute.xlu0 %2721
    %2723 = vrot.lane.b32.xlu0 %v2277, 112
    %v2724 = vpop.permute.xlu0 %2723
    %v2725 = vsel %vm1062, %v2720, 0
    %v2727 = vsel %vm1062, %v2722, 0
    %v2729 = vsel %vm1062, %v2724, 0
    %2731 = vmatprep.subr.mxu0 0.0
    %2732 = vmatpush1.xpose.msra.mxu0 %v2727
    %2733 = vmatprep.subr.mxu0 0.0
    %2734 = vmatpush1.xpose.msra.mxu0 %v2729
    %2735 = vmatprep.subr.mxu0 0.0
    %2736 = vmatpush1.xpose.msra.mxu0 0.0
    %2737 = vmatprep.subr.mxu0 0.0
    %2738 = vmatpush1.xpose.msra.mxu0 0.0
    %2739 = vmatprep.subr.mxu0 0.0
    %2740 = vmatpush1.xpose.msra.mxu0 0.0
    %2741 = vmatprep.subr.mxu0 0.0
    %2742 = vmatpush1.xpose.msra.mxu0 0.0
    %2743 = vmatprep.subr.mxu0 0.0
    %2744 = vmatpush1.xpose.msra.mxu0 0.0
    %2745 = vmatprep.subr.mxu0 0.0
    %2746 = vmatpush1.xpose.msra.mxu0 0.0
    %2747 = vmatprep.subr.mxu0 0.0
    %2748 = vmatpush1.xpose.msra.mxu0 0.0
    %2749 = vmatprep.subr.mxu0 0.0
    %2750 = vmatpush1.xpose.msra.mxu0 0.0
    %2751 = vmatprep.subr.mxu0 0.0
    %2752 = vmatpush1.xpose.msra.mxu0 0.0
    %2753 = vmatprep.subr.mxu0 0.0
    %2754 = vmatpush1.xpose.msra.mxu0 0.0
    %2755 = vmatprep.subr.mxu0 0.0
    %2756 = vmatpush1.xpose.msra.mxu0 0.0
    %2757 = vmatprep.subr.mxu0 0.0
    %2758 = vmatpush1.xpose.msra.mxu0 0.0
    %2759 = vmatprep.subr.mxu0 0.0
    %2760 = vmatpush1.xpose.msra.mxu0 0.0
    %2761 = vmatprep.subr.mxu0 0.0
    %2762 = vmatpush1.xpose.msra.mxu0 0.0
    %2763 = vmatprep.subr.mxu0 0.0
    %2764 = vmatpush1.xpose.msra.mxu0 0.0
    %2765 = vmatprep.subr.mxu0 0.0
    %2766 = vmatpush1.xpose.msra.mxu0 0.0
    %2767 = vmatprep.subr.mxu0 0.0
    %2768 = vmatpush1.xpose.msra.mxu0 0.0
    %2769 = vmatprep.subr.mxu0 0.0
    %2770 = vmatpush1.xpose.msra.mxu0 0.0
    %2771 = vmatprep.subr.mxu0 0.0
    %2772 = vmatpush1.xpose.msra.mxu0 0.0
    %2773 = vmatprep.subr.mxu0 0.0
    %2774 = vmatpush1.xpose.msra.mxu0 0.0
    %2775 = vmatprep.subr.mxu0 0.0
    %2776 = vmatpush1.xpose.msra.mxu0 0.0
    %2777 = vmatprep.subr.mxu0 0.0
    %2778 = vmatpush1.xpose.msra.mxu0 0.0
    %2779 = vmatprep.subr.mxu0 0.0
    %2780 = vmatpush1.xpose.msra.mxu0 0.0
    %2781 = vmatprep.subr.mxu0 0.0
    %2782 = vmatpush1.xpose.msra.mxu0 0.0
    %2783 = vmatprep.subr.mxu0 0.0
    %2784 = vmatpush1.xpose.msra.mxu0 0.0
    %2785 = vmatprep.subr.mxu0 0.0
    %2786 = vmatpush1.xpose.msra.mxu0 0.0
    %2787 = vmatprep.subr.mxu0 0.0
    %2788 = vmatpush1.xpose.msra.mxu0 0.0
    %2789 = vmatprep.subr.mxu0 0.0
    %2790 = vmatpush1.xpose.msra.mxu0 0.0
    %2791 = vmatprep.subr.mxu0 0.0
    %2792 = vmatpush1.xpose.msra.mxu0 0.0
    %2793 = vmatprep.subr.mxu0 0.0
    %2794 = vmatpush1.xpose.msra.mxu0 0.0
    %2795 = vmatprep.mubr.f32.mxu0 0.0
    %2796 = vmatmul.mubr.f32.gmra.mrb[0].mxu0 %v2725
    %v2797 = vpop.f32.mrb[0].mxu0
    %v2798 = vadd.f32 %v96, %v2797
    %v2799 = vpop.f32.mrb[0].mxu0
    %2800 = vdwg.mxu0
    %v2801 = vsel %vm1142, %v2798, -inf
    %2802 = vmax.xlane.f32.xlu0 %v2801
    %v2803 = vpop.xlane.xlu0 %2802
    %v2804 = vsub.f32 %v2798, %v2803
    %v2805 = vmul.f32 %v2804, 1.442695
    %v2806 = vpow.pop %v2805
    %v2807 = vsel %vm1142, %v2806, 0.0
    %2808 = vadd.xlane.f32.xlu0 %v2807
    %v2809 = vpop.xlane.xlu0 %2808
    %v2810 = vrcp.pop %v2809
    %v2811 = vmul.f32 %v2809, %v2810
    %v2812 = vsub.f32 2.0, %v2811
    %v2813 = vmul.f32 %v2810, %v2812
    %v2814 = vmul.f32 %v2806, %v2813
    %2815 = vrot.lane.b32.xlu0 %v2365, 112
    %v2816 = vpop.permute.xlu0 %2815
    %2817 = vrot.lane.b32.xlu0 %v2370, 112
    %v2818 = vpop.permute.xlu0 %2817
    %v2821 = vsel %vm1142, %v2814, 0
    %v2823 = vsel %vm1160, %v2818, 0
    %2825 = vmatprep.subr.mxu0 0.0
    %2826 = vmatpush1.msra.mxu0 %v2816
    %2827 = vmatprep.subr.mxu0 0.0
    %2828 = vmatpush1.msra.mxu0 %v2823
    %2829 = vmatprep.subr.mxu0 0.0
    %2830 = vmatpush1.msra.mxu0 0.0
    %2831 = vmatprep.subr.mxu0 0.0
    %2832 = vmatpush1.msra.mxu0 0.0
    %2833 = vmatprep.subr.mxu0 0.0
    %2834 = vmatpush1.msra.mxu0 0.0
    %2835 = vmatprep.subr.mxu0 0.0
    %2836 = vmatpush1.msra.mxu0 0.0
    %2837 = vmatprep.subr.mxu0 0.0
    %2838 = vmatpush1.msra.mxu0 0.0
    %2839 = vmatprep.subr.mxu0 0.0
    %2840 = vmatpush1.msra.mxu0 0.0
    %2841 = vmatprep.subr.mxu0 0.0
    %2842 = vmatpush1.msra.mxu0 0.0
    %2843 = vmatprep.subr.mxu0 0.0
    %2844 = vmatpush1.msra.mxu0 0.0
    %2845 = vmatprep.subr.mxu0 0.0
    %2846 = vmatpush1.msra.mxu0 0.0
    %2847 = vmatprep.subr.mxu0 0.0
    %2848 = vmatpush1.msra.mxu0 0.0
    %2849 = vmatprep.subr.mxu0 0.0
    %2850 = vmatpush1.msra.mxu0 0.0
    %2851 = vmatprep.subr.mxu0 0.0
    %2852 = vmatpush1.msra.mxu0 0.0
    %2853 = vmatprep.subr.mxu0 0.0
    %2854 = vmatpush1.msra.mxu0 0.0
    %2855 = vmatprep.subr.mxu0 0.0
    %2856 = vmatpush1.msra.mxu0 0.0
    %2857 = vmatprep.subr.mxu0 0.0
    %2858 = vmatpush1.msra.mxu0 0.0
    %2859 = vmatprep.subr.mxu0 0.0
    %2860 = vmatpush1.msra.mxu0 0.0
    %2861 = vmatprep.subr.mxu0 0.0
    %2862 = vmatpush1.msra.mxu0 0.0
    %2863 = vmatprep.subr.mxu0 0.0
    %2864 = vmatpush1.msra.mxu0 0.0
    %2865 = vmatprep.subr.mxu0 0.0
    %2866 = vmatpush1.msra.mxu0 0.0
    %2867 = vmatprep.subr.mxu0 0.0
    %2868 = vmatpush1.msra.mxu0 0.0
    %2869 = vmatprep.subr.mxu0 0.0
    %2870 = vmatpush1.msra.mxu0 0.0
    %2871 = vmatprep.subr.mxu0 0.0
    %2872 = vmatpush1.msra.mxu0 0.0
    %2873 = vmatprep.subr.mxu0 0.0
    %2874 = vmatpush1.msra.mxu0 0.0
    %2875 = vmatprep.subr.mxu0 0.0
    %2876 = vmatpush1.msra.mxu0 0.0
    %2877 = vmatprep.subr.mxu0 0.0
    %2878 = vmatpush1.msra.mxu0 0.0
    %2879 = vmatprep.subr.mxu0 0.0
    %2880 = vmatpush1.msra.mxu0 0.0
    %2881 = vmatprep.subr.mxu0 0.0
    %2882 = vmatpush1.msra.mxu0 0.0
    %2883 = vmatprep.subr.mxu0 0.0
    %2884 = vmatpush1.msra.mxu0 0.0
    %2885 = vmatprep.subr.mxu0 0.0
    %2886 = vmatpush1.msra.mxu0 0.0
    %2887 = vmatprep.subr.mxu0 0.0
    %2888 = vmatpush1.msra.mxu0 0.0
    %2889 = vmatprep.mubr.f32.mxu0 0.0
    %2890 = vmatmul.mubr.f32.gmra.mrb[0].mxu0 %v2821
    %v2891 = vpop.f32.mrb[0].mxu0
    %v2892 = vadd.f32 0.0, %v2891
    %v2893 = vpop.f32.mrb[0].mxu0
    %2894 = vdwg.mxu0
    %2895 = vrot.lane.b32.xlu0 %v2186, 104
    %v2896 = vpop.permute.xlu0 %2895
    %2897 = vrot.lane.b32.xlu0 %v2272, 104
    %v2898 = vpop.permute.xlu0 %2897
    %2899 = vrot.lane.b32.xlu0 %v2277, 104
    %v2900 = vpop.permute.xlu0 %2899
    %v2901 = vsel %vm1062, %v2896, 0
    %v2903 = vsel %vm1062, %v2898, 0
    %v2905 = vsel %vm1062, %v2900, 0
    %2907 = vmatprep.subr.mxu0 0.0
    %2908 = vmatpush1.xpose.msra.mxu0 %v2903
    %2909 = vmatprep.subr.mxu0 0.0
    %2910 = vmatpush1.xpose.msra.mxu0 %v2905
    %2911 = vmatprep.subr.mxu0 0.0
    %2912 = vmatpush1.xpose.msra.mxu0 0.0
    %2913 = vmatprep.subr.mxu0 0.0
    %2914 = vmatpush1.xpose.msra.mxu0 0.0
    %2915 = vmatprep.subr.mxu0 0.0
    %2916 = vmatpush1.xpose.msra.mxu0 0.0
    %2917 = vmatprep.subr.mxu0 0.0
    %2918 = vmatpush1.xpose.msra.mxu0 0.0
    %2919 = vmatprep.subr.mxu0 0.0
    %2920 = vmatpush1.xpose.msra.mxu0 0.0
    %2921 = vmatprep.subr.mxu0 0.0
    %2922 = vmatpush1.xpose.msra.mxu0 0.0
    %2923 = vmatprep.subr.mxu0 0.0
    %2924 = vmatpush1.xpose.msra.mxu0 0.0
    %2925 = vmatprep.subr.mxu0 0.0
    %2926 = vmatpush1.xpose.msra.mxu0 0.0
    %2927 = vmatprep.subr.mxu0 0.0
    %2928 = vmatpush1.xpose.msra.mxu0 0.0
    %2929 = vmatprep.subr.mxu0 0.0
    %2930 = vmatpush1.xpose.msra.mxu0 0.0
    %2931 = vmatprep.subr.mxu0 0.0
    %2932 = vmatpush1.xpose.msra.mxu0 0.0
    %2933 = vmatprep.subr.mxu0 0.0
    %2934 = vmatpush1.xpose.msra.mxu0 0.0
    %2935 = vmatprep.subr.mxu0 0.0
    %2936 = vmatpush1.xpose.msra.mxu0 0.0
    %2937 = vmatprep.subr.mxu0 0.0
    %2938 = vmatpush1.xpose.msra.mxu0 0.0
    %2939 = vmatprep.subr.mxu0 0.0
    %2940 = vmatpush1.xpose.msra.mxu0 0.0
    %2941 = vmatprep.subr.mxu0 0.0
    %2942 = vmatpush1.xpose.msra.mxu0 0.0
    %2943 = vmatprep.subr.mxu0 0.0
    %2944 = vmatpush1.xpose.msra.mxu0 0.0
    %2945 = vmatprep.subr.mxu0 0.0
    %2946 = vmatpush1.xpose.msra.mxu0 0.0
    %2947 = vmatprep.subr.mxu0 0.0
    %2948 = vmatpush1.xpose.msra.mxu0 0.0
    %2949 = vmatprep.subr.mxu0 0.0
    %2950 = vmatpush1.xpose.msra.mxu0 0.0
    %2951 = vmatprep.subr.mxu0 0.0
    %2952 = vmatpush1.xpose.msra.mxu0 0.0
    %2953 = vmatprep.subr.mxu0 0.0
    %2954 = vmatpush1.xpose.msra.mxu0 0.0
    %2955 = vmatprep.subr.mxu0 0.0
    %2956 = vmatpush1.xpose.msra.mxu0 0.0
    %2957 = vmatprep.subr.mxu0 0.0
    %2958 = vmatpush1.xpose.msra.mxu0 0.0
    %2959 = vmatprep.subr.mxu0 0.0
    %2960 = vmatpush1.xpose.msra.mxu0 0.0
    %2961 = vmatprep.subr.mxu0 0.0
    %2962 = vmatpush1.xpose.msra.mxu0 0.0
    %2963 = vmatprep.subr.mxu0 0.0
    %2964 = vmatpush1.xpose.msra.mxu0 0.0
    %2965 = vmatprep.subr.mxu0 0.0
    %2966 = vmatpush1.xpose.msra.mxu0 0.0
    %2967 = vmatprep.subr.mxu0 0.0
    %2968 = vmatpush1.xpose.msra.mxu0 0.0
    %2969 = vmatprep.subr.mxu0 0.0
    %2970 = vmatpush1.xpose.msra.mxu0 0.0
    %2971 = vmatprep.mubr.f32.mxu0 0.0
    %2972 = vmatmul.mubr.f32.gmra.mrb[0].mxu0 %v2901
    %v2973 = vpop.f32.mrb[0].mxu0
    %v2974 = vadd.f32 %v96, %v2973
    %v2975 = vpop.f32.mrb[0].mxu0
    %2976 = vdwg.mxu0
    %v2977 = vsel %vm1142, %v2974, -inf
    %2978 = vmax.xlane.f32.xlu0 %v2977
    %v2979 = vpop.xlane.xlu0 %2978
    %v2980 = vsub.f32 %v2974, %v2979
    %v2981 = vmul.f32 %v2980, 1.442695
    %v2982 = vpow.pop %v2981
    %v2983 = vsel %vm1142, %v2982, 0.0
    %2984 = vadd.xlane.f32.xlu0 %v2983
    %v2985 = vpop.xlane.xlu0 %2984
    %v2986 = vrcp.pop %v2985
    %v2987 = vmul.f32 %v2985, %v2986
    %v2988 = vsub.f32 2.0, %v2987
    %v2989 = vmul.f32 %v2986, %v2988
    %v2990 = vmul.f32 %v2982, %v2989
    %2991 = vrot.lane.b32.xlu0 %v2365, 104
    %v2992 = vpop.permute.xlu0 %2991
    %2993 = vrot.lane.b32.xlu0 %v2370, 104
    %v2994 = vpop.permute.xlu0 %2993
    %v2997 = vsel %vm1142, %v2990, 0
    %v2999 = vsel %vm1160, %v2994, 0
    %3001 = vmatprep.subr.mxu0 0.0
    %3002 = vmatpush1.msra.mxu0 %v2992
    %3003 = vmatprep.subr.mxu0 0.0
    %3004 = vmatpush1.msra.mxu0 %v2999
    %3005 = vmatprep.subr.mxu0 0.0
    %3006 = vmatpush1.msra.mxu0 0.0
    %3007 = vmatprep.subr.mxu0 0.0
    %3008 = vmatpush1.msra.mxu0 0.0
    %3009 = vmatprep.subr.mxu0 0.0
    %3010 = vmatpush1.msra.mxu0 0.0
    %3011 = vmatprep.subr.mxu0 0.0
    %3012 = vmatpush1.msra.mxu0 0.0
    %3013 = vmatprep.subr.mxu0 0.0
    %3014 = vmatpush1.msra.mxu0 0.0
    %3015 = vmatprep.subr.mxu0 0.0
    %3016 = vmatpush1.msra.mxu0 0.0
    %3017 = vmatprep.subr.mxu0 0.0
    %3018 = vmatpush1.msra.mxu0 0.0
    %3019 = vmatprep.subr.mxu0 0.0
    %3020 = vmatpush1.msra.mxu0 0.0
    %3021 = vmatprep.subr.mxu0 0.0
    %3022 = vmatpush1.msra.mxu0 0.0
    %3023 = vmatprep.subr.mxu0 0.0
    %3024 = vmatpush1.msra.mxu0 0.0
    %3025 = vmatprep.subr.mxu0 0.0
    %3026 = vmatpush1.msra.mxu0 0.0
    %3027 = vmatprep.subr.mxu0 0.0
    %3028 = vmatpush1.msra.mxu0 0.0
    %3029 = vmatprep.subr.mxu0 0.0
    %3030 = vmatpush1.msra.mxu0 0.0
    %3031 = vmatprep.subr.mxu0 0.0
    %3032 = vmatpush1.msra.mxu0 0.0
    %3033 = vmatprep.subr.mxu0 0.0
    %3034 = vmatpush1.msra.mxu0 0.0
    %3035 = vmatprep.subr.mxu0 0.0
    %3036 = vmatpush1.msra.mxu0 0.0
    %3037 = vmatprep.subr.mxu0 0.0
    %3038 = vmatpush1.msra.mxu0 0.0
    %3039 = vmatprep.subr.mxu0 0.0
    %3040 = vmatpush1.msra.mxu0 0.0
    %3041 = vmatprep.subr.mxu0 0.0
    %3042 = vmatpush1.msra.mxu0 0.0
    %3043 = vmatprep.subr.mxu0 0.0
    %3044 = vmatpush1.msra.mxu0 0.0
    %3045 = vmatprep.subr.mxu0 0.0
    %3046 = vmatpush1.msra.mxu0 0.0
    %3047 = vmatprep.subr.mxu0 0.0
    %3048 = vmatpush1.msra.mxu0 0.0
    %3049 = vmatprep.subr.mxu0 0.0
    %3050 = vmatpush1.msra.mxu0 0.0
    %3051 = vmatprep.subr.mxu0 0.0
    %3052 = vmatpush1.msra.mxu0 0.0
    %3053 = vmatprep.subr.mxu0 0.0
    %3054 = vmatpush1.msra.mxu0 0.0
    %3055 = vmatprep.subr.mxu0 0.0
    %3056 = vmatpush1.msra.mxu0 0.0
    %3057 = vmatprep.subr.mxu0 0.0
    %3058 = vmatpush1.msra.mxu0 0.0
    %3059 = vmatprep.subr.mxu0 0.0
    %3060 = vmatpush1.msra.mxu0 0.0
    %3061 = vmatprep.subr.mxu0 0.0
    %3062 = vmatpush1.msra.mxu0 0.0
    %3063 = vmatprep.subr.mxu0 0.0
    %3064 = vmatpush1.msra.mxu0 0.0
    %3065 = vmatprep.mubr.f32.mxu0 0.0
    %3066 = vmatmul.mubr.f32.gmra.mrb[0].mxu0 %v2997
    %v3067 = vpop.f32.mrb[0].mxu0
    %v3068 = vadd.f32 0.0, %v3067
    %v3069 = vpop.f32.mrb[0].mxu0
    %3070 = vdwg.mxu0
    %3072 = vrot.lane.b32.xlu0 %v2716, 8
    %v3073 = vpop.permute.xlu0 %3072
    %3076 = vrot.lane.b32.xlu0 %v2892, 16
    %v3077 = vpop.permute.xlu0 %3076
    %3080 = vrot.lane.b32.xlu0 %v3068, 24
    %v3081 = vpop.permute.xlu0 %3080
    %v3083 = vsel %vm1062, %v2539, %v3073
    %v3084 = vsel %vm1776, %v3083, %v3077
    %v3085 = vsel %vm1778, %v3084, %v3081
    %s3086 = scalar_lea.vmem %s11, 32
    %v3087 = vld [vmem:[%s3086] sm:$0xff]
    %v3088 = vld [vmem:[%s3086 + $0x8] sm:$0xff]
    %v3089 = vld [vmem:[%s3086 + $0x10] sm:$0xff]
    %v3090 = vld [vmem:[%s3086 + $0x18] sm:$0xff]
    %s3091 = scalar_lea.vmem %s12, 1
    %v3092 = vld [vmem:[%s3091] sm:$0x1]
    %v3094 = vlaneseq
    %v3095 = vshrl.u32 %v3094, 7
    %v3096 = vsub.s32 0, %v3095
    %v3097 = vrot.slane %v3092, %v3096
    %v3100 = vsel %vm293, %v3085, 0
    %3102 = vmatprep.subr.mxu0 0.0
    %3103 = vmatpush1.msra.mxu0 %v3087
    %3104 = vmatprep.subr.mxu0 0.0
    %3105 = vmatpush1.msra.mxu0 %v3088
    %3106 = vmatprep.subr.mxu0 0.0
    %3107 = vmatpush1.msra.mxu0 %v3089
    %3108 = vmatprep.subr.mxu0 0.0
    %3109 = vmatpush1.msra.mxu0 %v3090
    %3110 = vmatprep.subr.mxu0 0.0
    %3111 = vmatpush1.msra.mxu0 0.0
    %3112 = vmatprep.subr.mxu0 0.0
    %3113 = vmatpush1.msra.mxu0 0.0
    %3114 = vmatprep.subr.mxu0 0.0
    %3115 = vmatpush1.msra.mxu0 0.0
    %3116 = vmatprep.subr.mxu0 0.0
    %3117 = vmatpush1.msra.mxu0 0.0
    %3118 = vmatprep.subr.mxu0 0.0
    %3119 = vmatpush1.msra.mxu0 0.0
    %3120 = vmatprep.subr.mxu0 0.0
    %3121 = vmatpush1.msra.mxu0 0.0
    %3122 = vmatprep.subr.mxu0 0.0
    %3123 = vmatpush1.msra.mxu0 0.0
    %3124 = vmatprep.subr.mxu0 0.0
    %3125 = vmatpush1.msra.mxu0 0.0
    %3126 = vmatprep.subr.mxu0 0.0
    %3127 = vmatpush1.msra.mxu0 0.0
    %3128 = vmatprep.subr.mxu0 0.0
    %3129 = vmatpush1.msra.mxu0 0.0
    %3130 = vmatprep.subr.mxu0 0.0
    %3131 = vmatpush1.msra.mxu0 0.0
    %3132 = vmatprep.subr.mxu0 0.0
    %3133 = vmatpush1.msra.mxu0 0.0
    %3134 = vmatprep.subr.mxu0 0.0
    %3135 = vmatpush1.msra.mxu0 0.0
    %3136 = vmatprep.subr.mxu0 0.0
    %3137 = vmatpush1.msra.mxu0 0.0
    %3138 = vmatprep.subr.mxu0 0.0
    %3139 = vmatpush1.msra.mxu0 0.0
    %3140 = vmatprep.subr.mxu0 0.0
    %3141 = vmatpush1.msra.mxu0 0.0
    %3142 = vmatprep.subr.mxu0 0.0
    %3143 = vmatpush1.msra.mxu0 0.0
    %3144 = vmatprep.subr.mxu0 0.0
    %3145 = vmatpush1.msra.mxu0 0.0
    %3146 = vmatprep.subr.mxu0 0.0
    %3147 = vmatpush1.msra.mxu0 0.0
    %3148 = vmatprep.subr.mxu0 0.0
    %3149 = vmatpush1.msra.mxu0 0.0
    %3150 = vmatprep.subr.mxu0 0.0
    %3151 = vmatpush1.msra.mxu0 0.0
    %3152 = vmatprep.subr.mxu0 0.0
    %3153 = vmatpush1.msra.mxu0 0.0
    %3154 = vmatprep.subr.mxu0 0.0
    %3155 = vmatpush1.msra.mxu0 0.0
    %3156 = vmatprep.subr.mxu0 0.0
    %3157 = vmatpush1.msra.mxu0 0.0
    %3158 = vmatprep.subr.mxu0 0.0
    %3159 = vmatpush1.msra.mxu0 0.0
    %3160 = vmatprep.subr.mxu0 0.0
    %3161 = vmatpush1.msra.mxu0 0.0
    %3162 = vmatprep.subr.mxu0 0.0
    %3163 = vmatpush1.msra.mxu0 0.0
    %3164 = vmatprep.subr.mxu0 0.0
    %3165 = vmatpush1.msra.mxu0 0.0
    %3166 = vmatprep.mubr.f32.mxu0 0.0
    %3167 = vmatmul.mubr.f32.gmra.mrb[0].mxu0 %v3100
    %v3168 = vpop.f32.mrb[0].mxu0
    %v3169 = vadd.f32 %v3097, %v3168
    %v3170 = vpop.f32.mrb[0].mxu0
    %3171 = vdwg.mxu0
    %v3172 = vadd.f32 %v2099, %v3169
    %s3173 = scalar_lea.vmem %s17, 1
    %v3174 = vld [vmem:[%s3173] sm:$0x1]
    %s3175 = scalar_lea.vmem %s18, 1
    %v3176 = vld [vmem:[%s3175] sm:$0x1]
    %v3177 = vsel %vm293, %v3172, 0.0
    %3178 = vadd.xlane.f32.xlu0 %v3177
    %v3179 = vpop.xlane.xlu0 %3178
    %v3180 = vmul.f32 %v3179, %v1870
    %v3181 = vsub.f32 %v3172, %v3180
    %v3182 = vmul.f32 %v3181, %v3181
    %v3183 = vsel %vm293, %v3182, 0.0
    %3184 = vadd.xlane.f32.xlu0 %v3183
    %v3185 = vpop.xlane.xlu0 %3184
    %v3186 = vmul.f32 %v3185, %v1870
    %v3187 = vadd.f32 %v3186, 1e-05
    %v3188 = vrsqrt.pop %v3187
    %v3189 = vmul.f32 %v3181, %v3188
    %v3191 = vlaneseq
    %v3192 = vshrl.u32 %v3191, 7
    %v3193 = vsub.s32 0, %v3192
    %v3194 = vrot.slane %v3174, %v3193
    %v3196 = vmul.f32 %v3189, %v3194
    %v3198 = vlaneseq
    %v3199 = vshrl.u32 %v3198, 7
    %v3200 = vsub.s32 0, %v3199
    %v3201 = vrot.slane %v3176, %v3200
    %v3203 = vadd.f32 %v3196, %v3201
    %s3204 = scalar_lea.vmem %s13, 32
    %v3205 = vld [vmem:[%s3204] sm:$0xff]
    %v3206 = vld [vmem:[%s3204 + $0x8] sm:$0xff]
    %v3207 = vld [vmem:[%s3204 + $0x10] sm:$0xff]
    %v3208 = vld [vmem:[%s3204 + $0x18] sm:$0xff]
    %s3209 = scalar_lea.vmem %s14, 1
    %v3210 = vld [vmem:[%s3209] sm:$0x1]
    %v3212 = vlaneseq
    %v3213 = vshrl.u32 %v3212, 7
    %v3214 = vsub.s32 0, %v3213
    %v3215 = vrot.slane %v3210, %v3214
    %v3218 = vsel %vm293, %v3203, 0
    %3220 = vmatprep.subr.mxu0 0.0
    %3221 = vmatpush1.msra.mxu0 %v3205
    %3222 = vmatprep.subr.mxu0 0.0
    %3223 = vmatpush1.msra.mxu0 %v3206
    %3224 = vmatprep.subr.mxu0 0.0
    %3225 = vmatpush1.msra.mxu0 %v3207
    %3226 = vmatprep.subr.mxu0 0.0
    %3227 = vmatpush1.msra.mxu0 %v3208
    %3228 = vmatprep.subr.mxu0 0.0
    %3229 = vmatpush1.msra.mxu0 0.0
    %3230 = vmatprep.subr.mxu0 0.0
    %3231 = vmatpush1.msra.mxu0 0.0
    %3232 = vmatprep.subr.mxu0 0.0
    %3233 = vmatpush1.msra.mxu0 0.0
    %3234 = vmatprep.subr.mxu0 0.0
    %3235 = vmatpush1.msra.mxu0 0.0
    %3236 = vmatprep.subr.mxu0 0.0
    %3237 = vmatpush1.msra.mxu0 0.0
    %3238 = vmatprep.subr.mxu0 0.0
    %3239 = vmatpush1.msra.mxu0 0.0
    %3240 = vmatprep.subr.mxu0 0.0
    %3241 = vmatpush1.msra.mxu0 0.0
    %3242 = vmatprep.subr.mxu0 0.0
    %3243 = vmatpush1.msra.mxu0 0.0
    %3244 = vmatprep.subr.mxu0 0.0
    %3245 = vmatpush1.msra.mxu0 0.0
    %3246 = vmatprep.subr.mxu0 0.0
    %3247 = vmatpush1.msra.mxu0 0.0
    %3248 = vmatprep.subr.mxu0 0.0
    %3249 = vmatpush1.msra.mxu0 0.0
    %3250 = vmatprep.subr.mxu0 0.0
    %3251 = vmatpush1.msra.mxu0 0.0
    %3252 = vmatprep.subr.mxu0 0.0
    %3253 = vmatpush1.msra.mxu0 0.0
    %3254 = vmatprep.subr.mxu0 0.0
    %3255 = vmatpush1.msra.mxu0 0.0
    %3256 = vmatprep.subr.mxu0 0.0
    %3257 = vmatpush1.msra.mxu0 0.0
    %3258 = vmatprep.subr.mxu0 0.0
    %3259 = vmatpush1.msra.mxu0 0.0
    %3260 = vmatprep.subr.mxu0 0.0
    %3261 = vmatpush1.msra.mxu0 0.0
    %3262 = vmatprep.subr.mxu0 0.0
    %3263 = vmatpush1.msra.mxu0 0.0
    %3264 = vmatprep.subr.mxu0 0.0
    %3265 = vmatpush1.msra.mxu0 0.0
    %3266 = vmatprep.subr.mxu0 0.0
    %3267 = vmatpush1.msra.mxu0 0.0
    %3268 = vmatprep.subr.mxu0 0.0
    %3269 = vmatpush1.msra.mxu0 0.0
    %3270 = vmatprep.subr.mxu0 0.0
    %3271 = vmatpush1.msra.mxu0 0.0
    %3272 = vmatprep.subr.mxu0 0.0
    %3273 = vmatpush1.msra.mxu0 0.0
    %3274 = vmatprep.subr.mxu0 0.0
    %3275 = vmatpush1.msra.mxu0 0.0
    %3276 = vmatprep.subr.mxu0 0.0
    %3277 = vmatpush1.msra.mxu0 0.0
    %3278 = vmatprep.subr.mxu0 0.0
    %3279 = vmatpush1.msra.mxu0 0.0
    %3280 = vmatprep.subr.mxu0 0.0
    %3281 = vmatpush1.msra.mxu0 0.0
    %3282 = vmatprep.subr.mxu0 0.0
    %3283 = vmatpush1.msra.mxu0 0.0
    %3284 = vmatprep.mubr.f32.mxu0 0.0
    %3285 = vmatmul.mubr.f32.gmra.mrb[0].mxu0 %v3218
    %v3286 = vpop.f32.mrb[0].mxu0
    %v3287 = vadd.f32 %v3215, %v3286
    %v3288 = vpop.f32.mrb[0].mxu0
    %3289 = vdwg.mxu0
    %v3290 = vmax.f32 %v3287, 0.0
    %s3291 = scalar_lea.vmem %s15, 64
    %v3292 = vld [vmem:[%s3291] sm:$0xff]
    %v3293 = vld [vmem:[%s3291 + $0x8] sm:$0xff]
    %v3294 = vld [vmem:[%s3291 + $0x10] sm:$0xff]
    %v3295 = vld [vmem:[%s3291 + $0x18] sm:$0xff]
    %v3296 = vld [vmem:[%s3291 + $0x20] sm:$0xff]
    %v3297 = vld [vmem:[%s3291 + $0x28] sm:$0xff]
    %v3298 = vld [vmem:[%s3291 + $0x30] sm:$0xff]
    %v3299 = vld [vmem:[%s3291 + $0x38] sm:$0xff]
    %v3301 = vsel %vm1988, %v3290, 0
    %3303 = vmatprep.subr.mxu0 0.0
    %3304 = vmatpush1.msra.mxu0 %v3292
    %3305 = vmatprep.subr.mxu0 0.0
    %3306 = vmatpush1.msra.mxu0 %v3293
    %3307 = vmatprep.subr.mxu0 0.0
    %3308 = vmatpush1.msra.mxu0 %v3294
    %3309 = vmatprep.subr.mxu0 0.0
    %3310 = vmatpush1.msra.mxu0 %v3295
    %3311 = vmatprep.subr.mxu0 0.0
    %3312 = vmatpush1.msra.mxu0 %v3296
    %3313 = vmatprep.subr.mxu0 0.0
    %3314 = vmatpush1.msra.mxu0 %v3297
    %3315 = vmatprep.subr.mxu0 0.0
    %3316 = vmatpush1.msra.mxu0 %v3298
    %3317 = vmatprep.subr.mxu0 0.0
    %3318 = vmatpush1.msra.mxu0 %v3299
    %3319 = vmatprep.subr.mxu0 0.0
    %3320 = vmatpush1.msra.mxu0 0.0
    %3321 = vmatprep.subr.mxu0 0.0
    %3322 = vmatpush1.msra.mxu0 0.0
    %3323 = vmatprep.subr.mxu0 0.0
    %3324 = vmatpush1.msra.mxu0 0.0
    %3325 = vmatprep.subr.mxu0 0.0
    %3326 = vmatpush1.msra.mxu0 0.0
    %3327 = vmatprep.subr.mxu0 0.0
    %3328 = vmatpush1.msra.mxu0 0.0
    %3329 = vmatprep.subr.mxu0 0.0
    %3330 = vmatpush1.msra.mxu0 0.0
    %3331 = vmatprep.subr.mxu0 0.0
    %3332 = vmatpush1.msra.mxu0 0.0
    %3333 = vmatprep.subr.mxu0 0.0
    %3334 = vmatpush1.msra.mxu0 0.0
    %3335 = vmatprep.subr.mxu0 0.0
    %3336 = vmatpush1.msra.mxu0 0.0
    %3337 = vmatprep.subr.mxu0 0.0
    %3338 = vmatpush1.msra.mxu0 0.0
    %3339 = vmatprep.subr.mxu0 0.0
    %3340 = vmatpush1.msra.mxu0 0.0
    %3341 = vmatprep.subr.mxu0 0.0
    %3342 = vmatpush1.msra.mxu0 0.0
    %3343 = vmatprep.subr.mxu0 0.0
    %3344 = vmatpush1.msra.mxu0 0.0
    %3345 = vmatprep.subr.mxu0 0.0
    %3346 = vmatpush1.msra.mxu0 0.0
    %3347 = vmatprep.subr.mxu0 0.0
    %3348 = vmatpush1.msra.mxu0 0.0
    %3349 = vmatprep.subr.mxu0 0.0
    %3350 = vmatpush1.msra.mxu0 0.0
    %3351 = vmatprep.subr.mxu0 0.0
    %3352 = vmatpush1.msra.mxu0 0.0
    %3353 = vmatprep.subr.mxu0 0.0
    %3354 = vmatpush1.msra.mxu0 0.0
    %3355 = vmatprep.subr.mxu0 0.0
    %3356 = vmatpush1.msra.mxu0 0.0
    %3357 = vmatprep.subr.mxu0 0.0
    %3358 = vmatpush1.msra.mxu0 0.0
    %3359 = vmatprep.subr.mxu0 0.0
    %3360 = vmatpush1.msra.mxu0 0.0
    %3361 = vmatprep.subr.mxu0 0.0
    %3362 = vmatpush1.msra.mxu0 0.0
    %3363 = vmatprep.subr.mxu0 0.0
    %3364 = vmatpush1.msra.mxu0 0.0
    %3365 = vmatprep.subr.mxu0 0.0
    %3366 = vmatpush1.msra.mxu0 0.0
    %3367 = vmatprep.mubr.f32.mxu0 0.0
    %3368 = vmatmul.mubr.f32.gmra.mrb[0].mxu0 %v3301
    %v3369 = vpop.f32.mrb[0].mxu0
    %v3370 = vadd.f32 0.0, %v3369
    %v3371 = vpop.f32.mrb[0].mxu0
    %3372 = vdwg.mxu0
    %v3373 = vadd.f32 %v3203, %v3370
    %s3374 = scalar_lea.vmem %s16, 1
    %v3375 = vld [vmem:[%s3374] sm:$0x1]
    %v3377 = vlaneseq
    %v3378 = vshrl.u32 %v3377, 7
    %v3379 = vsub.s32 0, %v3378
    %v3380 = vrot.slane %v3375, %v3379
    %v3382 = vadd.f32 %v3373, %v3380
    %s3383 = scalar_lea.vmem %s19, 1
    %v3384 = vld [vmem:[%s3383] sm:$0x1]
    %s3385 = scalar_lea.vmem %s20, 1
    %v3386 = vld [vmem:[%s3385] sm:$0x1]
    %v3387 = vsel %vm293, %v3382, 0.0
    %3388 = vadd.xlane.f32.xlu0 %v3387
    %v3389 = vpop.xlane.xlu0 %3388
    %v3390 = vmul.f32 %v3389, %v1870
    %v3391 = vsub.f32 %v3382, %v3390
    %v3392 = vmul.f32 %v3391, %v3391
    %v3393 = vsel %vm293, %v3392, 0.0
    %3394 = vadd.xlane.f32.xlu0 %v3393
    %v3395 = vpop.xlane.xlu0 %3394
    %v3396 = vmul.f32 %v3395, %v1870
    %v3397 = vadd.f32 %v3396, 1e-05
    %v3398 = vrsqrt.pop %v3397
    %v3399 = vmul.f32 %v3391, %v3398
    %v3401 = vlaneseq
    %v3402 = vshrl.u32 %v3401, 7
    %v3403 = vsub.s32 0, %v3402
    %v3404 = vrot.slane %v3384, %v3403
    %v3406 = vmul.f32 %v3399, %v3404
    %v3408 = vlaneseq
    %v3409 = vshrl.u32 %v3408, 7
    %v3410 = vsub.s32 0, %v3409
    %v3411 = vrot.slane %v3386, %v3410
    %v3413 = vadd.f32 %v3406, %v3411
    %v3414 = vld [vmem:[%s21] sm:$0xff]
    %v3415 = vld [vmem:[%s21 + $0x8] sm:$0xff]
    %v3416 = vld [vmem:[%s21 + $0x10] sm:$0xff]
    %v3417 = vld [vmem:[%s21 + $0x18] sm:$0xff]
    %v3418 = vld [vmem:[%s22] sm:$0x1]
    %v3420 = vlaneseq
    %v3421 = vshrl.u32 %v3420, 7
    %v3422 = vsub.s32 0, %v3421
    %v3423 = vrot.slane %v3418, %v3422
    %v3426 = vsel %vm293, %v3413, 0
    %3428 = vmatprep.subr.mxu0 0.0
    %3429 = vmatpush1.msra.mxu0 %v3414
    %3430 = vmatprep.subr.mxu0 0.0
    %3431 = vmatpush1.msra.mxu0 %v3415
    %3432 = vmatprep.subr.mxu0 0.0
    %3433 = vmatpush1.msra.mxu0 %v3416
    %3434 = vmatprep.subr.mxu0 0.0
    %3435 = vmatpush1.msra.mxu0 %v3417
    %3436 = vmatprep.subr.mxu0 0.0
    %3437 = vmatpush1.msra.mxu0 0.0
    %3438 = vmatprep.subr.mxu0 0.0
    %3439 = vmatpush1.msra.mxu0 0.0
    %3440 = vmatprep.subr.mxu0 0.0
    %3441 = vmatpush1.msra.mxu0 0.0
    %3442 = vmatprep.subr.mxu0 0.0
    %3443 = vmatpush1.msra.mxu0 0.0
    %3444 = vmatprep.subr.mxu0 0.0
    %3445 = vmatpush1.msra.mxu0 0.0
    %3446 = vmatprep.subr.mxu0 0.0
    %3447 = vmatpush1.msra.mxu0 0.0
    %3448 = vmatprep.subr.mxu0 0.0
    %3449 = vmatpush1.msra.mxu0 0.0
    %3450 = vmatprep.subr.mxu0 0.0
    %3451 = vmatpush1.msra.mxu0 0.0
    %3452 = vmatprep.subr.mxu0 0.0
    %3453 = vmatpush1.msra.mxu0 0.0
    %3454 = vmatprep.subr.mxu0 0.0
    %3455 = vmatpush1.msra.mxu0 0.0
    %3456 = vmatprep.subr.mxu0 0.0
    %3457 = vmatpush1.msra.mxu0 0.0
    %3458 = vmatprep.subr.mxu0 0.0
    %3459 = vmatpush1.msra.mxu0 0.0
    %3460 = vmatprep.subr.mxu0 0.0
    %3461 = vmatpush1.msra.mxu0 0.0
    %3462 = vmatprep.subr.mxu0 0.0
    %3463 = vmatpush1.msra.mxu0 0.0
    %3464 = vmatprep.subr.mxu0 0.0
    %3465 = vmatpush1.msra.mxu0 0.0
    %3466 = vmatprep.subr.mxu0 0.0
    %3467 = vmatpush1.msra.mxu0 0.0
    %3468 = vmatprep.subr.mxu0 0.0
    %3469 = vmatpush1.msra.mxu0 0.0
    %3470 = vmatprep.subr.mxu0 0.0
    %3471 = vmatpush1.msra.mxu0 0.0
    %3472 = vmatprep.subr.mxu0 0.0
    %3473 = vmatpush1.msra.mxu0 0.0
    %3474 = vmatprep.subr.mxu0 0.0
    %3475 = vmatpush1.msra.mxu0 0.0
    %3476 = vmatprep.subr.mxu0 0.0
    %3477 = vmatpush1.msra.mxu0 0.0
    %3478 = vmatprep.subr.mxu0 0.0
    %3479 = vmatpush1.msra.mxu0 0.0
    %3480 = vmatprep.subr.mxu0 0.0
    %3481 = vmatpush1.msra.mxu0 0.0
    %3482 = vmatprep.subr.mxu0 0.0
    %3483 = vmatpush1.msra.mxu0 0.0
    %3484 = vmatprep.subr.mxu0 0.0
    %3485 = vmatpush1.msra.mxu0 0.0
    %3486 = vmatprep.subr.mxu0 0.0
    %3487 = vmatpush1.msra.mxu0 0.0
    %3488 = vmatprep.subr.mxu0 0.0
    %3489 = vmatpush1.msra.mxu0 0.0
    %3490 = vmatprep.subr.mxu0 0.0
    %3491 = vmatpush1.msra.mxu0 0.0
    %3492 = vmatprep.mubr.f32.mxu0 0.0
    %3493 = vmatmul.mubr.f32.gmra.mrb[0].mxu0 %v3426
    %v3494 = vpop.f32.mrb[0].mxu0
    %v3495 = vadd.f32 %v3423, %v3494
    %v3496 = vpop.f32.mrb[0].mxu0
    %3497 = vdwg.mxu0
    %v3498 = vmax.f32 %v3495, 0.0
    %v3499 = vld [vmem:[%s23] sm:$0xff]
    %v3500 = vld [vmem:[%s23 + $0x8] sm:$0xff]
    %v3501 = vld [vmem:[%s23 + $0x10] sm:$0xff]
    %v3502 = vld [vmem:[%s23 + $0x18] sm:$0xff]
    %v3503 = vld [vmem:[%s23 + $0x20] sm:$0xff]
    %v3504 = vld [vmem:[%s23 + $0x28] sm:$0xff]
    %v3505 = vld [vmem:[%s23 + $0x30] sm:$0xff]
    %v3506 = vld [vmem:[%s23 + $0x38] sm:$0xff]
    %v3507 = vld [vmem:[%s24] sm:$0x1]
    %v3509 = vlaneseq
    %v3510 = vshrl.u32 %v3509, 7
    %v3511 = vsub.s32 0, %v3510
    %v3512 = vrot.slane %v3507, %v3511
    %v3515 = vsel %vm1988, %v3498, 0
    %3517 = vmatprep.subr.mxu0 0.0
    %3518 = vmatpush1.msra.mxu0 %v3499
    %3519 = vmatprep.subr.mxu0 0.0
    %3520 = vmatpush1.msra.mxu0 %v3500
    %3521 = vmatprep.subr.mxu0 0.0
    %3522 = vmatpush1.msra.mxu0 %v3501
    %3523 = vmatprep.subr.mxu0 0.0
    %3524 = vmatpush1.msra.mxu0 %v3502
    %3525 = vmatprep.subr.mxu0 0.0
    %3526 = vmatpush1.msra.mxu0 %v3503
    %3527 = vmatprep.subr.mxu0 0.0
    %3528 = vmatpush1.msra.mxu0 %v3504
    %3529 = vmatprep.subr.mxu0 0.0
    %3530 = vmatpush1.msra.mxu0 %v3505
    %3531 = vmatprep.subr.mxu0 0.0
    %3532 = vmatpush1.msra.mxu0 %v3506
    %3533 = vmatprep.subr.mxu0 0.0
    %3534 = vmatpush1.msra.mxu0 0.0
    %3535 = vmatprep.subr.mxu0 0.0
    %3536 = vmatpush1.msra.mxu0 0.0
    %3537 = vmatprep.subr.mxu0 0.0
    %3538 = vmatpush1.msra.mxu0 0.0
    %3539 = vmatprep.subr.mxu0 0.0
    %3540 = vmatpush1.msra.mxu0 0.0
    %3541 = vmatprep.subr.mxu0 0.0
    %3542 = vmatpush1.msra.mxu0 0.0
    %3543 = vmatprep.subr.mxu0 0.0
    %3544 = vmatpush1.msra.mxu0 0.0
    %3545 = vmatprep.subr.mxu0 0.0
    %3546 = vmatpush1.msra.mxu0 0.0
    %3547 = vmatprep.subr.mxu0 0.0
    %3548 = vmatpush1.msra.mxu0 0.0
    %3549 = vmatprep.subr.mxu0 0.0
    %3550 = vmatpush1.msra.mxu0 0.0
    %3551 = vmatprep.subr.mxu0 0.0
    %3552 = vmatpush1.msra.mxu0 0.0
    %3553 = vmatprep.subr.mxu0 0.0
    %3554 = vmatpush1.msra.mxu0 0.0
    %3555 = vmatprep.subr.mxu0 0.0
    %3556 = vmatpush1.msra.mxu0 0.0
    %3557 = vmatprep.subr.mxu0 0.0
    %3558 = vmatpush1.msra.mxu0 0.0
    %3559 = vmatprep.subr.mxu0 0.0
    %3560 = vmatpush1.msra.mxu0 0.0
    %3561 = vmatprep.subr.mxu0 0.0
    %3562 = vmatpush1.msra.mxu0 0.0
    %3563 = vmatprep.subr.mxu0 0.0
    %3564 = vmatpush1.msra.mxu0 0.0
    %3565 = vmatprep.subr.mxu0 0.0
    %3566 = vmatpush1.msra.mxu0 0.0
    %3567 = vmatprep.subr.mxu0 0.0
    %3568 = vmatpush1.msra.mxu0 0.0
    %3569 = vmatprep.subr.mxu0 0.0
    %3570 = vmatpush1.msra.mxu0 0.0
    %3571 = vmatprep.subr.mxu0 0.0
    %3572 = vmatpush1.msra.mxu0 0.0
    %3573 = vmatprep.subr.mxu0 0.0
    %3574 = vmatpush1.msra.mxu0 0.0
    %3575 = vmatprep.subr.mxu0 0.0
    %3576 = vmatpush1.msra.mxu0 0.0
    %3577 = vmatprep.subr.mxu0 0.0
    %3578 = vmatpush1.msra.mxu0 0.0
    %3579 = vmatprep.subr.mxu0 0.0
    %3580 = vmatpush1.msra.mxu0 0.0
    %3581 = vmatprep.mubr.f32.mxu0 0.0
    %3582 = vmatmul.mubr.f32.gmra.mrb[0].mxu0 %v3515
    %v3583 = vpop.f32.mrb[0].mxu0
    %v3584 = vadd.f32 %v3512, %v3583
    %v3585 = vpop.f32.mrb[0].mxu0
    %3586 = vdwg.mxu0
    %v3587 = vld [vmem:[%s2] sm:$0xff]
    %v3588 = vld [vmem:[%s2 + $0x8] sm:$0xff]
    %v3589 = vld [vmem:[%s2 + $0x10] sm:$0xff]
    %v3590 = vld [vmem:[%s2 + $0x18] sm:$0xff]
    %v3591 = vld [vmem:[%s2 + $0x20] sm:$0xff]
    %v3592 = vld [vmem:[%s2 + $0x28] sm:$0xff]
    %v3593 = vld [vmem:[%s2 + $0x30] sm:$0xff]
    %v3594 = vld [vmem:[%s2 + $0x38] sm:$0xff]
    %v3595 = vld [vmem:[%s2 + $0x40] sm:$0xff]
    %v3596 = vld [vmem:[%s2 + $0x48] sm:$0xff]
    %v3597 = vld [vmem:[%s2 + $0x50] sm:$0xff]
    %v3598 = vld [vmem:[%s2 + $0x58] sm:$0xff]
    %v3599 = vld [vmem:[%s2 + $0x60] sm:$0xff]
    %v3600 = vld [vmem:[%s2 + $0x68] sm:$0xff]
    %v3601 = vld [vmem:[%s2 + $0x70] sm:$0xff]
    %v3602 = vld [vmem:[%s2 + $0x78] sm:$0xff]
    %v3603 = vld [vmem:[%s2 + $0x80] sm:$0xff]
    %v3604 = vld [vmem:[%s2 + $0x88] sm:$0xff]
    %v3605 = vld [vmem:[%s2 + $0x90] sm:$0xff]
    %v3606 = vld [vmem:[%s2 + $0x98] sm:$0xff]
    %v3607 = vld [vmem:[%s2 + $0xa0] sm:$0xff]
    %v3608 = vld [vmem:[%s2 + $0xa8] sm:$0xff]
    %v3609 = vld [vmem:[%s2 + $0xb0] sm:$0xff]
    %v3610 = vld [vmem:[%s2 + $0xb8] sm:$0xff]
    %v3611 = vld [vmem:[%s2 + $0xc0] sm:$0xff]
    %v3612 = vld [vmem:[%s2 + $0xc8] sm:$0xff]
    %v3613 = vld [vmem:[%s2 + $0xd0] sm:$0xff]
    %v3614 = vld [vmem:[%s2 + $0xd8] sm:$0xff]
    %v3615 = vld [vmem:[%s2 + $0xe0] sm:$0xff]
    %v3616 = vld [vmem:[%s2 + $0xe8] sm:$0xff]
    %v3617 = vld [vmem:[%s2 + $0xf0] sm:$0xff]
    %v3618 = vld [vmem:[%s2 + $0xf8] sm:$0xff]
    %v3619 = vld [vmem:[%s2 + $0x100] sm:$0xff]
    %v3620 = vld [vmem:[%s2 + $0x108] sm:$0xff]
    %v3621 = vld [vmem:[%s2 + $0x110] sm:$0xff]
    %v3622 = vld [vmem:[%s2 + $0x118] sm:$0xff]
    %v3623 = vld [vmem:[%s2 + $0x120] sm:$0xff]
    %v3624 = vld [vmem:[%s2 + $0x128] sm:$0xff]
    %v3625 = vld [vmem:[%s2 + $0x130] sm:$0xff]
    %v3626 = vld [vmem:[%s2 + $0x138] sm:$0xff]
    %v3627 = vld [vmem:[%s2 + $0x140] sm:$0xff]
    %v3628 = vld [vmem:[%s2 + $0x148] sm:$0xff]
    %v3629 = vld [vmem:[%s2 + $0x150] sm:$0xff]
    %v3630 = vld [vmem:[%s2 + $0x158] sm:$0xff]
    %v3631 = vld [vmem:[%s2 + $0x160] sm:$0xff]
    %v3632 = vld [vmem:[%s2 + $0x168] sm:$0xff]
    %v3633 = vld [vmem:[%s2 + $0x170] sm:$0xff]
    %v3634 = vld [vmem:[%s2 + $0x178] sm:$0xff]
    %v3635 = vld [vmem:[%s2 + $0x180] sm:$0xff]
    %v3636 = vld [vmem:[%s2 + $0x188] sm:$0xff]
    %v3637 = vld [vmem:[%s2 + $0x190] sm:$0xff]
    %v3638 = vld [vmem:[%s2 + $0x198] sm:$0xff]
    %v3640 = vsel %vm293, %v3584, 0
    %3642 = vmatprep.subr.mxu0 %v3588
    %3643 = vmatpush1.msra.mxu0 %v3587
    %3644 = vmatprep.subr.mxu0 %v3601
    %3645 = vmatpush1.msra.mxu0 %v3600
    %3646 = vmatprep.subr.mxu0 %v3614
    %3647 = vmatpush1.msra.mxu0 %v3613
    %3648 = vmatprep.subr.mxu0 %v3627
    %3649 = vmatpush1.msra.mxu0 %v3626
    %3650 = vmatprep.subr.mxu0 0.0
    %3651 = vmatpush1.msra.mxu0 0.0
    %3652 = vmatprep.subr.mxu0 0.0
    %3653 = vmatpush1.msra.mxu0 0.0
    %3654 = vmatprep.subr.mxu0 0.0
    %3655 = vmatpush1.msra.mxu0 0.0
    %3656 = vmatprep.subr.mxu0 0.0
    %3657 = vmatpush1.msra.mxu0 0.0
    %3658 = vmatprep.subr.mxu0 0.0
    %3659 = vmatpush1.msra.mxu0 0.0
    %3660 = vmatprep.subr.mxu0 0.0
    %3661 = vmatpush1.msra.mxu0 0.0
    %3662 = vmatprep.subr.mxu0 0.0
    %3663 = vmatpush1.msra.mxu0 0.0
    %3664 = vmatprep.subr.mxu0 0.0
    %3665 = vmatpush1.msra.mxu0 0.0
    %3666 = vmatprep.subr.mxu0 0.0
    %3667 = vmatpush1.msra.mxu0 0.0
    %3668 = vmatprep.subr.mxu0 0.0
    %3669 = vmatpush1.msra.mxu0 0.0
    %3670 = vmatprep.subr.mxu0 0.0
    %3671 = vmatpush1.msra.mxu0 0.0
    %3672 = vmatprep.subr.mxu0 0.0
    %3673 = vmatpush1.msra.mxu0 0.0
    %3674 = vmatprep.subr.mxu0 0.0
    %3675 = vmatpush1.msra.mxu0 0.0
    %3676 = vmatprep.subr.mxu0 0.0
    %3677 = vmatpush1.msra.mxu0 0.0
    %3678 = vmatprep.subr.mxu0 0.0
    %3679 = vmatpush1.msra.mxu0 0.0
    %3680 = vmatprep.subr.mxu0 0.0
    %3681 = vmatpush1.msra.mxu0 0.0
    %3682 = vmatprep.subr.mxu0 0.0
    %3683 = vmatpush1.msra.mxu0 0.0
    %3684 = vmatprep.subr.mxu0 0.0
    %3685 = vmatpush1.msra.mxu0 0.0
    %3686 = vmatprep.subr.mxu0 0.0
    %3687 = vmatpush1.msra.mxu0 0.0
    %3688 = vmatprep.subr.mxu0 0.0
    %3689 = vmatpush1.msra.mxu0 0.0
    %3690 = vmatprep.subr.mxu0 0.0
    %3691 = vmatpush1.msra.mxu0 0.0
    %3692 = vmatprep.subr.mxu0 0.0
    %3693 = vmatpush1.msra.mxu0 0.0
    %3694 = vmatprep.subr.mxu0 0.0
    %3695 = vmatpush1.msra.mxu0 0.0
    %3696 = vmatprep.subr.mxu0 0.0
    %3697 = vmatpush1.msra.mxu0 0.0
    %3698 = vmatprep.subr.mxu0 0.0
    %3699 = vmatpush1.msra.mxu0 0.0
    %3700 = vmatprep.subr.mxu0 0.0
    %3701 = vmatpush1.msra.mxu0 0.0
    %3702 = vmatprep.subr.mxu0 0.0
    %3703 = vmatpush1.msra.mxu0 0.0
    %3704 = vmatprep.subr.mxu0 0.0
    %3705 = vmatpush1.msra.mxu0 0.0
    %3706 = vmatprep.mubr.f32.mxu0 0.0
    %3707 = vmatmul.mubr.f32.gmra.mrb[0].mxu0 %v3640
    %v3708 = vpop.f32.mrb[0].mxu0
    %v3709 = vadd.f32 0.0, %v3708
    %v3710 = vpop.f32.mrb[0].mxu0
    %v3711 = vadd.f32 0.0, %v3710
    %3712 = vdwg.mxu0
    %3713 = vmatprep.subr.mxu0 %v3590
    %3714 = vmatpush1.msra.mxu0 %v3589
    %3715 = vmatprep.subr.mxu0 %v3603
    %3716 = vmatpush1.msra.mxu0 %v3602
    %3717 = vmatprep.subr.mxu0 %v3616
    %3718 = vmatpush1.msra.mxu0 %v3615
    %3719 = vmatprep.subr.mxu0 %v3629
    %3720 = vmatpush1.msra.mxu0 %v3628
    %3721 = vmatprep.subr.mxu0 0.0
    %3722 = vmatpush1.msra.mxu0 0.0
    %3723 = vmatprep.subr.mxu0 0.0
    %3724 = vmatpush1.msra.mxu0 0.0
    %3725 = vmatprep.subr.mxu0 0.0
    %3726 = vmatpush1.msra.mxu0 0.0
    %3727 = vmatprep.subr.mxu0 0.0
    %3728 = vmatpush1.msra.mxu0 0.0
    %3729 = vmatprep.subr.mxu0 0.0
    %3730 = vmatpush1.msra.mxu0 0.0
    %3731 = vmatprep.subr.mxu0 0.0
    %3732 = vmatpush1.msra.mxu0 0.0
    %3733 = vmatprep.subr.mxu0 0.0
    %3734 = vmatpush1.msra.mxu0 0.0
    %3735 = vmatprep.subr.mxu0 0.0
    %3736 = vmatpush1.msra.mxu0 0.0
    %3737 = vmatprep.subr.mxu0 0.0
    %3738 = vmatpush1.msra.mxu0 0.0
    %3739 = vmatprep.subr.mxu0 0.0
    %3740 = vmatpush1.msra.mxu0 0.0
    %3741 = vmatprep.subr.mxu0 0.0
    %3742 = vmatpush1.msra.mxu0 0.0
    %3743 = vmatprep.subr.mxu0 0.0
    %3744 = vmatpush1.msra.mxu0 0.0
    %3745 = vmatprep.subr.mxu0 0.0
    %3746 = vmatpush1.msra.mxu0 0.0
    %3747 = vmatprep.subr.mxu0 0.0
    %3748 = vmatpush1.msra.mxu0 0.0
    %3749 = vmatprep.subr.mxu0 0.0
    %3750 = vmatpush1.msra.mxu0 0.0
    %3751 = vmatprep.subr.mxu0 0.0
    %3752 = vmatpush1.msra.mxu0 0.0
    %3753 = vmatprep.subr.mxu0 0.0
    %3754 = vmatpush1.msra.mxu0 0.0
    %3755 = vmatprep.subr.mxu0 0.0
    %3756 = vmatpush1.msra.mxu0 0.0
    %3757 = vmatprep.subr.mxu0 0.0
    %3758 = vmatpush1.msra.mxu0 0.0
    %3759 = vmatprep.subr.mxu0 0.0
    %3760 = vmatpush1.msra.mxu0 0.0
    %3761 = vmatprep.subr.mxu0 0.0
    %3762 = vmatpush1.msra.mxu0 0.0
    %3763 = vmatprep.subr.mxu0 0.0
    %3764 = vmatpush1.msra.mxu0 0.0
    %3765 = vmatprep.subr.mxu0 0.0
    %3766 = vmatpush1.msra.mxu0 0.0
    %3767 = vmatprep.subr.mxu0 0.0
    %3768 = vmatpush1.msra.mxu0 0.0
    %3769 = vmatprep.subr.mxu0 0.0
    %3770 = vmatpush1.msra.mxu0 0.0
    %3771 = vmatprep.subr.mxu0 0.0
    %3772 = vmatpush1.msra.mxu0 0.0
    %3773 = vmatprep.subr.mxu0 0.0
    %3774 = vmatpush1.msra.mxu0 0.0
    %3775 = vmatprep.subr.mxu0 0.0
    %3776 = vmatpush1.msra.mxu0 0.0
    %3777 = vmatprep.mubr.f32.mxu0 0.0
    %3778 = vmatmul.mubr.f32.gmra.mrb[0].mxu0 %v3640
    %v3779 = vpop.f32.mrb[0].mxu0
    %v3780 = vadd.f32 0.0, %v3779
    %v3781 = vpop.f32.mrb[0].mxu0
    %v3782 = vadd.f32 0.0, %v3781
    %3783 = vdwg.mxu0
    %3784 = vmatprep.subr.mxu0 %v3592
    %3785 = vmatpush1.msra.mxu0 %v3591
    %3786 = vmatprep.subr.mxu0 %v3605
    %3787 = vmatpush1.msra.mxu0 %v3604
    %3788 = vmatprep.subr.mxu0 %v3618
    %3789 = vmatpush1.msra.mxu0 %v3617
    %3790 = vmatprep.subr.mxu0 %v3631
    %3791 = vmatpush1.msra.mxu0 %v3630
    %3792 = vmatprep.subr.mxu0 0.0
    %3793 = vmatpush1.msra.mxu0 0.0
    %3794 = vmatprep.subr.mxu0 0.0
    %3795 = vmatpush1.msra.mxu0 0.0
    %3796 = vmatprep.subr.mxu0 0.0
    %3797 = vmatpush1.msra.mxu0 0.0
    %3798 = vmatprep.subr.mxu0 0.0
    %3799 = vmatpush1.msra.mxu0 0.0
    %3800 = vmatprep.subr.mxu0 0.0
    %3801 = vmatpush1.msra.mxu0 0.0
    %3802 = vmatprep.subr.mxu0 0.0
    %3803 = vmatpush1.msra.mxu0 0.0
    %3804 = vmatprep.subr.mxu0 0.0
    %3805 = vmatpush1.msra.mxu0 0.0
    %3806 = vmatprep.subr.mxu0 0.0
    %3807 = vmatpush1.msra.mxu0 0.0
    %3808 = vmatprep.subr.mxu0 0.0
    %3809 = vmatpush1.msra.mxu0 0.0
    %3810 = vmatprep.subr.mxu0 0.0
    %3811 = vmatpush1.msra.mxu0 0.0
    %3812 = vmatprep.subr.mxu0 0.0
    %3813 = vmatpush1.msra.mxu0 0.0
    %3814 = vmatprep.subr.mxu0 0.0
    %3815 = vmatpush1.msra.mxu0 0.0
    %3816 = vmatprep.subr.mxu0 0.0
    %3817 = vmatpush1.msra.mxu0 0.0
    %3818 = vmatprep.subr.mxu0 0.0
    %3819 = vmatpush1.msra.mxu0 0.0
    %3820 = vmatprep.subr.mxu0 0.0
    %3821 = vmatpush1.msra.mxu0 0.0
    %3822 = vmatprep.subr.mxu0 0.0
    %3823 = vmatpush1.msra.mxu0 0.0
    %3824 = vmatprep.subr.mxu0 0.0
    %3825 = vmatpush1.msra.mxu0 0.0
    %3826 = vmatprep.subr.mxu0 0.0
    %3827 = vmatpush1.msra.mxu0 0.0
    %3828 = vmatprep.subr.mxu0 0.0
    %3829 = vmatpush1.msra.mxu0 0.0
    %3830 = vmatprep.subr.mxu0 0.0
    %3831 = vmatpush1.msra.mxu0 0.0
    %3832 = vmatprep.subr.mxu0 0.0
    %3833 = vmatpush1.msra.mxu0 0.0
    %3834 = vmatprep.subr.mxu0 0.0
    %3835 = vmatpush1.msra.mxu0 0.0
    %3836 = vmatprep.subr.mxu0 0.0
    %3837 = vmatpush1.msra.mxu0 0.0
    %3838 = vmatprep.subr.mxu0 0.0
    %3839 = vmatpush1.msra.mxu0 0.0
    %3840 = vmatprep.subr.mxu0 0.0
    %3841 = vmatpush1.msra.mxu0 0.0
    %3842 = vmatprep.subr.mxu0 0.0
    %3843 = vmatpush1.msra.mxu0 0.0
    %3844 = vmatprep.subr.mxu0 0.0
    %3845 = vmatpush1.msra.mxu0 0.0
    %3846 = vmatprep.subr.mxu0 0.0
    %3847 = vmatpush1.msra.mxu0 0.0
    %3848 = vmatprep.mubr.f32.mxu0 0.0
    %3849 = vmatmul.mubr.f32.gmra.mrb[0].mxu0 %v3640
    %v3850 = vpop.f32.mrb[0].mxu0
    %v3851 = vadd.f32 0.0, %v3850
    %v3852 = vpop.f32.mrb[0].mxu0
    %v3853 = vadd.f32 0.0, %v3852
    %3854 = vdwg.mxu0
    %3855 = vmatprep.subr.mxu0 %v3594
    %3856 = vmatpush1.msra.mxu0 %v3593
    %3857 = vmatprep.subr.mxu0 %v3607
    %3858 = vmatpush1.msra.mxu0 %v3606
    %3859 = vmatprep.subr.mxu0 %v3620
    %3860 = vmatpush1.msra.mxu0 %v3619
    %3861 = vmatprep.subr.mxu0 %v3633
    %3862 = vmatpush1.msra.mxu0 %v3632
    %3863 = vmatprep.subr.mxu0 0.0
    %3864 = vmatpush1.msra.mxu0 0.0
    %3865 = vmatprep.subr.mxu0 0.0
    %3866 = vmatpush1.msra.mxu0 0.0
    %3867 = vmatprep.subr.mxu0 0.0
    %3868 = vmatpush1.msra.mxu0 0.0
    %3869 = vmatprep.subr.mxu0 0.0
    %3870 = vmatpush1.msra.mxu0 0.0
    %3871 = vmatprep.subr.mxu0 0.0
    %3872 = vmatpush1.msra.mxu0 0.0
    %3873 = vmatprep.subr.mxu0 0.0
    %3874 = vmatpush1.msra.mxu0 0.0
    %3875 = vmatprep.subr.mxu0 0.0
    %3876 = vmatpush1.msra.mxu0 0.0
    %3877 = vmatprep.subr.mxu0 0.0
    %3878 = vmatpush1.msra.mxu0 0.0
    %3879 = vmatprep.subr.mxu0 0.0
    %3880 = vmatpush1.msra.mxu0 0.0
    %3881 = vmatprep.subr.mxu0 0.0
    %3882 = vmatpush1.msra.mxu0 0.0
    %3883 = vmatprep.subr.mxu0 0.0
    %3884 = vmatpush1.msra.mxu0 0.0
    %3885 = vmatprep.subr.mxu0 0.0
    %3886 = vmatpush1.msra.mxu0 0.0
    %3887 = vmatprep.subr.mxu0 0.0
    %3888 = vmatpush1.msra.mxu0 0.0
    %3889 = vmatprep.subr.mxu0 0.0
    %3890 = vmatpush1.msra.mxu0 0.0
    %3891 = vmatprep.subr.mxu0 0.0
    %3892 = vmatpush1.msra.mxu0 0.0
    %3893 = vmatprep.subr.mxu0 0.0
    %3894 = vmatpush1.msra.mxu0 0.0
    %3895 = vmatprep.subr.mxu0 0.0
    %3896 = vmatpush1.msra.mxu0 0.0
    %3897 = vmatprep.subr.mxu0 0.0
    %3898 = vmatpush1.msra.mxu0 0.0
    %3899 = vmatprep.subr.mxu0 0.0
    %3900 = vmatpush1.msra.mxu0 0.0
    %3901 = vmatprep.subr.mxu0 0.0
    %3902 = vmatpush1.msra.mxu0 0.0
    %3903 = vmatprep.subr.mxu0 0.0
    %3904 = vmatpush1.msra.mxu0 0.0
    %3905 = vmatprep.subr.mxu0 0.0
    %3906 = vmatpush1.msra.mxu0 0.0
    %3907 = vmatprep.subr.mxu0 0.0
    %3908 = vmatpush1.msra.mxu0 0.0
    %3909 = vmatprep.subr.mxu0 0.0
    %3910 = vmatpush1.msra.mxu0 0.0
    %3911 = vmatprep.subr.mxu0 0.0
    %3912 = vmatpush1.msra.mxu0 0.0
    %3913 = vmatprep.subr.mxu0 0.0
    %3914 = vmatpush1.msra.mxu0 0.0
    %3915 = vmatprep.subr.mxu0 0.0
    %3916 = vmatpush1.msra.mxu0 0.0
    %3917 = vmatprep.subr.mxu0 0.0
    %3918 = vmatpush1.msra.mxu0 0.0
    %3919 = vmatprep.mubr.f32.mxu0 0.0
    %3920 = vmatmul.mubr.f32.gmra.mrb[0].mxu0 %v3640
    %v3921 = vpop.f32.mrb[0].mxu0
    %v3922 = vadd.f32 0.0, %v3921
    %v3923 = vpop.f32.mrb[0].mxu0
    %v3924 = vadd.f32 0.0, %v3923
    %3925 = vdwg.mxu0
    %3926 = vmatprep.subr.mxu0 %v3596
    %3927 = vmatpush1.msra.mxu0 %v3595
    %3928 = vmatprep.subr.mxu0 %v3609
    %3929 = vmatpush1.msra.mxu0 %v3608
    %3930 = vmatprep.subr.mxu0 %v3622
    %3931 = vmatpush1.msra.mxu0 %v3621
    %3932 = vmatprep.subr.mxu0 %v3635
    %3933 = vmatpush1.msra.mxu0 %v3634
    %3934 = vmatprep.subr.mxu0 0.0
    %3935 = vmatpush1.msra.mxu0 0.0
    %3936 = vmatprep.subr.mxu0 0.0
    %3937 = vmatpush1.msra.mxu0 0.0
    %3938 = vmatprep.subr.mxu0 0.0
    %3939 = vmatpush1.msra.mxu0 0.0
    %3940 = vmatprep.subr.mxu0 0.0
    %3941 = vmatpush1.msra.mxu0 0.0
    %3942 = vmatprep.subr.mxu0 0.0
    %3943 = vmatpush1.msra.mxu0 0.0
    %3944 = vmatprep.subr.mxu0 0.0
    %3945 = vmatpush1.msra.mxu0 0.0
    %3946 = vmatprep.subr.mxu0 0.0
    %3947 = vmatpush1.msra.mxu0 0.0
    %3948 = vmatprep.subr.mxu0 0.0
    %3949 = vmatpush1.msra.mxu0 0.0
    %3950 = vmatprep.subr.mxu0 0.0
    %3951 = vmatpush1.msra.mxu0 0.0
    %3952 = vmatprep.subr.mxu0 0.0
    %3953 = vmatpush1.msra.mxu0 0.0
    %3954 = vmatprep.subr.mxu0 0.0
    %3955 = vmatpush1.msra.mxu0 0.0
    %3956 = vmatprep.subr.mxu0 0.0
    %3957 = vmatpush1.msra.mxu0 0.0
    %3958 = vmatprep.subr.mxu0 0.0
    %3959 = vmatpush1.msra.mxu0 0.0
    %3960 = vmatprep.subr.mxu0 0.0
    %3961 = vmatpush1.msra.mxu0 0.0
    %3962 = vmatprep.subr.mxu0 0.0
    %3963 = vmatpush1.msra.mxu0 0.0
    %3964 = vmatprep.subr.mxu0 0.0
    %3965 = vmatpush1.msra.mxu0 0.0
    %3966 = vmatprep.subr.mxu0 0.0
    %3967 = vmatpush1.msra.mxu0 0.0
    %3968 = vmatprep.subr.mxu0 0.0
    %3969 = vmatpush1.msra.mxu0 0.0
    %3970 = vmatprep.subr.mxu0 0.0
    %3971 = vmatpush1.msra.mxu0 0.0
    %3972 = vmatprep.subr.mxu0 0.0
    %3973 = vmatpush1.msra.mxu0 0.0
    %3974 = vmatprep.subr.mxu0 0.0
    %3975 = vmatpush1.msra.mxu0 0.0
    %3976 = vmatprep.subr.mxu0 0.0
    %3977 = vmatpush1.msra.mxu0 0.0
    %3978 = vmatprep.subr.mxu0 0.0
    %3979 = vmatpush1.msra.mxu0 0.0
    %3980 = vmatprep.subr.mxu0 0.0
    %3981 = vmatpush1.msra.mxu0 0.0
    %3982 = vmatprep.subr.mxu0 0.0
    %3983 = vmatpush1.msra.mxu0 0.0
    %3984 = vmatprep.subr.mxu0 0.0
    %3985 = vmatpush1.msra.mxu0 0.0
    %3986 = vmatprep.subr.mxu0 0.0
    %3987 = vmatpush1.msra.mxu0 0.0
    %3988 = vmatprep.subr.mxu0 0.0
    %3989 = vmatpush1.msra.mxu0 0.0
    %3990 = vmatprep.mubr.f32.mxu0 0.0
    %3991 = vmatmul.mubr.f32.gmra.mrb[0].mxu0 %v3640
    %v3992 = vpop.f32.mrb[0].mxu0
    %v3993 = vadd.f32 0.0, %v3992
    %v3994 = vpop.f32.mrb[0].mxu0
    %v3995 = vadd.f32 0.0, %v3994
    %3996 = vdwg.mxu0
    %3997 = vmatprep.subr.mxu0 %v3598
    %3998 = vmatpush1.msra.mxu0 %v3597
    %3999 = vmatprep.subr.mxu0 %v3611
    %4000 = vmatpush1.msra.mxu0 %v3610
    %4001 = vmatprep.subr.mxu0 %v3624
    %4002 = vmatpush1.msra.mxu0 %v3623
    %4003 = vmatprep.subr.mxu0 %v3637
    %4004 = vmatpush1.msra.mxu0 %v3636
    %4005 = vmatprep.subr.mxu0 0.0
    %4006 = vmatpush1.msra.mxu0 0.0
    %4007 = vmatprep.subr.mxu0 0.0
    %4008 = vmatpush1.msra.mxu0 0.0
    %4009 = vmatprep.subr.mxu0 0.0
    %4010 = vmatpush1.msra.mxu0 0.0
    %4011 = vmatprep.subr.mxu0 0.0
    %4012 = vmatpush1.msra.mxu0 0.0
    %4013 = vmatprep.subr.mxu0 0.0
    %4014 = vmatpush1.msra.mxu0 0.0
    %4015 = vmatprep.subr.mxu0 0.0
    %4016 = vmatpush1.msra.mxu0 0.0
    %4017 = vmatprep.subr.mxu0 0.0
    %4018 = vmatpush1.msra.mxu0 0.0
    %4019 = vmatprep.subr.mxu0 0.0
    %4020 = vmatpush1.msra.mxu0 0.0
    %4021 = vmatprep.subr.mxu0 0.0
    %4022 = vmatpush1.msra.mxu0 0.0
    %4023 = vmatprep.subr.mxu0 0.0
    %4024 = vmatpush1.msra.mxu0 0.0
    %4025 = vmatprep.subr.mxu0 0.0
    %4026 = vmatpush1.msra.mxu0 0.0
    %4027 = vmatprep.subr.mxu0 0.0
    %4028 = vmatpush1.msra.mxu0 0.0
    %4029 = vmatprep.subr.mxu0 0.0
    %4030 = vmatpush1.msra.mxu0 0.0
    %4031 = vmatprep.subr.mxu0 0.0
    %4032 = vmatpush1.msra.mxu0 0.0
    %4033 = vmatprep.subr.mxu0 0.0
    %4034 = vmatpush1.msra.mxu0 0.0
    %4035 = vmatprep.subr.mxu0 0.0
    %4036 = vmatpush1.msra.mxu0 0.0
    %4037 = vmatprep.subr.mxu0 0.0
    %4038 = vmatpush1.msra.mxu0 0.0
    %4039 = vmatprep.subr.mxu0 0.0
    %4040 = vmatpush1.msra.mxu0 0.0
    %4041 = vmatprep.subr.mxu0 0.0
    %4042 = vmatpush1.msra.mxu0 0.0
    %4043 = vmatprep.subr.mxu0 0.0
    %4044 = vmatpush1.msra.mxu0 0.0
    %4045 = vmatprep.subr.mxu0 0.0
    %4046 = vmatpush1.msra.mxu0 0.0
    %4047 = vmatprep.subr.mxu0 0.0
    %4048 = vmatpush1.msra.mxu0 0.0
    %4049 = vmatprep.subr.mxu0 0.0
    %4050 = vmatpush1.msra.mxu0 0.0
    %4051 = vmatprep.subr.mxu0 0.0
    %4052 = vmatpush1.msra.mxu0 0.0
    %4053 = vmatprep.subr.mxu0 0.0
    %4054 = vmatpush1.msra.mxu0 0.0
    %4055 = vmatprep.subr.mxu0 0.0
    %4056 = vmatpush1.msra.mxu0 0.0
    %4057 = vmatprep.subr.mxu0 0.0
    %4058 = vmatpush1.msra.mxu0 0.0
    %4059 = vmatprep.subr.mxu0 0.0
    %4060 = vmatpush1.msra.mxu0 0.0
    %4061 = vmatprep.mubr.f32.mxu0 0.0
    %4062 = vmatmul.mubr.f32.gmra.mrb[0].mxu0 %v3640
    %v4063 = vpop.f32.mrb[0].mxu0
    %v4064 = vadd.f32 0.0, %v4063
    %v4065 = vpop.f32.mrb[0].mxu0
    %v4066 = vadd.f32 0.0, %v4065
    %4067 = vdwg.mxu0
    %4068 = vmatprep.subr.mxu0 0.0
    %4069 = vmatpush1.msra.mxu0 %v3599
    %4070 = vmatprep.subr.mxu0 0.0
    %4071 = vmatpush1.msra.mxu0 %v3612
    %4072 = vmatprep.subr.mxu0 0.0
    %4073 = vmatpush1.msra.mxu0 %v3625
    %4074 = vmatprep.subr.mxu0 0.0
    %4075 = vmatpush1.msra.mxu0 %v3638
    %4076 = vmatprep.subr.mxu0 0.0
    %4077 = vmatpush1.msra.mxu0 0.0
    %4078 = vmatprep.subr.mxu0 0.0
    %4079 = vmatpush1.msra.mxu0 0.0
    %4080 = vmatprep.subr.mxu0 0.0
    %4081 = vmatpush1.msra.mxu0 0.0
    %4082 = vmatprep.subr.mxu0 0.0
    %4083 = vmatpush1.msra.mxu0 0.0
    %4084 = vmatprep.subr.mxu0 0.0
    %4085 = vmatpush1.msra.mxu0 0.0
    %4086 = vmatprep.subr.mxu0 0.0
    %4087 = vmatpush1.msra.mxu0 0.0
    %4088 = vmatprep.subr.mxu0 0.0
    %4089 = vmatpush1.msra.mxu0 0.0
    %4090 = vmatprep.subr.mxu0 0.0
    %4091 = vmatpush1.msra.mxu0 0.0
    %4092 = vmatprep.subr.mxu0 0.0
    %4093 = vmatpush1.msra.mxu0 0.0
    %4094 = vmatprep.subr.mxu0 0.0
    %4095 = vmatpush1.msra.mxu0 0.0
    %4096 = vmatprep.subr.mxu0 0.0
    %4097 = vmatpush1.msra.mxu0 0.0
    %4098 = vmatprep.subr.mxu0 0.0
    %4099 = vmatpush1.msra.mxu0 0.0
    %4100 = vmatprep.subr.mxu0 0.0
    %4101 = vmatpush1.msra.mxu0 0.0
    %4102 = vmatprep.subr.mxu0 0.0
    %4103 = vmatpush1.msra.mxu0 0.0
    %4104 = vmatprep.subr.mxu0 0.0
    %4105 = vmatpush1.msra.mxu0 0.0
    %4106 = vmatprep.subr.mxu0 0.0
    %4107 = vmatpush1.msra.mxu0 0.0
    %4108 = vmatprep.subr.mxu0 0.0
    %4109 = vmatpush1.msra.mxu0 0.0
    %4110 = vmatprep.subr.mxu0 0.0
    %4111 = vmatpush1.msra.mxu0 0.0
    %4112 = vmatprep.subr.mxu0 0.0
    %4113 = vmatpush1.msra.mxu0 0.0
    %4114 = vmatprep.subr.mxu0 0.0
    %4115 = vmatpush1.msra.mxu0 0.0
    %4116 = vmatprep.subr.mxu0 0.0
    %4117 = vmatpush1.msra.mxu0 0.0
    %4118 = vmatprep.subr.mxu0 0.0
    %4119 = vmatpush1.msra.mxu0 0.0
    %4120 = vmatprep.subr.mxu0 0.0
    %4121 = vmatpush1.msra.mxu0 0.0
    %4122 = vmatprep.subr.mxu0 0.0
    %4123 = vmatpush1.msra.mxu0 0.0
    %4124 = vmatprep.subr.mxu0 0.0
    %4125 = vmatpush1.msra.mxu0 0.0
    %4126 = vmatprep.subr.mxu0 0.0
    %4127 = vmatpush1.msra.mxu0 0.0
    %4128 = vmatprep.subr.mxu0 0.0
    %4129 = vmatpush1.msra.mxu0 0.0
    %4130 = vmatprep.subr.mxu0 0.0
    %4131 = vmatpush1.msra.mxu0 0.0
    %4132 = vmatprep.mubr.f32.mxu0 0.0
    %4133 = vmatmul.mubr.f32.gmra.mrb[0].mxu0 %v3640
    %v4134 = vpop.f32.mrb[0].mxu0
    %v4135 = vadd.f32 0.0, %v4134
    %v4136 = vpop.f32.mrb[0].mxu0
    %4137 = vdwg.mxu0
    %v4138 = vadd.f32 %v81, %v3709
    %v4139 = vadd.f32 %v82, %v3711
    %v4140 = vadd.f32 %v83, %v3780
    %v4141 = vadd.f32 %v84, %v3782
    %v4142 = vadd.f32 %v85, %v3851
    %v4143 = vadd.f32 %v86, %v3853
    %v4144 = vadd.f32 %v87, %v3922
    %v4145 = vadd.f32 %v88, %v3924
    %v4146 = vadd.f32 %v89, %v3993
    %v4147 = vadd.f32 %v90, %v3995
    %v4148 = vadd.f32 %v91, %v4064
    %v4149 = vadd.f32 %v92, %v4066
    %v4150 = vadd.f32 %v93, %v4135
    %4151 = vst [vmem:[#allocation2] sm:$0xff] %v4138
    %4152 = vst [vmem:[#allocation2 + $0x8] sm:$0xff] %v4139
    %4153 = vst [vmem:[#allocation2 + $0x10] sm:$0xff] %v4140
    %4154 = vst [vmem:[#allocation2 + $0x18] sm:$0xff] %v4141
    %4155 = vst [vmem:[#allocation2 + $0x20] sm:$0xff] %v4142
    %4156 = vst [vmem:[#allocation2 + $0x28] sm:$0xff] %v4143
    %4157 = vst [vmem:[#allocation2 + $0x30] sm:$0xff] %v4144
    %4158 = vst [vmem:[#allocation2 + $0x38] sm:$0xff] %v4145
    %4159 = vst [vmem:[#allocation2 + $0x40] sm:$0xff] %v4146
    %4160 = vst [vmem:[#allocation2 + $0x48] sm:$0xff] %v4147
    %4161 = vst [vmem:[#allocation2 + $0x50] sm:$0xff] %v4148
    %4162 = vst [vmem:[#allocation2 + $0x58] sm:$0xff] %v4149
    %4163 = vst.msk [vmem:[#allocation2 + $0x60] sm:$0xff] %vm293, %v4150
    // Predicated region
    $region102: #{tpu_custom_call.1} parent=1 // pred_check
      _
    $region103: #{tpu_custom_call.1} parent=1 // pred_check_branch
      %4165 = sbr.rel (0) target = $region105
    $region104: #{tpu_custom_call.1} parent=1 // pred_region
      %s4167 = ssub.s32 1664, 1664
      %4168 = vsyncadd [#allocation3], %s4167
      %s4170 = sshll.u32 [#allocation2], 4
      %s4171 = int_to_ptr.vmem [resolvable:$true] %s4170
      %4173 = dma.vmem_to_hbm [thread:$0]  %s4171, 1664, %s25, [#allocation3]
    $region105: #{tpu_custom_call.1} parent=1 // pred_fallthru
      _
    // Predicated region
    $region106: #{tpu_custom_call.1} parent=1 // pred_check
      _
    $region107: #{tpu_custom_call.1} parent=1 // pred_check_branch
      %4175 = sbr.rel (0) target = $region109
    $region108: #{tpu_custom_call.1} parent=1 // pred_region
      %4176 = dma.done [#allocation3], 1664
    $region109: #{tpu_custom_call.1} parent=1 // pred_fallthru
      _
    %4177 = vsyncpa [#allocation3], 1

</llo_original>
